<compile_context>
chip_gen: v6e
topology: v6e:2x2x1
jax: 0.10.0
libtpu: 0.0.40
codegen_flags: <defaults>
</compile_context>

<pallas_src>
import jax
import jax.numpy as jnp
import numpy as np
from jax.experimental import pallas as pl
from jax.experimental.pallas import tpu as pltpu

# ----------------------------- model dims ----------------------------------
N = 2                  # batch
C_IN = 192             # self._in_chs is hard-coded to 192 in __init__
H = W = 8              # small spatial size
HW = H * W
NUM_FEATURES = 1280
NUM_CLASSES = 1000
NC_PAD = 1024          # lane-dense padded class count (multiple of 128)
BN_EPS = 1e-5


# ----------------------------- pallas kernel --------------------------------
def efun_head_kernel(x_ref, wh_ref, scale_ref, shift_ref, wc_ref, bc_ref, o_ref):
    # x_ref:     (N*HW, C_IN)            bf16, all images stacked (batch-major rows)
    # wh_ref:    (C_IN, NUM_FEATURES)    bf16, conv_head 1x1 weights as matmul
    # scale_ref: (1, NUM_FEATURES)       f32, folded BN scale  = gamma / sqrt(var+eps)
    # shift_ref: (1, NUM_FEATURES)       f32, folded BN shift  = beta - mean*scale
    # wc_ref:    (NUM_FEATURES, NC_PAD)  bf16, classifier weights pre-scaled by 1/HW,
    #                                    zero-padded 1000 -> 1024 classes
    # bc_ref:    (1, NC_PAD)             f32, classifier bias (zero-padded)
    # o_ref:     (N, NC_PAD)             f32 logits (padded)

    # conv_head (1x1 conv == channel matmul), bf16 MXU, f32 accumulation
    h = jnp.dot(x_ref[...], wh_ref[...],
                preferred_element_type=jnp.float32)            # (N*HW, F) f32

    # bn2 (inference, folded) + act2 (ReLU)
    h = h * scale_ref[...] + shift_ref[...]
    h = jnp.maximum(h, 0.0)

    # global average pool: sum over spatial; the 1/HW factor is folded into wc
    pooled = jnp.sum(h.reshape(N, HW, NUM_FEATURES), axis=1)   # (N, F) f32

    # classifier (batched matmul) + bias
    logits = jnp.dot(pooled.astype(jnp.bfloat16), wc_ref[...],
                     preferred_element_type=jnp.float32)       # (N, NC_PAD) f32
    o_ref[...] = logits + bc_ref[...]


def efficient_fun_forward(x_nchw, params):
    """x_nchw: (N, C_IN, H, W) float32 -> logits (N, NUM_CLASSES) float32."""
    n, c, h, w = x_nchw.shape
    assert n == N and c == C_IN and h == H and w == W

    # identity stem / bn1 / act1 / blocks (see TODO above)
    # glue: NCHW -> (N*H*W, C), bf16 for MXU / half the HBM bytes
    x = jnp.transpose(x_nchw, (0, 2, 3, 1)).reshape(n * h * w, c).astype(jnp.bfloat16)

    wh = params["conv_head_w"].astype(jnp.bfloat16)            # (C_IN, F)
    scale = params["bn2_scale"]                                # (1, F) f32
    shift = params["bn2_shift"]                                # (1, F) f32
    # fold 1/HW mean-pool factor into classifier weights, pad classes to 1024 lanes
    wc = (params["cls_w"] * (1.0 / HW)).astype(jnp.bfloat16)   # (F, 1000)
    wc = jnp.pad(wc, ((0, 0), (0, NC_PAD - NUM_CLASSES)))      # (F, 1024)
    bc = jnp.pad(params["cls_b"], ((0, 0), (0, NC_PAD - NUM_CLASSES)))  # (1, 1024)

    out = pl.pallas_call(
        efun_head_kernel,
        out_shape=jax.ShapeDtypeStruct((n, NC_PAD), jnp.float32),
        grid=(1,),
        in_specs=[
            pl.BlockSpec((n * HW, C_IN), lambda i: (0, 0)),
            pl.BlockSpec((C_IN, NUM_FEATURES), lambda i: (0, 0)),
            pl.BlockSpec((1, NUM_FEATURES), lambda i: (0, 0)),
            pl.BlockSpec((1, NUM_FEATURES), lambda i: (0, 0)),
            pl.BlockSpec((NUM_FEATURES, NC_PAD), lambda i: (0, 0)),
            pl.BlockSpec((1, NC_PAD), lambda i: (0, 0)),
        ],
        out_specs=pl.BlockSpec((n, NC_PAD), lambda i: (0, 0)),
        compiler_params=pltpu.CompilerParams(
            dimension_semantics=("arbitrary",),
        ),
    )(x, wh, scale, shift, wc, bc)

    return out[:, :NUM_CLASSES]


# ----------------------------- references (pure JAX) -------------------------
def efficient_fun_reference_f32(x_nchw, params):
    """Full-f32 reference of the module's forward (head only, blocks=identity)."""
    n = x_nchw.shape[0]
    x = jnp.transpose(x_nchw, (0, 2, 3, 1)).reshape(n, HW, C_IN)
    h = jnp.einsum("nsc,cf->nsf", x, params["conv_head_w"])
    h = h * params["bn2_scale"] + params["bn2_shift"]
    h = jnp.maximum(h, 0.0)
    pooled = jnp.mean(h, axis=1)                               # (N, F)
    return pooled @ params["cls_w"] + params["cls_b"][0]


def efficient_fun_reference_bf16(x_nchw, params):
    """Reference with the same bf16 casts / f32 accumulation as the kernel."""
    n = x_nchw.shape[0]
    x = jnp.transpose(x_nchw, (0, 2, 3, 1)).reshape(n, HW, C_IN).astype(jnp.bfloat16)
    wh = params["conv_head_w"].astype(jnp.bfloat16)
    h = jnp.einsum("nsc,cf->nsf", x, wh, preferred_element_type=jnp.float32)
    h = h * params["bn2_scale"] + params["bn2_shift"]
    h = jnp.maximum(h, 0.0)
    pooled = jnp.sum(h, axis=1)                                # (N, F) f32
    wc = (params["cls_w"] * (1.0 / HW)).astype(jnp.bfloat16)
    logits = jnp.dot(pooled.astype(jnp.bfloat16), wc,
                     preferred_element_type=jnp.float32)
    return logits + params["cls_b"][0]


# ----------------------------- params ----------------------------------------
def init_params(key):
    k1, k2, k3, k4, k5, k6, k7 = jax.random.split(key, 7)
    conv_head_w = 0.05 * jax.random.normal(k1, (C_IN, NUM_FEATURES), jnp.float32)
    gamma = 1.0 + 0.1 * jax.random.normal(k2, (NUM_FEATURES,), jnp.float32)
    beta = 0.1 * jax.random.normal(k3, (NUM_FEATURES,), jnp.float32)
    run_mean = 0.1 * jax.random.normal(k4, (NUM_FEATURES,), jnp.float32)
    run_var = jnp.abs(1.0 + 0.1 * jax.random.normal(k5, (NUM_FEATURES,), jnp.float32))
    # fold BN into scale/shift (inference semantics of nn.BatchNorm2d.eval())
    scale = gamma / jnp.sqrt(run_var + BN_EPS)
    shift = beta - run_mean * scale
    cls_w = 0.03 * jax.random.normal(k6, (NUM_FEATURES, NUM_CLASSES), jnp.float32)
    cls_b = 0.01 * jax.random.normal(k7, (NUM_CLASSES,), jnp.float32)
    return {
        "conv_head_w": conv_head_w,
        "bn2_scale": scale.reshape(1, NUM_FEATURES),
        "bn2_shift": shift.reshape(1, NUM_FEATURES),
        "cls_w": cls_w,
        "cls_b": cls_b.reshape(1, NUM_CLASSES),
    }


# ----------------------------- main -------------------------------------------
if __name__ == "__main__":
    key = jax.random.PRNGKey(0)
    kx, kp = jax.random.split(key)
    x = jax.random.normal(kx, (N, C_IN, H, W), jnp.float32)   # NCHW like PyTorch
    params = init_params(kp)

    logits = jax.block_until_ready(efficient_fun_forward(x, params))
    assert logits.shape == (N, NUM_CLASSES)

    # tight check vs. a reference using identical bf16 casts (kernel correctness)
    ref_bf16 = jax.block_until_ready(efficient_fun_reference_bf16(x, params))
    np.testing.assert_allclose(np.asarray(logits), np.asarray(ref_bf16),
                               rtol=2e-3, atol=2e-3)

    # sanity check vs. the full-f32 module forward (bf16 quantization noise only)
    ref_f32 = jax.block_until_ready(efficient_fun_reference_f32(x, params))
    np.testing.assert_allclose(np.asarray(logits), np.asarray(ref_f32),
                               rtol=5e-2, atol=5e-2)

    print("KERNEL_OK")
</pallas_src>

<mosaic_0001>
module attributes {stable_mosaic.version = 11 : i64} {
  func.func @efun_head_kernel(%arg0: i32, %arg1: memref<128x192xbf16, #tpu.memory_space<vmem>>, %arg2: memref<192x1280xbf16, #tpu.memory_space<vmem>>, %arg3: memref<1x1280xf32, #tpu.memory_space<vmem>>, %arg4: memref<1x1280xf32, #tpu.memory_space<vmem>>, %arg5: memref<1280x1024xbf16, #tpu.memory_space<vmem>>, %arg6: memref<1x1024xf32, #tpu.memory_space<vmem>>, %arg7: memref<2x1024xf32, #tpu.memory_space<vmem>>) attributes {dimension_semantics = [#tpu.dimension_semantics<arbitrary>], iteration_bounds = array<i64: 1>, scalar_prefetch = 0 : i64, scratch_operands = 0 : i64, tpu.core_type = #tpu.core_type<tc>, window_params = [{pipeline_mode = #tpu.pipeline_mode<synchronous>, transform_indices = @transform_0, window_bounds = array<i64: 128, 192>}, {pipeline_mode = #tpu.pipeline_mode<synchronous>, transform_indices = @transform_1, window_bounds = array<i64: 192, 1280>}, {pipeline_mode = #tpu.pipeline_mode<synchronous>, transform_indices = @transform_2, window_bounds = array<i64: 1, 1280>}, {pipeline_mode = #tpu.pipeline_mode<synchronous>, transform_indices = @transform_3, window_bounds = array<i64: 1, 1280>}, {pipeline_mode = #tpu.pipeline_mode<synchronous>, transform_indices = @transform_4, window_bounds = array<i64: 1280, 1024>}, {pipeline_mode = #tpu.pipeline_mode<synchronous>, transform_indices = @transform_5, window_bounds = array<i64: 1, 1024>}, {pipeline_mode = #tpu.pipeline_mode<synchronous>, transform_indices = @transform_6, window_bounds = array<i64: 2, 1024>}]} {
    %c0 = arith.constant 0 : index
    %c0_0 = arith.constant 0 : index
    %0 = vector.load %arg1[%c0, %c0_0] : memref<128x192xbf16, #tpu.memory_space<vmem>>, vector<128x192xbf16>
    %c0_1 = arith.constant 0 : index
    %c0_2 = arith.constant 0 : index
    %1 = vector.load %arg2[%c0_1, %c0_2] : memref<192x1280xbf16, #tpu.memory_space<vmem>>, vector<192x1280xbf16>
    %cst = arith.constant dense<0.000000e+00> : vector<128x1280xf32>
    %2 = tpu.matmul %0, %1, %cst {dimension_numbers = #tpu.dot_dimension_numbers<[1], [0], [0], [1], [0, 0, 1, 1], [], []>} : vector<128x192xbf16>, vector<192x1280xbf16>, vector<128x1280xf32> -> vector<128x1280xf32>
    %c0_3 = arith.constant 0 : index
    %c0_4 = arith.constant 0 : index
    %3 = vector.load %arg3[%c0_3, %c0_4] : memref<1x1280xf32, #tpu.memory_space<vmem>>, vector<1x1280xf32>
    %4 = vector.broadcast %3 : vector<1x1280xf32> to vector<128x1280xf32>
    %5 = arith.mulf %2, %4 : vector<128x1280xf32>
    %c0_5 = arith.constant 0 : index
    %c0_6 = arith.constant 0 : index
    %6 = vector.load %arg4[%c0_5, %c0_6] : memref<1x1280xf32, #tpu.memory_space<vmem>>, vector<1x1280xf32>
    %7 = vector.broadcast %6 : vector<1x1280xf32> to vector<128x1280xf32>
    %8 = arith.addf %5, %7 : vector<128x1280xf32>
    %cst_7 = arith.constant 0.000000e+00 : f32
    %9 = vector.broadcast %cst_7 : f32 to vector<128x1280xf32>
    %10 = arith.maximumf %8, %9 : vector<128x1280xf32>
    %11 = vector.shape_cast %10 : vector<128x1280xf32> to vector<2x64x1280xf32>
    %cst_8 = arith.constant dense<0.000000e+00> : vector<2x1280xf32>
    %12 = vector.multi_reduction <add>, %11, %cst_8 [1] : vector<2x64x1280xf32> to vector<2x1280xf32>
    %13 = arith.truncf %12 : vector<2x1280xf32> to vector<2x1280xbf16>
    %c0_9 = arith.constant 0 : index
    %c0_10 = arith.constant 0 : index
    %14 = vector.load %arg5[%c0_9, %c0_10] : memref<1280x1024xbf16, #tpu.memory_space<vmem>>, vector<1280x1024xbf16>
    %cst_11 = arith.constant dense<0.000000e+00> : vector<2x1024xf32>
    %15 = tpu.matmul %13, %14, %cst_11 {dimension_numbers = #tpu.dot_dimension_numbers<[1], [0], [0], [1], [0, 0, 1, 1], [], []>} : vector<2x1280xbf16>, vector<1280x1024xbf16>, vector<2x1024xf32> -> vector<2x1024xf32>
    %c0_12 = arith.constant 0 : index
    %c0_13 = arith.constant 0 : index
    %16 = vector.load %arg6[%c0_12, %c0_13] : memref<1x1024xf32, #tpu.memory_space<vmem>>, vector<1x1024xf32>
    %17 = vector.broadcast %16 : vector<1x1024xf32> to vector<2x1024xf32>
    %18 = arith.addf %15, %17 : vector<2x1024xf32>
    %c0_14 = arith.constant 0 : index
    %c0_15 = arith.constant 0 : index
    %19 = vector.load %arg7[%c0_14, %c0_15] : memref<2x1024xf32, #tpu.memory_space<vmem>>, vector<2x1024xf32>
    tpu.vector_store %arg7[%c0_14, %c0_15], %18 {strides = array<i32>} : memref<2x1024xf32, #tpu.memory_space<vmem>>, vector<2x1024xf32>,
    return
  }
  func.func @transform_0(%arg0: i32) -> (i32, i32) {
    %c0_i32 = arith.constant 0 : i32
    %c0_i32_0 = arith.constant 0 : i32
    %c0_i32_1 = arith.constant 0 : i32
    return %c0_i32, %c0_i32_0 : i32, i32
  }
  func.func @transform_1(%arg0: i32) -> (i32, i32) {
    %c0_i32 = arith.constant 0 : i32
    %c0_i32_0 = arith.constant 0 : i32
    %c0_i32_1 = arith.constant 0 : i32
    return %c0_i32, %c0_i32_0 : i32, i32
  }
  func.func @transform_2(%arg0: i32) -> (i32, i32) {
    %c0_i32 = arith.constant 0 : i32
    %c0_i32_0 = arith.constant 0 : i32
    %c0_i32_1 = arith.constant 0 : i32
    return %c0_i32, %c0_i32_0 : i32, i32
  }
  func.func @transform_3(%arg0: i32) -> (i32, i32) {
    %c0_i32 = arith.constant 0 : i32
    %c0_i32_0 = arith.constant 0 : i32
    %c0_i32_1 = arith.constant 0 : i32
    return %c0_i32, %c0_i32_0 : i32, i32
  }
  func.func @transform_4(%arg0: i32) -> (i32, i32) {
    %c0_i32 = arith.constant 0 : i32
    %c0_i32_0 = arith.constant 0 : i32
    %c0_i32_1 = arith.constant 0 : i32
    return %c0_i32, %c0_i32_0 : i32, i32
  }
  func.func @transform_5(%arg0: i32) -> (i32, i32) {
    %c0_i32 = arith.constant 0 : i32
    %c0_i32_0 = arith.constant 0 : i32
    %c0_i32_1 = arith.constant 0 : i32
    return %c0_i32, %c0_i32_0 : i32, i32
  }
  func.func @transform_6(%arg0: i32) -> (i32, i32) {
    %c0_i32 = arith.constant 0 : i32
    %c0_i32_0 = arith.constant 0 : i32
    %c0_i32_1 = arith.constant 0 : i32
    return %c0_i32, %c0_i32_0 : i32, i32
  }
}

</mosaic_0001>

<llo_original>
// kernel: tpu_custom_call.1
$region0: #{tpu_custom_call.1}
  #allocation0 [shape = 'u32[]', space=smem, size = 0x4, offset = 0x4, fixed_abs, tag = 'smem constant byte address 0x4 - core index']
  #allocation1 [shape = 'u32[144,128]{1,0:T(1,128)}', space=vmem, size = 0x12000, scoped, tag = 'internal scratch']
  %s0 = inlined_call_operand.vmem [shape: bf16[128,192], index: 0, kind: input, shape index: {}]
  %s1 = inlined_call_operand.hbm [shape: bf16[192,1280], index: 1, kind: input, shape index: {}]
  %s2 = inlined_call_operand.hbm [shape: f32[1,1280], index: 2, kind: input, shape index: {}]
  %s3 = inlined_call_operand.hbm [shape: f32[1,1280], index: 3, kind: input, shape index: {}]
  %s4 = inlined_call_operand.hbm [shape: bf16[1280,1024], index: 4, kind: input, shape index: {}]
  %s5 = inlined_call_operand.hbm [shape: f32[1,1024], index: 5, kind: input, shape index: {}]
  %s6 = inlined_call_operand.hbm [shape: f32[2,1024], index: 6, kind: output, shape index: {}]
  %s7 = sld [smem:[#allocation0]]
  $region54: #{tpu_custom_call.1} parent=0
    _
  %s9 = ssub.s32 1, %s7
  %s10 = scalar_select 0, %s9, %s7
  $region1: #{tpu_custom_call.1} parent=0
    #allocation2 [shape = 'u8[491520]{0}', space=vmem, size = 0x78000, scoped, tag = 'input window, operand 1, single buffered']
    #allocation3 [shape = 's32[1]{0}', space=sflag, size = 0x4, scoped, tag = 'scoped memory for tpu_custom_call.1']
    #allocation4 [shape = 's32[1]{0}', space=sflag, size = 0x4, scoped, tag = 'scoped memory for tpu_custom_call.1']
    #allocation5 [shape = 'u8[5120]{0}', space=vmem, size = 0x1400, scoped, tag = 'input window, operand 2, single buffered']
    #allocation6 [shape = 's32[1]{0}', space=sflag, size = 0x4, scoped, tag = 'scoped memory for tpu_custom_call.1']
    #allocation7 [shape = 'u8[5120]{0}', space=vmem, size = 0x1400, scoped, tag = 'input window, operand 3, single buffered']
    #allocation8 [shape = 'u8[2621440]{0}', space=vmem, size = 0x280000, scoped, tag = 'input window, operand 4, single buffered']
    #allocation9 [shape = 's32[1]{0}', space=sflag, size = 0x4, scoped, tag = 'scoped memory for tpu_custom_call.1']
    #allocation10 [shape = 'u8[4096]{0}', space=vmem, size = 0x1000, scoped, tag = 'input window, operand 5, single buffered']
    #allocation11 [shape = 'u8[8192]{0}', space=vmem, size = 0x2000, scoped, tag = 'output window, operand 0, single buffered']
    %11 = vsyncpa [#allocation3], 0
    %12 = vsyncpa [#allocation6], 0
    %13 = vsyncpa [#allocation9], 0
    %14 = vsyncpa [#allocation4], 0
    // Predicated region
    $region2: #{tpu_custom_call.1} parent=1 // pred_check
      _
    $region3: #{tpu_custom_call.1} parent=1 // pred_check_branch
      %16 = sbr.rel (0) target = $region5
    $region4: #{tpu_custom_call.1} parent=1 // pred_region
      _
    $region5: #{tpu_custom_call.1} parent=1 // pred_fallthru
      _
    // Predicated region
    $region6: #{tpu_custom_call.1} parent=1 // pred_check
      _
    $region7: #{tpu_custom_call.1} parent=1 // pred_check_branch
      %18 = sbr.rel (0) target = $region9
    $region8: #{tpu_custom_call.1} parent=1 // pred_region
      %s20 = ssub.s32 15360, 15360
      %21 = vsyncadd [#allocation3], %s20
      %s22 = sshll.u32 [#allocation2], 4
      %s23 = int_to_ptr.vmem [resolvable:$true] %s22
      %28 = dma.hbm_to_vmem [thread:$0]  %s1, 15360, %s23, [#allocation3], 640, 640, 40
    $region9: #{tpu_custom_call.1} parent=1 // pred_fallthru
      _
    // Predicated region
    $region10: #{tpu_custom_call.1} parent=1 // pred_check
      _
    $region11: #{tpu_custom_call.1} parent=1 // pred_check_branch
      %30 = sbr.rel (0) target = $region13
    $region12: #{tpu_custom_call.1} parent=1 // pred_region
      %s32 = ssub.s32 160, 160
      %33 = vsyncadd [#allocation6], %s32
      %s35 = sshll.u32 [#allocation5], 4
      %s36 = int_to_ptr.vmem [resolvable:$true] %s35
      %38 = dma.hbm_to_vmem [thread:$0]  %s2, 160, %s36, [#allocation6]
    $region13: #{tpu_custom_call.1} parent=1 // pred_fallthru
      _
    // Predicated region
    $region14: #{tpu_custom_call.1} parent=1 // pred_check
      _
    $region15: #{tpu_custom_call.1} parent=1 // pred_check_branch
      %40 = sbr.rel (0) target = $region17
    $region16: #{tpu_custom_call.1} parent=1 // pred_region
      %s42 = ssub.s32 160, 160
      %43 = vsyncadd [#allocation6], %s42
      %s45 = sshll.u32 [#allocation7], 4
      %s46 = int_to_ptr.vmem [resolvable:$true] %s45
      %48 = dma.hbm_to_vmem [thread:$0]  %s3, 160, %s46, [#allocation6]
    $region17: #{tpu_custom_call.1} parent=1 // pred_fallthru
      _
    // Predicated region
    $region18: #{tpu_custom_call.1} parent=1 // pred_check
      _
    $region19: #{tpu_custom_call.1} parent=1 // pred_check_branch
      %50 = sbr.rel (0) target = $region21
    $region20: #{tpu_custom_call.1} parent=1 // pred_region
      %s52 = ssub.s32 81920, 81920
      %53 = vsyncadd [#allocation9], %s52
      %s54 = sshll.u32 [#allocation8], 4
      %s55 = int_to_ptr.vmem [resolvable:$true] %s54
      %60 = dma.hbm_to_vmem [thread:$0]  %s4, 81920, %s55, [#allocation9], 512, 512, 32
    $region21: #{tpu_custom_call.1} parent=1 // pred_fallthru
      _
    // Predicated region
    $region22: #{tpu_custom_call.1} parent=1 // pred_check
      _
    $region23: #{tpu_custom_call.1} parent=1 // pred_check_branch
      %62 = sbr.rel (0) target = $region25
    $region24: #{tpu_custom_call.1} parent=1 // pred_region
      %s64 = ssub.s32 128, 128
      %65 = vsyncadd [#allocation9], %s64
      %s67 = sshll.u32 [#allocation10], 4
      %s68 = int_to_ptr.vmem [resolvable:$true] %s67
      %70 = dma.hbm_to_vmem [thread:$0]  %s5, 128, %s68, [#allocation9]
    $region25: #{tpu_custom_call.1} parent=1 // pred_fallthru
      _
    // Predicated region
    $region26: #{tpu_custom_call.1} parent=1 // pred_check
      _
    $region27: #{tpu_custom_call.1} parent=1 // pred_check_branch
      %72 = sbr.rel (0) target = $region29
    $region28: #{tpu_custom_call.1} parent=1 // pred_region
      %73 = dma.done [#allocation3], 15360
    $region29: #{tpu_custom_call.1} parent=1 // pred_fallthru
      _
    // Predicated region
    $region30: #{tpu_custom_call.1} parent=1 // pred_check
      _
    $region31: #{tpu_custom_call.1} parent=1 // pred_check_branch
      %75 = sbr.rel (0) target = $region33
    $region32: #{tpu_custom_call.1} parent=1 // pred_region
      %76 = dma.done [#allocation6], 160
    $region33: #{tpu_custom_call.1} parent=1 // pred_fallthru
      _
    // Predicated region
    $region34: #{tpu_custom_call.1} parent=1 // pred_check
      _
    $region35: #{tpu_custom_call.1} parent=1 // pred_check_branch
      %78 = sbr.rel (0) target = $region37
    $region36: #{tpu_custom_call.1} parent=1 // pred_region
      %79 = dma.done [#allocation6], 160
    $region37: #{tpu_custom_call.1} parent=1 // pred_fallthru
      _
    // Predicated region
    $region38: #{tpu_custom_call.1} parent=1 // pred_check
      _
    $region39: #{tpu_custom_call.1} parent=1 // pred_check_branch
      %81 = sbr.rel (0) target = $region41
    $region40: #{tpu_custom_call.1} parent=1 // pred_region
      %82 = dma.done [#allocation9], 81920
    $region41: #{tpu_custom_call.1} parent=1 // pred_fallthru
      _
    // Predicated region
    $region42: #{tpu_custom_call.1} parent=1 // pred_check
      _
    $region43: #{tpu_custom_call.1} parent=1 // pred_check_branch
      %84 = sbr.rel (0) target = $region45
    $region44: #{tpu_custom_call.1} parent=1 // pred_region
      %85 = dma.done [#allocation9], 128
    $region45: #{tpu_custom_call.1} parent=1 // pred_fallthru
      _
    %v87 = vld [vmem:[%s0] sm:$0xff]
    %v88 = vld [vmem:[%s0 + $0x8] sm:$0xff]
    %v89 = vld [vmem:[%s0 + $0x10] sm:$0xff]
    %v90 = vld [vmem:[%s0 + $0x18] sm:$0xff]
    %v91 = vld [vmem:[%s0 + $0x20] sm:$0xff]
    %v92 = vld [vmem:[%s0 + $0x28] sm:$0xff]
    %v93 = vld [vmem:[%s0 + $0x30] sm:$0xff]
    %v94 = vld [vmem:[%s0 + $0x38] sm:$0xff]
    %v95 = vld [vmem:[%s0 + $0x40] sm:$0xff]
    %v96 = vld [vmem:[%s0 + $0x48] sm:$0xff]
    %v97 = vld [vmem:[%s0 + $0x50] sm:$0xff]
    %v98 = vld [vmem:[%s0 + $0x58] sm:$0xff]
    %v99 = vld [vmem:[%s0 + $0x60] sm:$0xff]
    %v100 = vld [vmem:[%s0 + $0x68] sm:$0xff]
    %v101 = vld [vmem:[%s0 + $0x70] sm:$0xff]
    %v102 = vld [vmem:[%s0 + $0x78] sm:$0xff]
    %v103 = vld [vmem:[#allocation2] sm:$0xff]
    %v104 = vld [vmem:[#allocation2 + $0x8] sm:$0xff]
    %v105 = vld [vmem:[#allocation2 + $0x10] sm:$0xff]
    %v106 = vld [vmem:[#allocation2 + $0x18] sm:$0xff]
    %v107 = vld [vmem:[#allocation2 + $0x20] sm:$0xff]
    %v108 = vld [vmem:[#allocation2 + $0x28] sm:$0xff]
    %v109 = vld [vmem:[#allocation2 + $0x30] sm:$0xff]
    %v110 = vld [vmem:[#allocation2 + $0x38] sm:$0xff]
    %v111 = vld [vmem:[#allocation2 + $0x40] sm:$0xff]
    %v112 = vld [vmem:[#allocation2 + $0x48] sm:$0xff]
    %v113 = vld [vmem:[#allocation2 + $0x50] sm:$0xff]
    %v114 = vld [vmem:[#allocation2 + $0x58] sm:$0xff]
    %v115 = vld [vmem:[#allocation2 + $0x60] sm:$0xff]
    %v116 = vld [vmem:[#allocation2 + $0x68] sm:$0xff]
    %v117 = vld [vmem:[#allocation2 + $0x70] sm:$0xff]
    %v118 = vld [vmem:[#allocation2 + $0x78] sm:$0xff]
    %v119 = vld [vmem:[#allocation2 + $0x80] sm:$0xff]
    %v120 = vld [vmem:[#allocation2 + $0x88] sm:$0xff]
    %v121 = vld [vmem:[#allocation2 + $0x90] sm:$0xff]
    %v122 = vld [vmem:[#allocation2 + $0x98] sm:$0xff]
    %v123 = vld [vmem:[#allocation2 + $0xa0] sm:$0xff]
    %v124 = vld [vmem:[#allocation2 + $0xa8] sm:$0xff]
    %v125 = vld [vmem:[#allocation2 + $0xb0] sm:$0xff]
    %v126 = vld [vmem:[#allocation2 + $0xb8] sm:$0xff]
    %v127 = vld [vmem:[#allocation2 + $0xc0] sm:$0xff]
    %v128 = vld [vmem:[#allocation2 + $0xc8] sm:$0xff]
    %v129 = vld [vmem:[#allocation2 + $0xd0] sm:$0xff]
    %v130 = vld [vmem:[#allocation2 + $0xd8] sm:$0xff]
    %v131 = vld [vmem:[#allocation2 + $0xe0] sm:$0xff]
    %v132 = vld [vmem:[#allocation2 + $0xe8] sm:$0xff]
    %v133 = vld [vmem:[#allocation2 + $0xf0] sm:$0xff]
    %v134 = vld [vmem:[#allocation2 + $0xf8] sm:$0xff]
    %v135 = vld [vmem:[#allocation2 + $0x100] sm:$0xff]
    %v136 = vld [vmem:[#allocation2 + $0x108] sm:$0xff]
    %v137 = vld [vmem:[#allocation2 + $0x110] sm:$0xff]
    %v138 = vld [vmem:[#allocation2 + $0x118] sm:$0xff]
    %v139 = vld [vmem:[#allocation2 + $0x120] sm:$0xff]
    %v140 = vld [vmem:[#allocation2 + $0x128] sm:$0xff]
    %v141 = vld [vmem:[#allocation2 + $0x130] sm:$0xff]
    %v142 = vld [vmem:[#allocation2 + $0x138] sm:$0xff]
    %v143 = vld [vmem:[#allocation2 + $0x140] sm:$0xff]
    %v144 = vld [vmem:[#allocation2 + $0x148] sm:$0xff]
    %v145 = vld [vmem:[#allocation2 + $0x150] sm:$0xff]
    %v146 = vld [vmem:[#allocation2 + $0x158] sm:$0xff]
    %v147 = vld [vmem:[#allocation2 + $0x160] sm:$0xff]
    %v148 = vld [vmem:[#allocation2 + $0x168] sm:$0xff]
    %v149 = vld [vmem:[#allocation2 + $0x170] sm:$0xff]
    %v150 = vld [vmem:[#allocation2 + $0x178] sm:$0xff]
    %v151 = vld [vmem:[#allocation2 + $0x180] sm:$0xff]
    %v152 = vld [vmem:[#allocation2 + $0x188] sm:$0xff]
    %v153 = vld [vmem:[#allocation2 + $0x190] sm:$0xff]
    %v154 = vld [vmem:[#allocation2 + $0x198] sm:$0xff]
    %v155 = vld [vmem:[#allocation2 + $0x1a0] sm:$0xff]
    %v156 = vld [vmem:[#allocation2 + $0x1a8] sm:$0xff]
    %v157 = vld [vmem:[#allocation2 + $0x1b0] sm:$0xff]
    %v158 = vld [vmem:[#allocation2 + $0x1b8] sm:$0xff]
    %v159 = vld [vmem:[#allocation2 + $0x1c0] sm:$0xff]
    %v160 = vld [vmem:[#allocation2 + $0x1c8] sm:$0xff]
    %v161 = vld [vmem:[#allocation2 + $0x1d0] sm:$0xff]
    %v162 = vld [vmem:[#allocation2 + $0x1d8] sm:$0xff]
    %v163 = vld [vmem:[#allocation2 + $0x1e0] sm:$0xff]
    %v164 = vld [vmem:[#allocation2 + $0x1e8] sm:$0xff]
    %v165 = vld [vmem:[#allocation2 + $0x1f0] sm:$0xff]
    %v166 = vld [vmem:[#allocation2 + $0x1f8] sm:$0xff]
    %v167 = vld [vmem:[#allocation2 + $0x200] sm:$0xff]
    %v168 = vld [vmem:[#allocation2 + $0x208] sm:$0xff]
    %v169 = vld [vmem:[#allocation2 + $0x210] sm:$0xff]
    %v170 = vld [vmem:[#allocation2 + $0x218] sm:$0xff]
    %v171 = vld [vmem:[#allocation2 + $0x220] sm:$0xff]
    %v172 = vld [vmem:[#allocation2 + $0x228] sm:$0xff]
    %v173 = vld [vmem:[#allocation2 + $0x230] sm:$0xff]
    %v174 = vld [vmem:[#allocation2 + $0x238] sm:$0xff]
    %v175 = vld [vmem:[#allocation2 + $0x240] sm:$0xff]
    %v176 = vld [vmem:[#allocation2 + $0x248] sm:$0xff]
    %v177 = vld [vmem:[#allocation2 + $0x250] sm:$0xff]
    %v178 = vld [vmem:[#allocation2 + $0x258] sm:$0xff]
    %v179 = vld [vmem:[#allocation2 + $0x260] sm:$0xff]
    %v180 = vld [vmem:[#allocation2 + $0x268] sm:$0xff]
    %v181 = vld [vmem:[#allocation2 + $0x270] sm:$0xff]
    %v182 = vld [vmem:[#allocation2 + $0x278] sm:$0xff]
    %v183 = vld [vmem:[#allocation2 + $0x280] sm:$0xff]
    %v184 = vld [vmem:[#allocation2 + $0x288] sm:$0xff]
    %v185 = vld [vmem:[#allocation2 + $0x290] sm:$0xff]
    %v186 = vld [vmem:[#allocation2 + $0x298] sm:$0xff]
    %v187 = vld [vmem:[#allocation2 + $0x2a0] sm:$0xff]
    %v188 = vld [vmem:[#allocation2 + $0x2a8] sm:$0xff]
    %v189 = vld [vmem:[#allocation2 + $0x2b0] sm:$0xff]
    %v190 = vld [vmem:[#allocation2 + $0x2b8] sm:$0xff]
    %v191 = vld [vmem:[#allocation2 + $0x2c0] sm:$0xff]
    %v192 = vld [vmem:[#allocation2 + $0x2c8] sm:$0xff]
    %v193 = vld [vmem:[#allocation2 + $0x2d0] sm:$0xff]
    %v194 = vld [vmem:[#allocation2 + $0x2d8] sm:$0xff]
    %v195 = vld [vmem:[#allocation2 + $0x2e0] sm:$0xff]
    %v196 = vld [vmem:[#allocation2 + $0x2e8] sm:$0xff]
    %v197 = vld [vmem:[#allocation2 + $0x2f0] sm:$0xff]
    %v198 = vld [vmem:[#allocation2 + $0x2f8] sm:$0xff]
    %v199 = vld [vmem:[#allocation2 + $0x300] sm:$0xff]
    %v200 = vld [vmem:[#allocation2 + $0x308] sm:$0xff]
    %v201 = vld [vmem:[#allocation2 + $0x310] sm:$0xff]
    %v202 = vld [vmem:[#allocation2 + $0x318] sm:$0xff]
    %v203 = vld [vmem:[#allocation2 + $0x320] sm:$0xff]
    %v204 = vld [vmem:[#allocation2 + $0x328] sm:$0xff]
    %v205 = vld [vmem:[#allocation2 + $0x330] sm:$0xff]
    %v206 = vld [vmem:[#allocation2 + $0x338] sm:$0xff]
    %v207 = vld [vmem:[#allocation2 + $0x340] sm:$0xff]
    %v208 = vld [vmem:[#allocation2 + $0x348] sm:$0xff]
    %v209 = vld [vmem:[#allocation2 + $0x350] sm:$0xff]
    %v210 = vld [vmem:[#allocation2 + $0x358] sm:$0xff]
    %v211 = vld [vmem:[#allocation2 + $0x360] sm:$0xff]
    %v212 = vld [vmem:[#allocation2 + $0x368] sm:$0xff]
    %v213 = vld [vmem:[#allocation2 + $0x370] sm:$0xff]
    %v214 = vld [vmem:[#allocation2 + $0x378] sm:$0xff]
    %v215 = vld [vmem:[#allocation2 + $0x380] sm:$0xff]
    %v216 = vld [vmem:[#allocation2 + $0x388] sm:$0xff]
    %v217 = vld [vmem:[#allocation2 + $0x390] sm:$0xff]
    %v218 = vld [vmem:[#allocation2 + $0x398] sm:$0xff]
    %v219 = vld [vmem:[#allocation2 + $0x3a0] sm:$0xff]
    %v220 = vld [vmem:[#allocation2 + $0x3a8] sm:$0xff]
    %v221 = vld [vmem:[#allocation2 + $0x3b0] sm:$0xff]
    %v222 = vld [vmem:[#allocation2 + $0x3b8] sm:$0xff]
    %v239 = vunpack.c.l.b16 %v87
    %v240 = vunpack.c.h.b16 %v87
    %v241 = vunpack.c.l.b16 %v88
    %v242 = vunpack.c.h.b16 %v88
    %v243 = vunpack.c.l.b16 %v89
    %v244 = vunpack.c.h.b16 %v89
    %v245 = vunpack.c.l.b16 %v90
    %v246 = vunpack.c.h.b16 %v90
    %v247 = vunpack.c.l.b16 %v91
    %v248 = vunpack.c.h.b16 %v91
    %v249 = vunpack.c.l.b16 %v92
    %v250 = vunpack.c.h.b16 %v92
    %v251 = vunpack.c.l.b16 %v93
    %v252 = vunpack.c.h.b16 %v93
    %v253 = vunpack.c.l.b16 %v94
    %v254 = vunpack.c.h.b16 %v94
    %v255 = vunpack.c.l.b16 %v95
    %v256 = vunpack.c.h.b16 %v95
    %v257 = vunpack.c.l.b16 %v96
    %v258 = vunpack.c.h.b16 %v96
    %v259 = vunpack.c.l.b16 %v97
    %v260 = vunpack.c.h.b16 %v97
    %v261 = vunpack.c.l.b16 %v98
    %v262 = vunpack.c.h.b16 %v98
    %v263 = vunpack.c.l.b16 %v99
    %v264 = vunpack.c.h.b16 %v99
    %v265 = vunpack.c.l.b16 %v100
    %v266 = vunpack.c.h.b16 %v100
    %v267 = vunpack.c.l.b16 %v101
    %v268 = vunpack.c.h.b16 %v101
    %v269 = vunpack.c.l.b16 %v102
    %v270 = vunpack.c.h.b16 %v102
    %v271 = vpack.c.b16 %v241, %v239
    %v272 = vpack.c.b16 %v242, %v240
    %v273 = vpack.c.b16 %v245, %v243
    %v274 = vpack.c.b16 %v246, %v244
    %v275 = vpack.c.b16 %v249, %v247
    %v276 = vpack.c.b16 %v250, %v248
    %v277 = vpack.c.b16 %v253, %v251
    %v278 = vpack.c.b16 %v254, %v252
    %v279 = vpack.c.b16 %v257, %v255
    %v280 = vpack.c.b16 %v258, %v256
    %v281 = vpack.c.b16 %v261, %v259
    %v282 = vpack.c.b16 %v262, %v260
    %v283 = vpack.c.b16 %v265, %v263
    %v284 = vpack.c.b16 %v266, %v264
    %v285 = vpack.c.b16 %v269, %v267
    %v286 = vpack.c.b16 %v270, %v268
    %v415 = vunpack.c.l.b16 %v103
    %v416 = vunpack.c.h.b16 %v103
    %v417 = vunpack.c.l.b16 %v104
    %v418 = vunpack.c.h.b16 %v104
    %v419 = vunpack.c.l.b16 %v105
    %v420 = vunpack.c.h.b16 %v105
    %v421 = vunpack.c.l.b16 %v106
    %v422 = vunpack.c.h.b16 %v106
    %v423 = vunpack.c.l.b16 %v107
    %v424 = vunpack.c.h.b16 %v107
    %v425 = vunpack.c.l.b16 %v108
    %v426 = vunpack.c.h.b16 %v108
    %v427 = vunpack.c.l.b16 %v109
    %v428 = vunpack.c.h.b16 %v109
    %v429 = vunpack.c.l.b16 %v110
    %v430 = vunpack.c.h.b16 %v110
    %v431 = vunpack.c.l.b16 %v111
    %v432 = vunpack.c.h.b16 %v111
    %v433 = vunpack.c.l.b16 %v112
    %v434 = vunpack.c.h.b16 %v112
    %v435 = vunpack.c.l.b16 %v113
    %v436 = vunpack.c.h.b16 %v113
    %v437 = vunpack.c.l.b16 %v114
    %v438 = vunpack.c.h.b16 %v114
    %v439 = vunpack.c.l.b16 %v115
    %v440 = vunpack.c.h.b16 %v115
    %v441 = vunpack.c.l.b16 %v116
    %v442 = vunpack.c.h.b16 %v116
    %v443 = vunpack.c.l.b16 %v117
    %v444 = vunpack.c.h.b16 %v117
    %v445 = vunpack.c.l.b16 %v118
    %v446 = vunpack.c.h.b16 %v118
    %v447 = vunpack.c.l.b16 %v119
    %v448 = vunpack.c.h.b16 %v119
    %v449 = vunpack.c.l.b16 %v120
    %v450 = vunpack.c.h.b16 %v120
    %v451 = vunpack.c.l.b16 %v121
    %v452 = vunpack.c.h.b16 %v121
    %v453 = vunpack.c.l.b16 %v122
    %v454 = vunpack.c.h.b16 %v122
    %v455 = vunpack.c.l.b16 %v123
    %v456 = vunpack.c.h.b16 %v123
    %v457 = vunpack.c.l.b16 %v124
    %v458 = vunpack.c.h.b16 %v124
    %v459 = vunpack.c.l.b16 %v125
    %v460 = vunpack.c.h.b16 %v125
    %v461 = vunpack.c.l.b16 %v126
    %v462 = vunpack.c.h.b16 %v126
    %v463 = vunpack.c.l.b16 %v127
    %v464 = vunpack.c.h.b16 %v127
    %v465 = vunpack.c.l.b16 %v128
    %v466 = vunpack.c.h.b16 %v128
    %v467 = vunpack.c.l.b16 %v129
    %v468 = vunpack.c.h.b16 %v129
    %v469 = vunpack.c.l.b16 %v130
    %v470 = vunpack.c.h.b16 %v130
    %v471 = vunpack.c.l.b16 %v131
    %v472 = vunpack.c.h.b16 %v131
    %v473 = vunpack.c.l.b16 %v132
    %v474 = vunpack.c.h.b16 %v132
    %v475 = vunpack.c.l.b16 %v133
    %v476 = vunpack.c.h.b16 %v133
    %v477 = vunpack.c.l.b16 %v134
    %v478 = vunpack.c.h.b16 %v134
    %v479 = vunpack.c.l.b16 %v135
    %v480 = vunpack.c.h.b16 %v135
    %v481 = vunpack.c.l.b16 %v136
    %v482 = vunpack.c.h.b16 %v136
    %v483 = vunpack.c.l.b16 %v137
    %v484 = vunpack.c.h.b16 %v137
    %v485 = vunpack.c.l.b16 %v138
    %v486 = vunpack.c.h.b16 %v138
    %v487 = vunpack.c.l.b16 %v139
    %v488 = vunpack.c.h.b16 %v139
    %v489 = vunpack.c.l.b16 %v140
    %v490 = vunpack.c.h.b16 %v140
    %v491 = vunpack.c.l.b16 %v141
    %v492 = vunpack.c.h.b16 %v141
    %v493 = vunpack.c.l.b16 %v142
    %v494 = vunpack.c.h.b16 %v142
    %v495 = vunpack.c.l.b16 %v143
    %v496 = vunpack.c.h.b16 %v143
    %v497 = vunpack.c.l.b16 %v144
    %v498 = vunpack.c.h.b16 %v144
    %v499 = vunpack.c.l.b16 %v145
    %v500 = vunpack.c.h.b16 %v145
    %v501 = vunpack.c.l.b16 %v146
    %v502 = vunpack.c.h.b16 %v146
    %v503 = vunpack.c.l.b16 %v147
    %v504 = vunpack.c.h.b16 %v147
    %v505 = vunpack.c.l.b16 %v148
    %v506 = vunpack.c.h.b16 %v148
    %v507 = vunpack.c.l.b16 %v149
    %v508 = vunpack.c.h.b16 %v149
    %v509 = vunpack.c.l.b16 %v150
    %v510 = vunpack.c.h.b16 %v150
    %v511 = vunpack.c.l.b16 %v151
    %v512 = vunpack.c.h.b16 %v151
    %v513 = vunpack.c.l.b16 %v152
    %v514 = vunpack.c.h.b16 %v152
    %v515 = vunpack.c.l.b16 %v153
    %v516 = vunpack.c.h.b16 %v153
    %v517 = vunpack.c.l.b16 %v154
    %v518 = vunpack.c.h.b16 %v154
    %v519 = vunpack.c.l.b16 %v155
    %v520 = vunpack.c.h.b16 %v155
    %v521 = vunpack.c.l.b16 %v156
    %v522 = vunpack.c.h.b16 %v156
    %v523 = vunpack.c.l.b16 %v157
    %v524 = vunpack.c.h.b16 %v157
    %v525 = vunpack.c.l.b16 %v158
    %v526 = vunpack.c.h.b16 %v158
    %v527 = vunpack.c.l.b16 %v159
    %v528 = vunpack.c.h.b16 %v159
    %v529 = vunpack.c.l.b16 %v160
    %v530 = vunpack.c.h.b16 %v160
    %v531 = vunpack.c.l.b16 %v161
    %v532 = vunpack.c.h.b16 %v161
    %v533 = vunpack.c.l.b16 %v162
    %v534 = vunpack.c.h.b16 %v162
    %v535 = vunpack.c.l.b16 %v163
    %v536 = vunpack.c.h.b16 %v163
    %v537 = vunpack.c.l.b16 %v164
    %v538 = vunpack.c.h.b16 %v164
    %v539 = vunpack.c.l.b16 %v165
    %v540 = vunpack.c.h.b16 %v165
    %v541 = vunpack.c.l.b16 %v166
    %v542 = vunpack.c.h.b16 %v166
    %v543 = vunpack.c.l.b16 %v167
    %v544 = vunpack.c.h.b16 %v167
    %v545 = vunpack.c.l.b16 %v168
    %v546 = vunpack.c.h.b16 %v168
    %v547 = vunpack.c.l.b16 %v169
    %v548 = vunpack.c.h.b16 %v169
    %v549 = vunpack.c.l.b16 %v170
    %v550 = vunpack.c.h.b16 %v170
    %v551 = vunpack.c.l.b16 %v171
    %v552 = vunpack.c.h.b16 %v171
    %v553 = vunpack.c.l.b16 %v172
    %v554 = vunpack.c.h.b16 %v172
    %v555 = vunpack.c.l.b16 %v173
    %v556 = vunpack.c.h.b16 %v173
    %v557 = vunpack.c.l.b16 %v174
    %v558 = vunpack.c.h.b16 %v174
    %v559 = vunpack.c.l.b16 %v175
    %v560 = vunpack.c.h.b16 %v175
    %v561 = vunpack.c.l.b16 %v176
    %v562 = vunpack.c.h.b16 %v176
    %v563 = vunpack.c.l.b16 %v177
    %v564 = vunpack.c.h.b16 %v177
    %v565 = vunpack.c.l.b16 %v178
    %v566 = vunpack.c.h.b16 %v178
    %v567 = vunpack.c.l.b16 %v179
    %v568 = vunpack.c.h.b16 %v179
    %v569 = vunpack.c.l.b16 %v180
    %v570 = vunpack.c.h.b16 %v180
    %v571 = vunpack.c.l.b16 %v181
    %v572 = vunpack.c.h.b16 %v181
    %v573 = vunpack.c.l.b16 %v182
    %v574 = vunpack.c.h.b16 %v182
    %v575 = vunpack.c.l.b16 %v183
    %v576 = vunpack.c.h.b16 %v183
    %v577 = vunpack.c.l.b16 %v184
    %v578 = vunpack.c.h.b16 %v184
    %v579 = vunpack.c.l.b16 %v185
    %v580 = vunpack.c.h.b16 %v185
    %v581 = vunpack.c.l.b16 %v186
    %v582 = vunpack.c.h.b16 %v186
    %v583 = vunpack.c.l.b16 %v187
    %v584 = vunpack.c.h.b16 %v187
    %v585 = vunpack.c.l.b16 %v188
    %v586 = vunpack.c.h.b16 %v188
    %v587 = vunpack.c.l.b16 %v189
    %v588 = vunpack.c.h.b16 %v189
    %v589 = vunpack.c.l.b16 %v190
    %v590 = vunpack.c.h.b16 %v190
    %v591 = vunpack.c.l.b16 %v191
    %v592 = vunpack.c.h.b16 %v191
    %v593 = vunpack.c.l.b16 %v192
    %v594 = vunpack.c.h.b16 %v192
    %v595 = vunpack.c.l.b16 %v193
    %v596 = vunpack.c.h.b16 %v193
    %v597 = vunpack.c.l.b16 %v194
    %v598 = vunpack.c.h.b16 %v194
    %v599 = vunpack.c.l.b16 %v195
    %v600 = vunpack.c.h.b16 %v195
    %v601 = vunpack.c.l.b16 %v196
    %v602 = vunpack.c.h.b16 %v196
    %v603 = vunpack.c.l.b16 %v197
    %v604 = vunpack.c.h.b16 %v197
    %v605 = vunpack.c.l.b16 %v198
    %v606 = vunpack.c.h.b16 %v198
    %v607 = vunpack.c.l.b16 %v199
    %v608 = vunpack.c.h.b16 %v199
    %v609 = vunpack.c.l.b16 %v200
    %v610 = vunpack.c.h.b16 %v200
    %v611 = vunpack.c.l.b16 %v201
    %v612 = vunpack.c.h.b16 %v201
    %v613 = vunpack.c.l.b16 %v202
    %v614 = vunpack.c.h.b16 %v202
    %v615 = vunpack.c.l.b16 %v203
    %v616 = vunpack.c.h.b16 %v203
    %v617 = vunpack.c.l.b16 %v204
    %v618 = vunpack.c.h.b16 %v204
    %v619 = vunpack.c.l.b16 %v205
    %v620 = vunpack.c.h.b16 %v205
    %v621 = vunpack.c.l.b16 %v206
    %v622 = vunpack.c.h.b16 %v206
    %v623 = vunpack.c.l.b16 %v207
    %v624 = vunpack.c.h.b16 %v207
    %v625 = vunpack.c.l.b16 %v208
    %v626 = vunpack.c.h.b16 %v208
    %v627 = vunpack.c.l.b16 %v209
    %v628 = vunpack.c.h.b16 %v209
    %v629 = vunpack.c.l.b16 %v210
    %v630 = vunpack.c.h.b16 %v210
    %v631 = vunpack.c.l.b16 %v211
    %v632 = vunpack.c.h.b16 %v211
    %v633 = vunpack.c.l.b16 %v212
    %v634 = vunpack.c.h.b16 %v212
    %v635 = vunpack.c.l.b16 %v213
    %v636 = vunpack.c.h.b16 %v213
    %v637 = vunpack.c.l.b16 %v214
    %v638 = vunpack.c.h.b16 %v214
    %v639 = vunpack.c.l.b16 %v215
    %v640 = vunpack.c.h.b16 %v215
    %v641 = vunpack.c.l.b16 %v216
    %v642 = vunpack.c.h.b16 %v216
    %v643 = vunpack.c.l.b16 %v217
    %v644 = vunpack.c.h.b16 %v217
    %v645 = vunpack.c.l.b16 %v218
    %v646 = vunpack.c.h.b16 %v218
    %v647 = vunpack.c.l.b16 %v219
    %v648 = vunpack.c.h.b16 %v219
    %v649 = vunpack.c.l.b16 %v220
    %v650 = vunpack.c.h.b16 %v220
    %v651 = vunpack.c.l.b16 %v221
    %v652 = vunpack.c.h.b16 %v221
    %v653 = vunpack.c.l.b16 %v222
    %v654 = vunpack.c.h.b16 %v222
    %v655 = vpack.c.b16 %v425, %v415
    %v656 = vpack.c.b16 %v426, %v416
    %v657 = vpack.c.b16 %v427, %v417
    %v658 = vpack.c.b16 %v428, %v418
    %v659 = vpack.c.b16 %v429, %v419
    %v660 = vpack.c.b16 %v430, %v420
    %v661 = vpack.c.b16 %v431, %v421
    %v662 = vpack.c.b16 %v432, %v422
    %v663 = vpack.c.b16 %v433, %v423
    %v664 = vpack.c.b16 %v434, %v424
    %v665 = vpack.c.b16 %v445, %v435
    %v666 = vpack.c.b16 %v446, %v436
    %v667 = vpack.c.b16 %v447, %v437
    %v668 = vpack.c.b16 %v448, %v438
    %v669 = vpack.c.b16 %v449, %v439
    %v670 = vpack.c.b16 %v450, %v440
    %v671 = vpack.c.b16 %v451, %v441
    %v672 = vpack.c.b16 %v452, %v442
    %v673 = vpack.c.b16 %v453, %v443
    %v674 = vpack.c.b16 %v454, %v444
    %v675 = vpack.c.b16 %v465, %v455
    %v676 = vpack.c.b16 %v466, %v456
    %v677 = vpack.c.b16 %v467, %v457
    %v678 = vpack.c.b16 %v468, %v458
    %v679 = vpack.c.b16 %v469, %v459
    %v680 = vpack.c.b16 %v470, %v460
    %v681 = vpack.c.b16 %v471, %v461
    %v682 = vpack.c.b16 %v472, %v462
    %v683 = vpack.c.b16 %v473, %v463
    %v684 = vpack.c.b16 %v474, %v464
    %v685 = vpack.c.b16 %v485, %v475
    %v686 = vpack.c.b16 %v486, %v476
    %v687 = vpack.c.b16 %v487, %v477
    %v688 = vpack.c.b16 %v488, %v478
    %v689 = vpack.c.b16 %v489, %v479
    %v690 = vpack.c.b16 %v490, %v480
    %v691 = vpack.c.b16 %v491, %v481
    %v692 = vpack.c.b16 %v492, %v482
    %v693 = vpack.c.b16 %v493, %v483
    %v694 = vpack.c.b16 %v494, %v484
    %v695 = vpack.c.b16 %v505, %v495
    %v696 = vpack.c.b16 %v506, %v496
    %v697 = vpack.c.b16 %v507, %v497
    %v698 = vpack.c.b16 %v508, %v498
    %v699 = vpack.c.b16 %v509, %v499
    %v700 = vpack.c.b16 %v510, %v500
    %v701 = vpack.c.b16 %v511, %v501
    %v702 = vpack.c.b16 %v512, %v502
    %v703 = vpack.c.b16 %v513, %v503
    %v704 = vpack.c.b16 %v514, %v504
    %v705 = vpack.c.b16 %v525, %v515
    %v706 = vpack.c.b16 %v526, %v516
    %v707 = vpack.c.b16 %v527, %v517
    %v708 = vpack.c.b16 %v528, %v518
    %v709 = vpack.c.b16 %v529, %v519
    %v710 = vpack.c.b16 %v530, %v520
    %v711 = vpack.c.b16 %v531, %v521
    %v712 = vpack.c.b16 %v532, %v522
    %v713 = vpack.c.b16 %v533, %v523
    %v714 = vpack.c.b16 %v534, %v524
    %v715 = vpack.c.b16 %v545, %v535
    %v716 = vpack.c.b16 %v546, %v536
    %v717 = vpack.c.b16 %v547, %v537
    %v718 = vpack.c.b16 %v548, %v538
    %v719 = vpack.c.b16 %v549, %v539
    %v720 = vpack.c.b16 %v550, %v540
    %v721 = vpack.c.b16 %v551, %v541
    %v722 = vpack.c.b16 %v552, %v542
    %v723 = vpack.c.b16 %v553, %v543
    %v724 = vpack.c.b16 %v554, %v544
    %v725 = vpack.c.b16 %v565, %v555
    %v726 = vpack.c.b16 %v566, %v556
    %v727 = vpack.c.b16 %v567, %v557
    %v728 = vpack.c.b16 %v568, %v558
    %v729 = vpack.c.b16 %v569, %v559
    %v730 = vpack.c.b16 %v570, %v560
    %v731 = vpack.c.b16 %v571, %v561
    %v732 = vpack.c.b16 %v572, %v562
    %v733 = vpack.c.b16 %v573, %v563
    %v734 = vpack.c.b16 %v574, %v564
    %v735 = vpack.c.b16 %v585, %v575
    %v736 = vpack.c.b16 %v586, %v576
    %v737 = vpack.c.b16 %v587, %v577
    %v738 = vpack.c.b16 %v588, %v578
    %v739 = vpack.c.b16 %v589, %v579
    %v740 = vpack.c.b16 %v590, %v580
    %v741 = vpack.c.b16 %v591, %v581
    %v742 = vpack.c.b16 %v592, %v582
    %v743 = vpack.c.b16 %v593, %v583
    %v744 = vpack.c.b16 %v594, %v584
    %v745 = vpack.c.b16 %v605, %v595
    %v746 = vpack.c.b16 %v606, %v596
    %v747 = vpack.c.b16 %v607, %v597
    %v748 = vpack.c.b16 %v608, %v598
    %v749 = vpack.c.b16 %v609, %v599
    %v750 = vpack.c.b16 %v610, %v600
    %v751 = vpack.c.b16 %v611, %v601
    %v752 = vpack.c.b16 %v612, %v602
    %v753 = vpack.c.b16 %v613, %v603
    %v754 = vpack.c.b16 %v614, %v604
    %v755 = vpack.c.b16 %v625, %v615
    %v756 = vpack.c.b16 %v626, %v616
    %v757 = vpack.c.b16 %v627, %v617
    %v758 = vpack.c.b16 %v628, %v618
    %v759 = vpack.c.b16 %v629, %v619
    %v760 = vpack.c.b16 %v630, %v620
    %v761 = vpack.c.b16 %v631, %v621
    %v762 = vpack.c.b16 %v632, %v622
    %v763 = vpack.c.b16 %v633, %v623
    %v764 = vpack.c.b16 %v634, %v624
    %v765 = vpack.c.b16 %v645, %v635
    %v766 = vpack.c.b16 %v646, %v636
    %v767 = vpack.c.b16 %v647, %v637
    %v768 = vpack.c.b16 %v648, %v638
    %v769 = vpack.c.b16 %v649, %v639
    %v770 = vpack.c.b16 %v650, %v640
    %v771 = vpack.c.b16 %v651, %v641
    %v772 = vpack.c.b16 %v652, %v642
    %v773 = vpack.c.b16 %v653, %v643
    %v774 = vpack.c.b16 %v654, %v644
    %vm895 = vcmask 523264
    %v897 = vsel %vm895, %v272, 0
    %v900 = vsel %vm895, %v274, 0
    %v903 = vsel %vm895, %v276, 0
    %v906 = vsel %vm895, %v278, 0
    %v909 = vsel %vm895, %v280, 0
    %v912 = vsel %vm895, %v282, 0
    %v915 = vsel %vm895, %v284, 0
    %v918 = vsel %vm895, %v286, 0
    %920 = vmatprep.subr.bf16.mxu0 %v726
    %921 = vmatpush1.bf16.msra.mxu0 %v725
    %922 = vmatprep.subr.bf16.mxu0 %v716
    %923 = vmatpush1.bf16.msra.mxu0 %v715
    %924 = vmatprep.subr.bf16.mxu0 %v706
    %925 = vmatpush1.bf16.msra.mxu0 %v705
    %926 = vmatprep.subr.bf16.mxu0 %v696
    %927 = vmatpush1.bf16.msra.mxu0 %v695
    %928 = vmatprep.subr.bf16.mxu0 %v686
    %929 = vmatpush1.bf16.msra.mxu0 %v685
    %930 = vmatprep.subr.bf16.mxu0 %v676
    %931 = vmatpush1.bf16.msra.mxu0 %v675
    %932 = vmatprep.subr.bf16.mxu0 %v666
    %933 = vmatpush1.bf16.msra.mxu0 %v665
    %934 = vmatprep.subr.bf16.mxu0 %v656
    %935 = vmatpush1.bf16.msra.mxu0 %v655
    %936 = vmatprep.subr.bf16.mxu0 0
    %937 = vmatpush2.bf16.msra.mxu0 0
    %938 = vmatprep.subr.bf16.mxu0 0
    %939 = vmatpush2.bf16.msra.mxu0 0
    %940 = vmatprep.subr.bf16.mxu0 0
    %941 = vmatpush2.bf16.msra.mxu0 0
    %942 = vmatprep.subr.bf16.mxu0 0
    %943 = vmatpush2.bf16.msra.mxu0 0
    %944 = vmatprep.subr.bf16.mxu0 %v766
    %945 = vmatpush2.bf16.msra.mxu0 %v765
    %946 = vmatprep.subr.bf16.mxu0 %v756
    %947 = vmatpush2.bf16.msra.mxu0 %v755
    %948 = vmatprep.subr.bf16.mxu0 %v746
    %949 = vmatpush2.bf16.msra.mxu0 %v745
    %950 = vmatprep.subr.bf16.mxu0 %v736
    %951 = vmatpush2.bf16.msra.mxu0 %v735
    %952 = vmatprep.mubr.bf16.mxu0 %v897
    %953 = vmatmul.mubr.bf16.gmra.mxu0 %v271
    %v954 = vpop.f32.mrf.mxu0
    %v955 = vadd.f32 0.0, %v954
    %v956 = vpop.f32.mrf.mxu0
    %v957 = vadd.f32 0.0, %v956
    %v958 = vpop.f32.mrf.mxu0
    %v959 = vadd.f32 0.0, %v958
    %v960 = vpop.f32.mrf.mxu0
    %v961 = vadd.f32 0.0, %v960
    %962 = vmatprep.mubr.bf16.mxu0 %v900
    %963 = vmatmul.mubr.bf16.gmra.mxu0 %v273
    %v964 = vpop.f32.mrf.mxu0
    %v965 = vadd.f32 0.0, %v964
    %v966 = vpop.f32.mrf.mxu0
    %v967 = vadd.f32 0.0, %v966
    %v968 = vpop.f32.mrf.mxu0
    %v969 = vadd.f32 0.0, %v968
    %v970 = vpop.f32.mrf.mxu0
    %v971 = vadd.f32 0.0, %v970
    %972 = vmatprep.mubr.bf16.mxu0 %v903
    %973 = vmatmul.mubr.bf16.gmra.mxu0 %v275
    %v974 = vpop.f32.mrf.mxu0
    %v975 = vadd.f32 0.0, %v974
    %v976 = vpop.f32.mrf.mxu0
    %v977 = vadd.f32 0.0, %v976
    %v978 = vpop.f32.mrf.mxu0
    %v979 = vadd.f32 0.0, %v978
    %v980 = vpop.f32.mrf.mxu0
    %v981 = vadd.f32 0.0, %v980
    %982 = vmatprep.mubr.bf16.mxu0 %v906
    %983 = vmatmul.mubr.bf16.gmra.mxu0 %v277
    %v984 = vpop.f32.mrf.mxu0
    %v985 = vadd.f32 0.0, %v984
    %v986 = vpop.f32.mrf.mxu0
    %v987 = vadd.f32 0.0, %v986
    %v988 = vpop.f32.mrf.mxu0
    %v989 = vadd.f32 0.0, %v988
    %v990 = vpop.f32.mrf.mxu0
    %v991 = vadd.f32 0.0, %v990
    %992 = vmatprep.mubr.bf16.mxu0 %v909
    %993 = vmatmul.mubr.bf16.gmra.mxu0 %v279
    %v994 = vpop.f32.mrf.mxu0
    %v995 = vadd.f32 0.0, %v994
    %v996 = vpop.f32.mrf.mxu0
    %v997 = vadd.f32 0.0, %v996
    %v998 = vpop.f32.mrf.mxu0
    %v999 = vadd.f32 0.0, %v998
    %v1000 = vpop.f32.mrf.mxu0
    %v1001 = vadd.f32 0.0, %v1000
    %1002 = vmatprep.mubr.bf16.mxu0 %v912
    %1003 = vmatmul.mubr.bf16.gmra.mxu0 %v281
    %v1004 = vpop.f32.mrf.mxu0
    %v1005 = vadd.f32 0.0, %v1004
    %v1006 = vpop.f32.mrf.mxu0
    %v1007 = vadd.f32 0.0, %v1006
    %v1008 = vpop.f32.mrf.mxu0
    %v1009 = vadd.f32 0.0, %v1008
    %v1010 = vpop.f32.mrf.mxu0
    %v1011 = vadd.f32 0.0, %v1010
    %1012 = vmatprep.mubr.bf16.mxu0 %v915
    %1013 = vmatmul.mubr.bf16.gmra.mxu0 %v283
    %v1014 = vpop.f32.mrf.mxu0
    %v1015 = vadd.f32 0.0, %v1014
    %v1016 = vpop.f32.mrf.mxu0
    %v1017 = vadd.f32 0.0, %v1016
    %v1018 = vpop.f32.mrf.mxu0
    %v1019 = vadd.f32 0.0, %v1018
    %v1020 = vpop.f32.mrf.mxu0
    %v1021 = vadd.f32 0.0, %v1020
    %1022 = vmatprep.mubr.bf16.mxu0 %v918
    %1023 = vmatmul.mubr.bf16.gmra.mxu0 %v285
    %v1024 = vpop.f32.mrf.mxu0
    %v1025 = vadd.f32 0.0, %v1024
    %v1026 = vpop.f32.mrf.mxu0
    %v1027 = vadd.f32 0.0, %v1026
    %v1028 = vpop.f32.mrf.mxu0
    %v1029 = vadd.f32 0.0, %v1028
    %v1030 = vpop.f32.mrf.mxu0
    %v1031 = vadd.f32 0.0, %v1030
    %1032 = vdwg.mxu0
    %1033 = vmatprep.subr.bf16.mxu0 %v728
    %1034 = vmatpush1.bf16.msra.mxu0 %v727
    %1035 = vmatprep.subr.bf16.mxu0 %v718
    %1036 = vmatpush1.bf16.msra.mxu0 %v717
    %1037 = vmatprep.subr.bf16.mxu0 %v708
    %1038 = vmatpush1.bf16.msra.mxu0 %v707
    %1039 = vmatprep.subr.bf16.mxu0 %v698
    %1040 = vmatpush1.bf16.msra.mxu0 %v697
    %1041 = vmatprep.subr.bf16.mxu0 %v688
    %1042 = vmatpush1.bf16.msra.mxu0 %v687
    %1043 = vmatprep.subr.bf16.mxu0 %v678
    %1044 = vmatpush1.bf16.msra.mxu0 %v677
    %1045 = vmatprep.subr.bf16.mxu0 %v668
    %1046 = vmatpush1.bf16.msra.mxu0 %v667
    %1047 = vmatprep.subr.bf16.mxu0 %v658
    %1048 = vmatpush1.bf16.msra.mxu0 %v657
    %1049 = vmatprep.subr.bf16.mxu0 0
    %1050 = vmatpush2.bf16.msra.mxu0 0
    %1051 = vmatprep.subr.bf16.mxu0 0
    %1052 = vmatpush2.bf16.msra.mxu0 0
    %1053 = vmatprep.subr.bf16.mxu0 0
    %1054 = vmatpush2.bf16.msra.mxu0 0
    %1055 = vmatprep.subr.bf16.mxu0 0
    %1056 = vmatpush2.bf16.msra.mxu0 0
    %1057 = vmatprep.subr.bf16.mxu0 %v768
    %1058 = vmatpush2.bf16.msra.mxu0 %v767
    %1059 = vmatprep.subr.bf16.mxu0 %v758
    %1060 = vmatpush2.bf16.msra.mxu0 %v757
    %1061 = vmatprep.subr.bf16.mxu0 %v748
    %1062 = vmatpush2.bf16.msra.mxu0 %v747
    %1063 = vmatprep.subr.bf16.mxu0 %v738
    %1064 = vmatpush2.bf16.msra.mxu0 %v737
    %1065 = vmatprep.mubr.bf16.mxu0 %v897
    %1066 = vmatmul.mubr.bf16.gmra.mxu0 %v271
    %v1067 = vpop.f32.mrf.mxu0
    %v1068 = vadd.f32 0.0, %v1067
    %v1069 = vpop.f32.mrf.mxu0
    %v1070 = vadd.f32 0.0, %v1069
    %v1071 = vpop.f32.mrf.mxu0
    %v1072 = vadd.f32 0.0, %v1071
    %v1073 = vpop.f32.mrf.mxu0
    %v1074 = vadd.f32 0.0, %v1073
    %1075 = vmatprep.mubr.bf16.mxu0 %v900
    %1076 = vmatmul.mubr.bf16.gmra.mxu0 %v273
    %v1077 = vpop.f32.mrf.mxu0
    %v1078 = vadd.f32 0.0, %v1077
    %v1079 = vpop.f32.mrf.mxu0
    %v1080 = vadd.f32 0.0, %v1079
    %v1081 = vpop.f32.mrf.mxu0
    %v1082 = vadd.f32 0.0, %v1081
    %v1083 = vpop.f32.mrf.mxu0
    %v1084 = vadd.f32 0.0, %v1083
    %1085 = vmatprep.mubr.bf16.mxu0 %v903
    %1086 = vmatmul.mubr.bf16.gmra.mxu0 %v275
    %v1087 = vpop.f32.mrf.mxu0
    %v1088 = vadd.f32 0.0, %v1087
    %v1089 = vpop.f32.mrf.mxu0
    %v1090 = vadd.f32 0.0, %v1089
    %v1091 = vpop.f32.mrf.mxu0
    %v1092 = vadd.f32 0.0, %v1091
    %v1093 = vpop.f32.mrf.mxu0
    %v1094 = vadd.f32 0.0, %v1093
    %1095 = vmatprep.mubr.bf16.mxu0 %v906
    %1096 = vmatmul.mubr.bf16.gmra.mxu0 %v277
    %v1097 = vpop.f32.mrf.mxu0
    %v1098 = vadd.f32 0.0, %v1097
    %v1099 = vpop.f32.mrf.mxu0
    %v1100 = vadd.f32 0.0, %v1099
    %v1101 = vpop.f32.mrf.mxu0
    %v1102 = vadd.f32 0.0, %v1101
    %v1103 = vpop.f32.mrf.mxu0
    %v1104 = vadd.f32 0.0, %v1103
    %1105 = vmatprep.mubr.bf16.mxu0 %v909
    %1106 = vmatmul.mubr.bf16.gmra.mxu0 %v279
    %v1107 = vpop.f32.mrf.mxu0
    %v1108 = vadd.f32 0.0, %v1107
    %v1109 = vpop.f32.mrf.mxu0
    %v1110 = vadd.f32 0.0, %v1109
    %v1111 = vpop.f32.mrf.mxu0
    %v1112 = vadd.f32 0.0, %v1111
    %v1113 = vpop.f32.mrf.mxu0
    %v1114 = vadd.f32 0.0, %v1113
    %1115 = vmatprep.mubr.bf16.mxu0 %v912
    %1116 = vmatmul.mubr.bf16.gmra.mxu0 %v281
    %v1117 = vpop.f32.mrf.mxu0
    %v1118 = vadd.f32 0.0, %v1117
    %v1119 = vpop.f32.mrf.mxu0
    %v1120 = vadd.f32 0.0, %v1119
    %v1121 = vpop.f32.mrf.mxu0
    %v1122 = vadd.f32 0.0, %v1121
    %v1123 = vpop.f32.mrf.mxu0
    %v1124 = vadd.f32 0.0, %v1123
    %1125 = vmatprep.mubr.bf16.mxu0 %v915
    %1126 = vmatmul.mubr.bf16.gmra.mxu0 %v283
    %v1127 = vpop.f32.mrf.mxu0
    %v1128 = vadd.f32 0.0, %v1127
    %v1129 = vpop.f32.mrf.mxu0
    %v1130 = vadd.f32 0.0, %v1129
    %v1131 = vpop.f32.mrf.mxu0
    %v1132 = vadd.f32 0.0, %v1131
    %v1133 = vpop.f32.mrf.mxu0
    %v1134 = vadd.f32 0.0, %v1133
    %1135 = vmatprep.mubr.bf16.mxu0 %v918
    %1136 = vmatmul.mubr.bf16.gmra.mxu0 %v285
    %v1137 = vpop.f32.mrf.mxu0
    %v1138 = vadd.f32 0.0, %v1137
    %v1139 = vpop.f32.mrf.mxu0
    %v1140 = vadd.f32 0.0, %v1139
    %v1141 = vpop.f32.mrf.mxu0
    %v1142 = vadd.f32 0.0, %v1141
    %v1143 = vpop.f32.mrf.mxu0
    %v1144 = vadd.f32 0.0, %v1143
    %1145 = vdwg.mxu0
    %1146 = vmatprep.subr.bf16.mxu0 %v730
    %1147 = vmatpush1.bf16.msra.mxu0 %v729
    %1148 = vmatprep.subr.bf16.mxu0 %v720
    %1149 = vmatpush1.bf16.msra.mxu0 %v719
    %1150 = vmatprep.subr.bf16.mxu0 %v710
    %1151 = vmatpush1.bf16.msra.mxu0 %v709
    %1152 = vmatprep.subr.bf16.mxu0 %v700
    %1153 = vmatpush1.bf16.msra.mxu0 %v699
    %1154 = vmatprep.subr.bf16.mxu0 %v690
    %1155 = vmatpush1.bf16.msra.mxu0 %v689
    %1156 = vmatprep.subr.bf16.mxu0 %v680
    %1157 = vmatpush1.bf16.msra.mxu0 %v679
    %1158 = vmatprep.subr.bf16.mxu0 %v670
    %1159 = vmatpush1.bf16.msra.mxu0 %v669
    %1160 = vmatprep.subr.bf16.mxu0 %v660
    %1161 = vmatpush1.bf16.msra.mxu0 %v659
    %1162 = vmatprep.subr.bf16.mxu0 0
    %1163 = vmatpush2.bf16.msra.mxu0 0
    %1164 = vmatprep.subr.bf16.mxu0 0
    %1165 = vmatpush2.bf16.msra.mxu0 0
    %1166 = vmatprep.subr.bf16.mxu0 0
    %1167 = vmatpush2.bf16.msra.mxu0 0
    %1168 = vmatprep.subr.bf16.mxu0 0
    %1169 = vmatpush2.bf16.msra.mxu0 0
    %1170 = vmatprep.subr.bf16.mxu0 %v770
    %1171 = vmatpush2.bf16.msra.mxu0 %v769
    %1172 = vmatprep.subr.bf16.mxu0 %v760
    %1173 = vmatpush2.bf16.msra.mxu0 %v759
    %1174 = vmatprep.subr.bf16.mxu0 %v750
    %1175 = vmatpush2.bf16.msra.mxu0 %v749
    %1176 = vmatprep.subr.bf16.mxu0 %v740
    %1177 = vmatpush2.bf16.msra.mxu0 %v739
    %1178 = vmatprep.mubr.bf16.mxu0 %v897
    %1179 = vmatmul.mubr.bf16.gmra.mxu0 %v271
    %v1180 = vpop.f32.mrf.mxu0
    %v1181 = vadd.f32 0.0, %v1180
    %v1182 = vpop.f32.mrf.mxu0
    %v1183 = vadd.f32 0.0, %v1182
    %v1184 = vpop.f32.mrf.mxu0
    %v1185 = vadd.f32 0.0, %v1184
    %v1186 = vpop.f32.mrf.mxu0
    %v1187 = vadd.f32 0.0, %v1186
    %1188 = vmatprep.mubr.bf16.mxu0 %v900
    %1189 = vmatmul.mubr.bf16.gmra.mxu0 %v273
    %v1190 = vpop.f32.mrf.mxu0
    %v1191 = vadd.f32 0.0, %v1190
    %v1192 = vpop.f32.mrf.mxu0
    %v1193 = vadd.f32 0.0, %v1192
    %v1194 = vpop.f32.mrf.mxu0
    %v1195 = vadd.f32 0.0, %v1194
    %v1196 = vpop.f32.mrf.mxu0
    %v1197 = vadd.f32 0.0, %v1196
    %1198 = vmatprep.mubr.bf16.mxu0 %v903
    %1199 = vmatmul.mubr.bf16.gmra.mxu0 %v275
    %v1200 = vpop.f32.mrf.mxu0
    %v1201 = vadd.f32 0.0, %v1200
    %v1202 = vpop.f32.mrf.mxu0
    %v1203 = vadd.f32 0.0, %v1202
    %v1204 = vpop.f32.mrf.mxu0
    %v1205 = vadd.f32 0.0, %v1204
    %v1206 = vpop.f32.mrf.mxu0
    %v1207 = vadd.f32 0.0, %v1206
    %1208 = vmatprep.mubr.bf16.mxu0 %v906
    %1209 = vmatmul.mubr.bf16.gmra.mxu0 %v277
    %v1210 = vpop.f32.mrf.mxu0
    %v1211 = vadd.f32 0.0, %v1210
    %v1212 = vpop.f32.mrf.mxu0
    %v1213 = vadd.f32 0.0, %v1212
    %v1214 = vpop.f32.mrf.mxu0
    %v1215 = vadd.f32 0.0, %v1214
    %v1216 = vpop.f32.mrf.mxu0
    %v1217 = vadd.f32 0.0, %v1216
    %1218 = vmatprep.mubr.bf16.mxu0 %v909
    %1219 = vmatmul.mubr.bf16.gmra.mxu0 %v279
    %v1220 = vpop.f32.mrf.mxu0
    %v1221 = vadd.f32 0.0, %v1220
    %v1222 = vpop.f32.mrf.mxu0
    %v1223 = vadd.f32 0.0, %v1222
    %v1224 = vpop.f32.mrf.mxu0
    %v1225 = vadd.f32 0.0, %v1224
    %v1226 = vpop.f32.mrf.mxu0
    %v1227 = vadd.f32 0.0, %v1226
    %1228 = vmatprep.mubr.bf16.mxu0 %v912
    %1229 = vmatmul.mubr.bf16.gmra.mxu0 %v281
    %v1230 = vpop.f32.mrf.mxu0
    %v1231 = vadd.f32 0.0, %v1230
    %v1232 = vpop.f32.mrf.mxu0
    %v1233 = vadd.f32 0.0, %v1232
    %v1234 = vpop.f32.mrf.mxu0
    %v1235 = vadd.f32 0.0, %v1234
    %v1236 = vpop.f32.mrf.mxu0
    %v1237 = vadd.f32 0.0, %v1236
    %1238 = vmatprep.mubr.bf16.mxu0 %v915
    %1239 = vmatmul.mubr.bf16.gmra.mxu0 %v283
    %v1240 = vpop.f32.mrf.mxu0
    %v1241 = vadd.f32 0.0, %v1240
    %v1242 = vpop.f32.mrf.mxu0
    %v1243 = vadd.f32 0.0, %v1242
    %v1244 = vpop.f32.mrf.mxu0
    %v1245 = vadd.f32 0.0, %v1244
    %v1246 = vpop.f32.mrf.mxu0
    %v1247 = vadd.f32 0.0, %v1246
    %1248 = vmatprep.mubr.bf16.mxu0 %v918
    %1249 = vmatmul.mubr.bf16.gmra.mxu0 %v285
    %v1250 = vpop.f32.mrf.mxu0
    %v1251 = vadd.f32 0.0, %v1250
    %v1252 = vpop.f32.mrf.mxu0
    %v1253 = vadd.f32 0.0, %v1252
    %v1254 = vpop.f32.mrf.mxu0
    %v1255 = vadd.f32 0.0, %v1254
    %v1256 = vpop.f32.mrf.mxu0
    %v1257 = vadd.f32 0.0, %v1256
    %1258 = vdwg.mxu0
    %1259 = vmatprep.subr.bf16.mxu0 %v732
    %1260 = vmatpush1.bf16.msra.mxu0 %v731
    %1261 = vmatprep.subr.bf16.mxu0 %v722
    %1262 = vmatpush1.bf16.msra.mxu0 %v721
    %1263 = vmatprep.subr.bf16.mxu0 %v712
    %1264 = vmatpush1.bf16.msra.mxu0 %v711
    %1265 = vmatprep.subr.bf16.mxu0 %v702
    %1266 = vmatpush1.bf16.msra.mxu0 %v701
    %1267 = vmatprep.subr.bf16.mxu0 %v692
    %1268 = vmatpush1.bf16.msra.mxu0 %v691
    %1269 = vmatprep.subr.bf16.mxu0 %v682
    %1270 = vmatpush1.bf16.msra.mxu0 %v681
    %1271 = vmatprep.subr.bf16.mxu0 %v672
    %1272 = vmatpush1.bf16.msra.mxu0 %v671
    %1273 = vmatprep.subr.bf16.mxu0 %v662
    %1274 = vmatpush1.bf16.msra.mxu0 %v661
    %1275 = vmatprep.subr.bf16.mxu0 0
    %1276 = vmatpush2.bf16.msra.mxu0 0
    %1277 = vmatprep.subr.bf16.mxu0 0
    %1278 = vmatpush2.bf16.msra.mxu0 0
    %1279 = vmatprep.subr.bf16.mxu0 0
    %1280 = vmatpush2.bf16.msra.mxu0 0
    %1281 = vmatprep.subr.bf16.mxu0 0
    %1282 = vmatpush2.bf16.msra.mxu0 0
    %1283 = vmatprep.subr.bf16.mxu0 %v772
    %1284 = vmatpush2.bf16.msra.mxu0 %v771
    %1285 = vmatprep.subr.bf16.mxu0 %v762
    %1286 = vmatpush2.bf16.msra.mxu0 %v761
    %1287 = vmatprep.subr.bf16.mxu0 %v752
    %1288 = vmatpush2.bf16.msra.mxu0 %v751
    %1289 = vmatprep.subr.bf16.mxu0 %v742
    %1290 = vmatpush2.bf16.msra.mxu0 %v741
    %1291 = vmatprep.mubr.bf16.mxu0 %v897
    %1292 = vmatmul.mubr.bf16.gmra.mxu0 %v271
    %v1293 = vpop.f32.mrf.mxu0
    %v1294 = vadd.f32 0.0, %v1293
    %v1295 = vpop.f32.mrf.mxu0
    %v1296 = vadd.f32 0.0, %v1295
    %v1297 = vpop.f32.mrf.mxu0
    %v1298 = vadd.f32 0.0, %v1297
    %v1299 = vpop.f32.mrf.mxu0
    %v1300 = vadd.f32 0.0, %v1299
    %1301 = vmatprep.mubr.bf16.mxu0 %v900
    %1302 = vmatmul.mubr.bf16.gmra.mxu0 %v273
    %v1303 = vpop.f32.mrf.mxu0
    %v1304 = vadd.f32 0.0, %v1303
    %v1305 = vpop.f32.mrf.mxu0
    %v1306 = vadd.f32 0.0, %v1305
    %v1307 = vpop.f32.mrf.mxu0
    %v1308 = vadd.f32 0.0, %v1307
    %v1309 = vpop.f32.mrf.mxu0
    %v1310 = vadd.f32 0.0, %v1309
    %1311 = vmatprep.mubr.bf16.mxu0 %v903
    %1312 = vmatmul.mubr.bf16.gmra.mxu0 %v275
    %v1313 = vpop.f32.mrf.mxu0
    %v1314 = vadd.f32 0.0, %v1313
    %v1315 = vpop.f32.mrf.mxu0
    %v1316 = vadd.f32 0.0, %v1315
    %v1317 = vpop.f32.mrf.mxu0
    %v1318 = vadd.f32 0.0, %v1317
    %v1319 = vpop.f32.mrf.mxu0
    %v1320 = vadd.f32 0.0, %v1319
    %1321 = vmatprep.mubr.bf16.mxu0 %v906
    %1322 = vmatmul.mubr.bf16.gmra.mxu0 %v277
    %v1323 = vpop.f32.mrf.mxu0
    %v1324 = vadd.f32 0.0, %v1323
    %v1325 = vpop.f32.mrf.mxu0
    %v1326 = vadd.f32 0.0, %v1325
    %v1327 = vpop.f32.mrf.mxu0
    %v1328 = vadd.f32 0.0, %v1327
    %v1329 = vpop.f32.mrf.mxu0
    %v1330 = vadd.f32 0.0, %v1329
    %1331 = vmatprep.mubr.bf16.mxu0 %v909
    %1332 = vmatmul.mubr.bf16.gmra.mxu0 %v279
    %v1333 = vpop.f32.mrf.mxu0
    %v1334 = vadd.f32 0.0, %v1333
    %v1335 = vpop.f32.mrf.mxu0
    %v1336 = vadd.f32 0.0, %v1335
    %v1337 = vpop.f32.mrf.mxu0
    %v1338 = vadd.f32 0.0, %v1337
    %v1339 = vpop.f32.mrf.mxu0
    %v1340 = vadd.f32 0.0, %v1339
    %1341 = vmatprep.mubr.bf16.mxu0 %v912
    %1342 = vmatmul.mubr.bf16.gmra.mxu0 %v281
    %v1343 = vpop.f32.mrf.mxu0
    %v1344 = vadd.f32 0.0, %v1343
    %v1345 = vpop.f32.mrf.mxu0
    %v1346 = vadd.f32 0.0, %v1345
    %v1347 = vpop.f32.mrf.mxu0
    %v1348 = vadd.f32 0.0, %v1347
    %v1349 = vpop.f32.mrf.mxu0
    %v1350 = vadd.f32 0.0, %v1349
    %1351 = vmatprep.mubr.bf16.mxu0 %v915
    %1352 = vmatmul.mubr.bf16.gmra.mxu0 %v283
    %v1353 = vpop.f32.mrf.mxu0
    %v1354 = vadd.f32 0.0, %v1353
    %v1355 = vpop.f32.mrf.mxu0
    %v1356 = vadd.f32 0.0, %v1355
    %v1357 = vpop.f32.mrf.mxu0
    %v1358 = vadd.f32 0.0, %v1357
    %v1359 = vpop.f32.mrf.mxu0
    %v1360 = vadd.f32 0.0, %v1359
    %1361 = vmatprep.mubr.bf16.mxu0 %v918
    %1362 = vmatmul.mubr.bf16.gmra.mxu0 %v285
    %v1363 = vpop.f32.mrf.mxu0
    %v1364 = vadd.f32 0.0, %v1363
    %v1365 = vpop.f32.mrf.mxu0
    %v1366 = vadd.f32 0.0, %v1365
    %v1367 = vpop.f32.mrf.mxu0
    %v1368 = vadd.f32 0.0, %v1367
    %v1369 = vpop.f32.mrf.mxu0
    %v1370 = vadd.f32 0.0, %v1369
    %1371 = vdwg.mxu0
    %1372 = vmatprep.subr.bf16.mxu0 %v734
    %1373 = vmatpush1.bf16.msra.mxu0 %v733
    %1374 = vmatprep.subr.bf16.mxu0 %v724
    %1375 = vmatpush1.bf16.msra.mxu0 %v723
    %1376 = vmatprep.subr.bf16.mxu0 %v714
    %1377 = vmatpush1.bf16.msra.mxu0 %v713
    %1378 = vmatprep.subr.bf16.mxu0 %v704
    %1379 = vmatpush1.bf16.msra.mxu0 %v703
    %1380 = vmatprep.subr.bf16.mxu0 %v694
    %1381 = vmatpush1.bf16.msra.mxu0 %v693
    %1382 = vmatprep.subr.bf16.mxu0 %v684
    %1383 = vmatpush1.bf16.msra.mxu0 %v683
    %1384 = vmatprep.subr.bf16.mxu0 %v674
    %1385 = vmatpush1.bf16.msra.mxu0 %v673
    %1386 = vmatprep.subr.bf16.mxu0 %v664
    %1387 = vmatpush1.bf16.msra.mxu0 %v663
    %1388 = vmatprep.subr.bf16.mxu0 0
    %1389 = vmatpush2.bf16.msra.mxu0 0
    %1390 = vmatprep.subr.bf16.mxu0 0
    %1391 = vmatpush2.bf16.msra.mxu0 0
    %1392 = vmatprep.subr.bf16.mxu0 0
    %1393 = vmatpush2.bf16.msra.mxu0 0
    %1394 = vmatprep.subr.bf16.mxu0 0
    %1395 = vmatpush2.bf16.msra.mxu0 0
    %1396 = vmatprep.subr.bf16.mxu0 %v774
    %1397 = vmatpush2.bf16.msra.mxu0 %v773
    %1398 = vmatprep.subr.bf16.mxu0 %v764
    %1399 = vmatpush2.bf16.msra.mxu0 %v763
    %1400 = vmatprep.subr.bf16.mxu0 %v754
    %1401 = vmatpush2.bf16.msra.mxu0 %v753
    %1402 = vmatprep.subr.bf16.mxu0 %v744
    %1403 = vmatpush2.bf16.msra.mxu0 %v743
    %1404 = vmatprep.mubr.bf16.mxu0 %v897
    %1405 = vmatmul.mubr.bf16.gmra.mxu0 %v271
    %v1406 = vpop.f32.mrf.mxu0
    %v1407 = vadd.f32 0.0, %v1406
    %v1408 = vpop.f32.mrf.mxu0
    %v1409 = vadd.f32 0.0, %v1408
    %v1410 = vpop.f32.mrf.mxu0
    %v1411 = vadd.f32 0.0, %v1410
    %v1412 = vpop.f32.mrf.mxu0
    %v1413 = vadd.f32 0.0, %v1412
    %1414 = vmatprep.mubr.bf16.mxu0 %v900
    %1415 = vmatmul.mubr.bf16.gmra.mxu0 %v273
    %v1416 = vpop.f32.mrf.mxu0
    %v1417 = vadd.f32 0.0, %v1416
    %v1418 = vpop.f32.mrf.mxu0
    %v1419 = vadd.f32 0.0, %v1418
    %v1420 = vpop.f32.mrf.mxu0
    %v1421 = vadd.f32 0.0, %v1420
    %v1422 = vpop.f32.mrf.mxu0
    %v1423 = vadd.f32 0.0, %v1422
    %1424 = vmatprep.mubr.bf16.mxu0 %v903
    %1425 = vmatmul.mubr.bf16.gmra.mxu0 %v275
    %v1426 = vpop.f32.mrf.mxu0
    %v1427 = vadd.f32 0.0, %v1426
    %v1428 = vpop.f32.mrf.mxu0
    %v1429 = vadd.f32 0.0, %v1428
    %v1430 = vpop.f32.mrf.mxu0
    %v1431 = vadd.f32 0.0, %v1430
    %v1432 = vpop.f32.mrf.mxu0
    %v1433 = vadd.f32 0.0, %v1432
    %1434 = vmatprep.mubr.bf16.mxu0 %v906
    %1435 = vmatmul.mubr.bf16.gmra.mxu0 %v277
    %v1436 = vpop.f32.mrf.mxu0
    %v1437 = vadd.f32 0.0, %v1436
    %v1438 = vpop.f32.mrf.mxu0
    %v1439 = vadd.f32 0.0, %v1438
    %v1440 = vpop.f32.mrf.mxu0
    %v1441 = vadd.f32 0.0, %v1440
    %v1442 = vpop.f32.mrf.mxu0
    %v1443 = vadd.f32 0.0, %v1442
    %1444 = vmatprep.mubr.bf16.mxu0 %v909
    %1445 = vmatmul.mubr.bf16.gmra.mxu0 %v279
    %v1446 = vpop.f32.mrf.mxu0
    %v1447 = vadd.f32 0.0, %v1446
    %v1448 = vpop.f32.mrf.mxu0
    %v1449 = vadd.f32 0.0, %v1448
    %v1450 = vpop.f32.mrf.mxu0
    %v1451 = vadd.f32 0.0, %v1450
    %v1452 = vpop.f32.mrf.mxu0
    %v1453 = vadd.f32 0.0, %v1452
    %1454 = vmatprep.mubr.bf16.mxu0 %v912
    %1455 = vmatmul.mubr.bf16.gmra.mxu0 %v281
    %v1456 = vpop.f32.mrf.mxu0
    %v1457 = vadd.f32 0.0, %v1456
    %v1458 = vpop.f32.mrf.mxu0
    %v1459 = vadd.f32 0.0, %v1458
    %v1460 = vpop.f32.mrf.mxu0
    %v1461 = vadd.f32 0.0, %v1460
    %v1462 = vpop.f32.mrf.mxu0
    %v1463 = vadd.f32 0.0, %v1462
    %1464 = vmatprep.mubr.bf16.mxu0 %v915
    %1465 = vmatmul.mubr.bf16.gmra.mxu0 %v283
    %v1466 = vpop.f32.mrf.mxu0
    %v1467 = vadd.f32 0.0, %v1466
    %v1468 = vpop.f32.mrf.mxu0
    %v1469 = vadd.f32 0.0, %v1468
    %v1470 = vpop.f32.mrf.mxu0
    %v1471 = vadd.f32 0.0, %v1470
    %v1472 = vpop.f32.mrf.mxu0
    %v1473 = vadd.f32 0.0, %v1472
    %1474 = vmatprep.mubr.bf16.mxu0 %v918
    %1475 = vmatmul.mubr.bf16.gmra.mxu0 %v285
    %v1476 = vpop.f32.mrf.mxu0
    %v1477 = vadd.f32 0.0, %v1476
    %v1478 = vpop.f32.mrf.mxu0
    %v1479 = vadd.f32 0.0, %v1478
    %v1480 = vpop.f32.mrf.mxu0
    %v1481 = vadd.f32 0.0, %v1480
    %v1482 = vpop.f32.mrf.mxu0
    %v1483 = vadd.f32 0.0, %v1482
    %1484 = vdwg.mxu0
    %v1485 = vld [vmem:[#allocation5] sm:$0xff]
    %v1486 = vld [vmem:[#allocation5 + $0x8] sm:$0x3]
    %v1489 = vlaneseq
    %v1490 = vshrl.u32 %v1489, 7
    %v1491 = vsub.s32 0, %v1490
    %v1492 = vrot.slane %v1485, %v1491
    %v1493 = vlaneseq
    %v1494 = vshrl.u32 %v1493, 7
    %v1495 = vsub.s32 1, %v1494
    %v1496 = vrot.slane %v1485, %v1495
    %v1497 = vlaneseq
    %v1498 = vshrl.u32 %v1497, 7
    %v1499 = vsub.s32 2, %v1498
    %v1500 = vrot.slane %v1485, %v1499
    %v1501 = vlaneseq
    %v1502 = vshrl.u32 %v1501, 7
    %v1503 = vsub.s32 3, %v1502
    %v1504 = vrot.slane %v1485, %v1503
    %v1505 = vlaneseq
    %v1506 = vshrl.u32 %v1505, 7
    %v1507 = vsub.s32 4, %v1506
    %v1508 = vrot.slane %v1485, %v1507
    %v1509 = vlaneseq
    %v1510 = vshrl.u32 %v1509, 7
    %v1511 = vsub.s32 5, %v1510
    %v1512 = vrot.slane %v1485, %v1511
    %v1513 = vlaneseq
    %v1514 = vshrl.u32 %v1513, 7
    %v1515 = vsub.s32 6, %v1514
    %v1516 = vrot.slane %v1485, %v1515
    %v1517 = vlaneseq
    %v1518 = vshrl.u32 %v1517, 7
    %v1519 = vsub.s32 7, %v1518
    %v1520 = vrot.slane %v1485, %v1519
    %v1521 = vlaneseq
    %v1522 = vshrl.u32 %v1521, 7
    %v1523 = vsub.s32 0, %v1522
    %v1524 = vrot.slane %v1486, %v1523
    %v1525 = vlaneseq
    %v1526 = vshrl.u32 %v1525, 7
    %v1527 = vsub.s32 1, %v1526
    %v1528 = vrot.slane %v1486, %v1527
    %v1539 = vmul.f32 %v955, %v1492
    %v1540 = vmul.f32 %v957, %v1496
    %v1541 = vmul.f32 %v1068, %v1500
    %v1542 = vmul.f32 %v1070, %v1504
    %v1543 = vmul.f32 %v1181, %v1508
    %v1544 = vmul.f32 %v1183, %v1512
    %v1545 = vmul.f32 %v1294, %v1516
    %v1546 = vmul.f32 %v1296, %v1520
    %v1547 = vmul.f32 %v1407, %v1524
    %v1548 = vmul.f32 %v1409, %v1528
    %v1549 = vmul.f32 %v959, %v1492
    %v1550 = vmul.f32 %v961, %v1496
    %v1551 = vmul.f32 %v1072, %v1500
    %v1552 = vmul.f32 %v1074, %v1504
    %v1553 = vmul.f32 %v1185, %v1508
    %v1554 = vmul.f32 %v1187, %v1512
    %v1555 = vmul.f32 %v1298, %v1516
    %v1556 = vmul.f32 %v1300, %v1520
    %v1557 = vmul.f32 %v1411, %v1524
    %v1558 = vmul.f32 %v1413, %v1528
    %v1559 = vmul.f32 %v965, %v1492
    %v1560 = vmul.f32 %v967, %v1496
    %v1561 = vmul.f32 %v1078, %v1500
    %v1562 = vmul.f32 %v1080, %v1504
    %v1563 = vmul.f32 %v1191, %v1508
    %v1564 = vmul.f32 %v1193, %v1512
    %v1565 = vmul.f32 %v1304, %v1516
    %v1566 = vmul.f32 %v1306, %v1520
    %v1567 = vmul.f32 %v1417, %v1524
    %v1568 = vmul.f32 %v1419, %v1528
    %v1569 = vmul.f32 %v969, %v1492
    %v1570 = vmul.f32 %v971, %v1496
    %v1571 = vmul.f32 %v1082, %v1500
    %v1572 = vmul.f32 %v1084, %v1504
    %v1573 = vmul.f32 %v1195, %v1508
    %v1574 = vmul.f32 %v1197, %v1512
    %v1575 = vmul.f32 %v1308, %v1516
    %v1576 = vmul.f32 %v1310, %v1520
    %v1577 = vmul.f32 %v1421, %v1524
    %v1578 = vmul.f32 %v1423, %v1528
    %v1579 = vmul.f32 %v975, %v1492
    %v1580 = vmul.f32 %v977, %v1496
    %v1581 = vmul.f32 %v1088, %v1500
    %v1582 = vmul.f32 %v1090, %v1504
    %v1583 = vmul.f32 %v1201, %v1508
    %v1584 = vmul.f32 %v1203, %v1512
    %v1585 = vmul.f32 %v1314, %v1516
    %v1586 = vmul.f32 %v1316, %v1520
    %v1587 = vmul.f32 %v1427, %v1524
    %v1588 = vmul.f32 %v1429, %v1528
    %v1589 = vmul.f32 %v979, %v1492
    %v1590 = vmul.f32 %v981, %v1496
    %v1591 = vmul.f32 %v1092, %v1500
    %v1592 = vmul.f32 %v1094, %v1504
    %v1593 = vmul.f32 %v1205, %v1508
    %v1594 = vmul.f32 %v1207, %v1512
    %v1595 = vmul.f32 %v1318, %v1516
    %v1596 = vmul.f32 %v1320, %v1520
    %v1597 = vmul.f32 %v1431, %v1524
    %v1598 = vmul.f32 %v1433, %v1528
    %v1599 = vmul.f32 %v985, %v1492
    %v1600 = vmul.f32 %v987, %v1496
    %v1601 = vmul.f32 %v1098, %v1500
    %v1602 = vmul.f32 %v1100, %v1504
    %v1603 = vmul.f32 %v1211, %v1508
    %v1604 = vmul.f32 %v1213, %v1512
    %v1605 = vmul.f32 %v1324, %v1516
    %v1606 = vmul.f32 %v1326, %v1520
    %v1607 = vmul.f32 %v1437, %v1524
    %v1608 = vmul.f32 %v1439, %v1528
    %v1609 = vmul.f32 %v989, %v1492
    %v1610 = vmul.f32 %v991, %v1496
    %v1611 = vmul.f32 %v1102, %v1500
    %v1612 = vmul.f32 %v1104, %v1504
    %v1613 = vmul.f32 %v1215, %v1508
    %v1614 = vmul.f32 %v1217, %v1512
    %v1615 = vmul.f32 %v1328, %v1516
    %v1616 = vmul.f32 %v1330, %v1520
    %v1617 = vmul.f32 %v1441, %v1524
    %v1618 = vmul.f32 %v1443, %v1528
    %v1619 = vmul.f32 %v995, %v1492
    %v1620 = vmul.f32 %v997, %v1496
    %v1621 = vmul.f32 %v1108, %v1500
    %v1622 = vmul.f32 %v1110, %v1504
    %v1623 = vmul.f32 %v1221, %v1508
    %v1624 = vmul.f32 %v1223, %v1512
    %v1625 = vmul.f32 %v1334, %v1516
    %v1626 = vmul.f32 %v1336, %v1520
    %v1627 = vmul.f32 %v1447, %v1524
    %v1628 = vmul.f32 %v1449, %v1528
    %v1629 = vmul.f32 %v999, %v1492
    %v1630 = vmul.f32 %v1001, %v1496
    %v1631 = vmul.f32 %v1112, %v1500
    %v1632 = vmul.f32 %v1114, %v1504
    %v1633 = vmul.f32 %v1225, %v1508
    %v1634 = vmul.f32 %v1227, %v1512
    %v1635 = vmul.f32 %v1338, %v1516
    %v1636 = vmul.f32 %v1340, %v1520
    %v1637 = vmul.f32 %v1451, %v1524
    %v1638 = vmul.f32 %v1453, %v1528
    %v1639 = vmul.f32 %v1005, %v1492
    %v1640 = vmul.f32 %v1007, %v1496
    %v1641 = vmul.f32 %v1118, %v1500
    %v1642 = vmul.f32 %v1120, %v1504
    %v1643 = vmul.f32 %v1231, %v1508
    %v1644 = vmul.f32 %v1233, %v1512
    %v1645 = vmul.f32 %v1344, %v1516
    %v1646 = vmul.f32 %v1346, %v1520
    %v1647 = vmul.f32 %v1457, %v1524
    %v1648 = vmul.f32 %v1459, %v1528
    %v1649 = vmul.f32 %v1009, %v1492
    %v1650 = vmul.f32 %v1011, %v1496
    %v1651 = vmul.f32 %v1122, %v1500
    %v1652 = vmul.f32 %v1124, %v1504
    %v1653 = vmul.f32 %v1235, %v1508
    %v1654 = vmul.f32 %v1237, %v1512
    %v1655 = vmul.f32 %v1348, %v1516
    %v1656 = vmul.f32 %v1350, %v1520
    %v1657 = vmul.f32 %v1461, %v1524
    %v1658 = vmul.f32 %v1463, %v1528
    %v1659 = vmul.f32 %v1015, %v1492
    %v1660 = vmul.f32 %v1017, %v1496
    %v1661 = vmul.f32 %v1128, %v1500
    %v1662 = vmul.f32 %v1130, %v1504
    %v1663 = vmul.f32 %v1241, %v1508
    %v1664 = vmul.f32 %v1243, %v1512
    %v1665 = vmul.f32 %v1354, %v1516
    %v1666 = vmul.f32 %v1356, %v1520
    %v1667 = vmul.f32 %v1467, %v1524
    %v1668 = vmul.f32 %v1469, %v1528
    %v1669 = vmul.f32 %v1019, %v1492
    %v1670 = vmul.f32 %v1021, %v1496
    %v1671 = vmul.f32 %v1132, %v1500
    %v1672 = vmul.f32 %v1134, %v1504
    %v1673 = vmul.f32 %v1245, %v1508
    %v1674 = vmul.f32 %v1247, %v1512
    %v1675 = vmul.f32 %v1358, %v1516
    %v1676 = vmul.f32 %v1360, %v1520
    %v1677 = vmul.f32 %v1471, %v1524
    %v1678 = vmul.f32 %v1473, %v1528
    %v1679 = vmul.f32 %v1025, %v1492
    %v1680 = vmul.f32 %v1027, %v1496
    %v1681 = vmul.f32 %v1138, %v1500
    %v1682 = vmul.f32 %v1140, %v1504
    %v1683 = vmul.f32 %v1251, %v1508
    %v1684 = vmul.f32 %v1253, %v1512
    %v1685 = vmul.f32 %v1364, %v1516
    %v1686 = vmul.f32 %v1366, %v1520
    %v1687 = vmul.f32 %v1477, %v1524
    %v1688 = vmul.f32 %v1479, %v1528
    %v1689 = vmul.f32 %v1029, %v1492
    %v1690 = vmul.f32 %v1031, %v1496
    %v1691 = vmul.f32 %v1142, %v1500
    %v1692 = vmul.f32 %v1144, %v1504
    %v1693 = vmul.f32 %v1255, %v1508
    %v1694 = vmul.f32 %v1257, %v1512
    %v1695 = vmul.f32 %v1368, %v1516
    %v1696 = vmul.f32 %v1370, %v1520
    %v1697 = vmul.f32 %v1481, %v1524
    %v1698 = vmul.f32 %v1483, %v1528
    %v1699 = vld [vmem:[#allocation7] sm:$0xff]
    %v1700 = vld [vmem:[#allocation7 + $0x8] sm:$0x3]
    %v1703 = vlaneseq
    %v1704 = vshrl.u32 %v1703, 7
    %v1705 = vsub.s32 0, %v1704
    %v1706 = vrot.slane %v1699, %v1705
    %v1707 = vlaneseq
    %v1708 = vshrl.u32 %v1707, 7
    %v1709 = vsub.s32 1, %v1708
    %v1710 = vrot.slane %v1699, %v1709
    %v1711 = vlaneseq
    %v1712 = vshrl.u32 %v1711, 7
    %v1713 = vsub.s32 2, %v1712
    %v1714 = vrot.slane %v1699, %v1713
    %v1715 = vlaneseq
    %v1716 = vshrl.u32 %v1715, 7
    %v1717 = vsub.s32 3, %v1716
    %v1718 = vrot.slane %v1699, %v1717
    %v1719 = vlaneseq
    %v1720 = vshrl.u32 %v1719, 7
    %v1721 = vsub.s32 4, %v1720
    %v1722 = vrot.slane %v1699, %v1721
    %v1723 = vlaneseq
    %v1724 = vshrl.u32 %v1723, 7
    %v1725 = vsub.s32 5, %v1724
    %v1726 = vrot.slane %v1699, %v1725
    %v1727 = vlaneseq
    %v1728 = vshrl.u32 %v1727, 7
    %v1729 = vsub.s32 6, %v1728
    %v1730 = vrot.slane %v1699, %v1729
    %v1731 = vlaneseq
    %v1732 = vshrl.u32 %v1731, 7
    %v1733 = vsub.s32 7, %v1732
    %v1734 = vrot.slane %v1699, %v1733
    %v1735 = vlaneseq
    %v1736 = vshrl.u32 %v1735, 7
    %v1737 = vsub.s32 0, %v1736
    %v1738 = vrot.slane %v1700, %v1737
    %v1739 = vlaneseq
    %v1740 = vshrl.u32 %v1739, 7
    %v1741 = vsub.s32 1, %v1740
    %v1742 = vrot.slane %v1700, %v1741
    %v1753 = vadd.f32 %v1539, %v1706
    %v1754 = vadd.f32 %v1540, %v1710
    %v1755 = vadd.f32 %v1541, %v1714
    %v1756 = vadd.f32 %v1542, %v1718
    %v1757 = vadd.f32 %v1543, %v1722
    %v1758 = vadd.f32 %v1544, %v1726
    %v1759 = vadd.f32 %v1545, %v1730
    %v1760 = vadd.f32 %v1546, %v1734
    %v1761 = vadd.f32 %v1547, %v1738
    %v1762 = vadd.f32 %v1548, %v1742
    %v1763 = vadd.f32 %v1549, %v1706
    %v1764 = vadd.f32 %v1550, %v1710
    %v1765 = vadd.f32 %v1551, %v1714
    %v1766 = vadd.f32 %v1552, %v1718
    %v1767 = vadd.f32 %v1553, %v1722
    %v1768 = vadd.f32 %v1554, %v1726
    %v1769 = vadd.f32 %v1555, %v1730
    %v1770 = vadd.f32 %v1556, %v1734
    %v1771 = vadd.f32 %v1557, %v1738
    %v1772 = vadd.f32 %v1558, %v1742
    %v1773 = vadd.f32 %v1559, %v1706
    %v1774 = vadd.f32 %v1560, %v1710
    %v1775 = vadd.f32 %v1561, %v1714
    %v1776 = vadd.f32 %v1562, %v1718
    %v1777 = vadd.f32 %v1563, %v1722
    %v1778 = vadd.f32 %v1564, %v1726
    %v1779 = vadd.f32 %v1565, %v1730
    %v1780 = vadd.f32 %v1566, %v1734
    %v1781 = vadd.f32 %v1567, %v1738
    %v1782 = vadd.f32 %v1568, %v1742
    %v1783 = vadd.f32 %v1569, %v1706
    %v1784 = vadd.f32 %v1570, %v1710
    %v1785 = vadd.f32 %v1571, %v1714
    %v1786 = vadd.f32 %v1572, %v1718
    %v1787 = vadd.f32 %v1573, %v1722
    %v1788 = vadd.f32 %v1574, %v1726
    %v1789 = vadd.f32 %v1575, %v1730
    %v1790 = vadd.f32 %v1576, %v1734
    %v1791 = vadd.f32 %v1577, %v1738
    %v1792 = vadd.f32 %v1578, %v1742
    %v1793 = vadd.f32 %v1579, %v1706
    %v1794 = vadd.f32 %v1580, %v1710
    %v1795 = vadd.f32 %v1581, %v1714
    %v1796 = vadd.f32 %v1582, %v1718
    %v1797 = vadd.f32 %v1583, %v1722
    %v1798 = vadd.f32 %v1584, %v1726
    %v1799 = vadd.f32 %v1585, %v1730
    %v1800 = vadd.f32 %v1586, %v1734
    %v1801 = vadd.f32 %v1587, %v1738
    %v1802 = vadd.f32 %v1588, %v1742
    %v1803 = vadd.f32 %v1589, %v1706
    %v1804 = vadd.f32 %v1590, %v1710
    %v1805 = vadd.f32 %v1591, %v1714
    %v1806 = vadd.f32 %v1592, %v1718
    %v1807 = vadd.f32 %v1593, %v1722
    %v1808 = vadd.f32 %v1594, %v1726
    %v1809 = vadd.f32 %v1595, %v1730
    %v1810 = vadd.f32 %v1596, %v1734
    %v1811 = vadd.f32 %v1597, %v1738
    %v1812 = vadd.f32 %v1598, %v1742
    %v1813 = vadd.f32 %v1599, %v1706
    %v1814 = vadd.f32 %v1600, %v1710
    %v1815 = vadd.f32 %v1601, %v1714
    %v1816 = vadd.f32 %v1602, %v1718
    %v1817 = vadd.f32 %v1603, %v1722
    %v1818 = vadd.f32 %v1604, %v1726
    %v1819 = vadd.f32 %v1605, %v1730
    %v1820 = vadd.f32 %v1606, %v1734
    %v1821 = vadd.f32 %v1607, %v1738
    %v1822 = vadd.f32 %v1608, %v1742
    %v1823 = vadd.f32 %v1609, %v1706
    %v1824 = vadd.f32 %v1610, %v1710
    %v1825 = vadd.f32 %v1611, %v1714
    %v1826 = vadd.f32 %v1612, %v1718
    %v1827 = vadd.f32 %v1613, %v1722
    %v1828 = vadd.f32 %v1614, %v1726
    %v1829 = vadd.f32 %v1615, %v1730
    %v1830 = vadd.f32 %v1616, %v1734
    %v1831 = vadd.f32 %v1617, %v1738
    %v1832 = vadd.f32 %v1618, %v1742
    %v1833 = vadd.f32 %v1619, %v1706
    %v1834 = vadd.f32 %v1620, %v1710
    %v1835 = vadd.f32 %v1621, %v1714
    %v1836 = vadd.f32 %v1622, %v1718
    %v1837 = vadd.f32 %v1623, %v1722
    %v1838 = vadd.f32 %v1624, %v1726
    %v1839 = vadd.f32 %v1625, %v1730
    %v1840 = vadd.f32 %v1626, %v1734
    %v1841 = vadd.f32 %v1627, %v1738
    %v1842 = vadd.f32 %v1628, %v1742
    %v1843 = vadd.f32 %v1629, %v1706
    %v1844 = vadd.f32 %v1630, %v1710
    %v1845 = vadd.f32 %v1631, %v1714
    %v1846 = vadd.f32 %v1632, %v1718
    %v1847 = vadd.f32 %v1633, %v1722
    %v1848 = vadd.f32 %v1634, %v1726
    %v1849 = vadd.f32 %v1635, %v1730
    %v1850 = vadd.f32 %v1636, %v1734
    %v1851 = vadd.f32 %v1637, %v1738
    %v1852 = vadd.f32 %v1638, %v1742
    %v1853 = vadd.f32 %v1639, %v1706
    %v1854 = vadd.f32 %v1640, %v1710
    %v1855 = vadd.f32 %v1641, %v1714
    %v1856 = vadd.f32 %v1642, %v1718
    %v1857 = vadd.f32 %v1643, %v1722
    %v1858 = vadd.f32 %v1644, %v1726
    %v1859 = vadd.f32 %v1645, %v1730
    %v1860 = vadd.f32 %v1646, %v1734
    %v1861 = vadd.f32 %v1647, %v1738
    %v1862 = vadd.f32 %v1648, %v1742
    %v1863 = vadd.f32 %v1649, %v1706
    %v1864 = vadd.f32 %v1650, %v1710
    %v1865 = vadd.f32 %v1651, %v1714
    %v1866 = vadd.f32 %v1652, %v1718
    %v1867 = vadd.f32 %v1653, %v1722
    %v1868 = vadd.f32 %v1654, %v1726
    %v1869 = vadd.f32 %v1655, %v1730
    %v1870 = vadd.f32 %v1656, %v1734
    %v1871 = vadd.f32 %v1657, %v1738
    %v1872 = vadd.f32 %v1658, %v1742
    %v1873 = vadd.f32 %v1659, %v1706
    %v1874 = vadd.f32 %v1660, %v1710
    %v1875 = vadd.f32 %v1661, %v1714
    %v1876 = vadd.f32 %v1662, %v1718
    %v1877 = vadd.f32 %v1663, %v1722
    %v1878 = vadd.f32 %v1664, %v1726
    %v1879 = vadd.f32 %v1665, %v1730
    %v1880 = vadd.f32 %v1666, %v1734
    %v1881 = vadd.f32 %v1667, %v1738
    %v1882 = vadd.f32 %v1668, %v1742
    %v1883 = vadd.f32 %v1669, %v1706
    %v1884 = vadd.f32 %v1670, %v1710
    %v1885 = vadd.f32 %v1671, %v1714
    %v1886 = vadd.f32 %v1672, %v1718
    %v1887 = vadd.f32 %v1673, %v1722
    %v1888 = vadd.f32 %v1674, %v1726
    %v1889 = vadd.f32 %v1675, %v1730
    %v1890 = vadd.f32 %v1676, %v1734
    %v1891 = vadd.f32 %v1677, %v1738
    %v1892 = vadd.f32 %v1678, %v1742
    %v1893 = vadd.f32 %v1679, %v1706
    %v1894 = vadd.f32 %v1680, %v1710
    %v1895 = vadd.f32 %v1681, %v1714
    %v1896 = vadd.f32 %v1682, %v1718
    %v1897 = vadd.f32 %v1683, %v1722
    %v1898 = vadd.f32 %v1684, %v1726
    %v1899 = vadd.f32 %v1685, %v1730
    %v1900 = vadd.f32 %v1686, %v1734
    %v1901 = vadd.f32 %v1687, %v1738
    %v1902 = vadd.f32 %v1688, %v1742
    %v1903 = vadd.f32 %v1689, %v1706
    %v1904 = vadd.f32 %v1690, %v1710
    %v1905 = vadd.f32 %v1691, %v1714
    %v1906 = vadd.f32 %v1692, %v1718
    %v1907 = vadd.f32 %v1693, %v1722
    %v1908 = vadd.f32 %v1694, %v1726
    %v1909 = vadd.f32 %v1695, %v1730
    %v1910 = vadd.f32 %v1696, %v1734
    %v1911 = vadd.f32 %v1697, %v1738
    %v1912 = vadd.f32 %v1698, %v1742
    %v1913 = vmax.f32 %v1753, 0.0
    %v1914 = vmax.f32 %v1754, 0.0
    %v1915 = vmax.f32 %v1755, 0.0
    %v1916 = vmax.f32 %v1756, 0.0
    %v1917 = vmax.f32 %v1757, 0.0
    %v1918 = vmax.f32 %v1758, 0.0
    %v1919 = vmax.f32 %v1759, 0.0
    %v1920 = vmax.f32 %v1760, 0.0
    %v1921 = vmax.f32 %v1761, 0.0
    %v1922 = vmax.f32 %v1762, 0.0
    %v1923 = vmax.f32 %v1763, 0.0
    %v1924 = vmax.f32 %v1764, 0.0
    %v1925 = vmax.f32 %v1765, 0.0
    %v1926 = vmax.f32 %v1766, 0.0
    %v1927 = vmax.f32 %v1767, 0.0
    %v1928 = vmax.f32 %v1768, 0.0
    %v1929 = vmax.f32 %v1769, 0.0
    %v1930 = vmax.f32 %v1770, 0.0
    %v1931 = vmax.f32 %v1771, 0.0
    %v1932 = vmax.f32 %v1772, 0.0
    %v1933 = vmax.f32 %v1773, 0.0
    %v1934 = vmax.f32 %v1774, 0.0
    %v1935 = vmax.f32 %v1775, 0.0
    %v1936 = vmax.f32 %v1776, 0.0
    %v1937 = vmax.f32 %v1777, 0.0
    %v1938 = vmax.f32 %v1778, 0.0
    %v1939 = vmax.f32 %v1779, 0.0
    %v1940 = vmax.f32 %v1780, 0.0
    %v1941 = vmax.f32 %v1781, 0.0
    %v1942 = vmax.f32 %v1782, 0.0
    %v1943 = vmax.f32 %v1783, 0.0
    %v1944 = vmax.f32 %v1784, 0.0
    %v1945 = vmax.f32 %v1785, 0.0
    %v1946 = vmax.f32 %v1786, 0.0
    %v1947 = vmax.f32 %v1787, 0.0
    %v1948 = vmax.f32 %v1788, 0.0
    %v1949 = vmax.f32 %v1789, 0.0
    %v1950 = vmax.f32 %v1790, 0.0
    %v1951 = vmax.f32 %v1791, 0.0
    %v1952 = vmax.f32 %v1792, 0.0
    %v1953 = vmax.f32 %v1793, 0.0
    %v1954 = vmax.f32 %v1794, 0.0
    %v1955 = vmax.f32 %v1795, 0.0
    %v1956 = vmax.f32 %v1796, 0.0
    %v1957 = vmax.f32 %v1797, 0.0
    %v1958 = vmax.f32 %v1798, 0.0
    %v1959 = vmax.f32 %v1799, 0.0
    %v1960 = vmax.f32 %v1800, 0.0
    %v1961 = vmax.f32 %v1801, 0.0
    %v1962 = vmax.f32 %v1802, 0.0
    %v1963 = vmax.f32 %v1803, 0.0
    %v1964 = vmax.f32 %v1804, 0.0
    %v1965 = vmax.f32 %v1805, 0.0
    %v1966 = vmax.f32 %v1806, 0.0
    %v1967 = vmax.f32 %v1807, 0.0
    %v1968 = vmax.f32 %v1808, 0.0
    %v1969 = vmax.f32 %v1809, 0.0
    %v1970 = vmax.f32 %v1810, 0.0
    %v1971 = vmax.f32 %v1811, 0.0
    %v1972 = vmax.f32 %v1812, 0.0
    %v1973 = vmax.f32 %v1813, 0.0
    %v1974 = vmax.f32 %v1814, 0.0
    %v1975 = vmax.f32 %v1815, 0.0
    %v1976 = vmax.f32 %v1816, 0.0
    %v1977 = vmax.f32 %v1817, 0.0
    %v1978 = vmax.f32 %v1818, 0.0
    %v1979 = vmax.f32 %v1819, 0.0
    %v1980 = vmax.f32 %v1820, 0.0
    %v1981 = vmax.f32 %v1821, 0.0
    %v1982 = vmax.f32 %v1822, 0.0
    %v1983 = vmax.f32 %v1823, 0.0
    %v1984 = vmax.f32 %v1824, 0.0
    %v1985 = vmax.f32 %v1825, 0.0
    %v1986 = vmax.f32 %v1826, 0.0
    %v1987 = vmax.f32 %v1827, 0.0
    %v1988 = vmax.f32 %v1828, 0.0
    %v1989 = vmax.f32 %v1829, 0.0
    %v1990 = vmax.f32 %v1830, 0.0
    %v1991 = vmax.f32 %v1831, 0.0
    %v1992 = vmax.f32 %v1832, 0.0
    %v1993 = vmax.f32 %v1833, 0.0
    %v1994 = vmax.f32 %v1834, 0.0
    %v1995 = vmax.f32 %v1835, 0.0
    %v1996 = vmax.f32 %v1836, 0.0
    %v1997 = vmax.f32 %v1837, 0.0
    %v1998 = vmax.f32 %v1838, 0.0
    %v1999 = vmax.f32 %v1839, 0.0
    %v2000 = vmax.f32 %v1840, 0.0
    %v2001 = vmax.f32 %v1841, 0.0
    %v2002 = vmax.f32 %v1842, 0.0
    %v2003 = vmax.f32 %v1843, 0.0
    %v2004 = vmax.f32 %v1844, 0.0
    %v2005 = vmax.f32 %v1845, 0.0
    %v2006 = vmax.f32 %v1846, 0.0
    %v2007 = vmax.f32 %v1847, 0.0
    %v2008 = vmax.f32 %v1848, 0.0
    %v2009 = vmax.f32 %v1849, 0.0
    %v2010 = vmax.f32 %v1850, 0.0
    %v2011 = vmax.f32 %v1851, 0.0
    %v2012 = vmax.f32 %v1852, 0.0
    %v2013 = vmax.f32 %v1853, 0.0
    %v2014 = vmax.f32 %v1854, 0.0
    %v2015 = vmax.f32 %v1855, 0.0
    %v2016 = vmax.f32 %v1856, 0.0
    %v2017 = vmax.f32 %v1857, 0.0
    %v2018 = vmax.f32 %v1858, 0.0
    %v2019 = vmax.f32 %v1859, 0.0
    %v2020 = vmax.f32 %v1860, 0.0
    %v2021 = vmax.f32 %v1861, 0.0
    %v2022 = vmax.f32 %v1862, 0.0
    %v2023 = vmax.f32 %v1863, 0.0
    %v2024 = vmax.f32 %v1864, 0.0
    %v2025 = vmax.f32 %v1865, 0.0
    %v2026 = vmax.f32 %v1866, 0.0
    %v2027 = vmax.f32 %v1867, 0.0
    %v2028 = vmax.f32 %v1868, 0.0
    %v2029 = vmax.f32 %v1869, 0.0
    %v2030 = vmax.f32 %v1870, 0.0
    %v2031 = vmax.f32 %v1871, 0.0
    %v2032 = vmax.f32 %v1872, 0.0
    %v2033 = vmax.f32 %v1873, 0.0
    %v2034 = vmax.f32 %v1874, 0.0
    %v2035 = vmax.f32 %v1875, 0.0
    %v2036 = vmax.f32 %v1876, 0.0
    %v2037 = vmax.f32 %v1877, 0.0
    %v2038 = vmax.f32 %v1878, 0.0
    %v2039 = vmax.f32 %v1879, 0.0
    %v2040 = vmax.f32 %v1880, 0.0
    %v2041 = vmax.f32 %v1881, 0.0
    %v2042 = vmax.f32 %v1882, 0.0
    %v2043 = vmax.f32 %v1883, 0.0
    %v2044 = vmax.f32 %v1884, 0.0
    %v2045 = vmax.f32 %v1885, 0.0
    %v2046 = vmax.f32 %v1886, 0.0
    %v2047 = vmax.f32 %v1887, 0.0
    %v2048 = vmax.f32 %v1888, 0.0
    %v2049 = vmax.f32 %v1889, 0.0
    %v2050 = vmax.f32 %v1890, 0.0
    %v2051 = vmax.f32 %v1891, 0.0
    %v2052 = vmax.f32 %v1892, 0.0
    %v2053 = vmax.f32 %v1893, 0.0
    %v2054 = vmax.f32 %v1894, 0.0
    %v2055 = vmax.f32 %v1895, 0.0
    %v2056 = vmax.f32 %v1896, 0.0
    %v2057 = vmax.f32 %v1897, 0.0
    %v2058 = vmax.f32 %v1898, 0.0
    %v2059 = vmax.f32 %v1899, 0.0
    %v2060 = vmax.f32 %v1900, 0.0
    %v2061 = vmax.f32 %v1901, 0.0
    %v2062 = vmax.f32 %v1902, 0.0
    %v2063 = vmax.f32 %v1903, 0.0
    %v2064 = vmax.f32 %v1904, 0.0
    %v2065 = vmax.f32 %v1905, 0.0
    %v2066 = vmax.f32 %v1906, 0.0
    %v2067 = vmax.f32 %v1907, 0.0
    %v2068 = vmax.f32 %v1908, 0.0
    %v2069 = vmax.f32 %v1909, 0.0
    %v2070 = vmax.f32 %v1910, 0.0
    %v2071 = vmax.f32 %v1911, 0.0
    %v2072 = vmax.f32 %v1912, 0.0
    %v2073 = vadd.f32 %v1913, %v1923
    %v2074 = vadd.f32 %v2073, %v1933
    %v2075 = vadd.f32 %v2074, %v1943
    %v2076 = vadd.f32 %v2075, %v1953
    %v2077 = vadd.f32 %v2076, %v1963
    %v2078 = vadd.f32 %v2077, %v1973
    %v2079 = vadd.f32 %v2078, %v1983
    %v2080 = vrot.slane %v2079, 4
    %v2081 = vadd.f32 %v2079, %v2080
    %v2082 = vrot.slane %v2081, 2
    %v2083 = vadd.f32 %v2081, %v2082
    %v2084 = vrot.slane %v2083, 1
    %v2085 = vadd.f32 %v2083, %v2084
    %v2086 = vadd.f32 %v1914, %v1924
    %v2087 = vadd.f32 %v2086, %v1934
    %v2088 = vadd.f32 %v2087, %v1944
    %v2089 = vadd.f32 %v2088, %v1954
    %v2090 = vadd.f32 %v2089, %v1964
    %v2091 = vadd.f32 %v2090, %v1974
    %v2092 = vadd.f32 %v2091, %v1984
    %v2093 = vrot.slane %v2092, 4
    %v2094 = vadd.f32 %v2092, %v2093
    %v2095 = vrot.slane %v2094, 2
    %v2096 = vadd.f32 %v2094, %v2095
    %v2097 = vrot.slane %v2096, 1
    %v2098 = vadd.f32 %v2096, %v2097
    %v2099 = vadd.f32 %v1915, %v1925
    %v2100 = vadd.f32 %v2099, %v1935
    %v2101 = vadd.f32 %v2100, %v1945
    %v2102 = vadd.f32 %v2101, %v1955
    %v2103 = vadd.f32 %v2102, %v1965
    %v2104 = vadd.f32 %v2103, %v1975
    %v2105 = vadd.f32 %v2104, %v1985
    %v2106 = vrot.slane %v2105, 4
    %v2107 = vadd.f32 %v2105, %v2106
    %v2108 = vrot.slane %v2107, 2
    %v2109 = vadd.f32 %v2107, %v2108
    %v2110 = vrot.slane %v2109, 1
    %v2111 = vadd.f32 %v2109, %v2110
    %v2112 = vadd.f32 %v1916, %v1926
    %v2113 = vadd.f32 %v2112, %v1936
    %v2114 = vadd.f32 %v2113, %v1946
    %v2115 = vadd.f32 %v2114, %v1956
    %v2116 = vadd.f32 %v2115, %v1966
    %v2117 = vadd.f32 %v2116, %v1976
    %v2118 = vadd.f32 %v2117, %v1986
    %v2119 = vrot.slane %v2118, 4
    %v2120 = vadd.f32 %v2118, %v2119
    %v2121 = vrot.slane %v2120, 2
    %v2122 = vadd.f32 %v2120, %v2121
    %v2123 = vrot.slane %v2122, 1
    %v2124 = vadd.f32 %v2122, %v2123
    %v2125 = vadd.f32 %v1917, %v1927
    %v2126 = vadd.f32 %v2125, %v1937
    %v2127 = vadd.f32 %v2126, %v1947
    %v2128 = vadd.f32 %v2127, %v1957
    %v2129 = vadd.f32 %v2128, %v1967
    %v2130 = vadd.f32 %v2129, %v1977
    %v2131 = vadd.f32 %v2130, %v1987
    %v2132 = vrot.slane %v2131, 4
    %v2133 = vadd.f32 %v2131, %v2132
    %v2134 = vrot.slane %v2133, 2
    %v2135 = vadd.f32 %v2133, %v2134
    %v2136 = vrot.slane %v2135, 1
    %v2137 = vadd.f32 %v2135, %v2136
    %v2138 = vadd.f32 %v1918, %v1928
    %v2139 = vadd.f32 %v2138, %v1938
    %v2140 = vadd.f32 %v2139, %v1948
    %v2141 = vadd.f32 %v2140, %v1958
    %v2142 = vadd.f32 %v2141, %v1968
    %v2143 = vadd.f32 %v2142, %v1978
    %v2144 = vadd.f32 %v2143, %v1988
    %v2145 = vrot.slane %v2144, 4
    %v2146 = vadd.f32 %v2144, %v2145
    %v2147 = vrot.slane %v2146, 2
    %v2148 = vadd.f32 %v2146, %v2147
    %v2149 = vrot.slane %v2148, 1
    %v2150 = vadd.f32 %v2148, %v2149
    %v2151 = vadd.f32 %v1919, %v1929
    %v2152 = vadd.f32 %v2151, %v1939
    %v2153 = vadd.f32 %v2152, %v1949
    %v2154 = vadd.f32 %v2153, %v1959
    %v2155 = vadd.f32 %v2154, %v1969
    %v2156 = vadd.f32 %v2155, %v1979
    %v2157 = vadd.f32 %v2156, %v1989
    %v2158 = vrot.slane %v2157, 4
    %v2159 = vadd.f32 %v2157, %v2158
    %v2160 = vrot.slane %v2159, 2
    %v2161 = vadd.f32 %v2159, %v2160
    %v2162 = vrot.slane %v2161, 1
    %v2163 = vadd.f32 %v2161, %v2162
    %v2164 = vadd.f32 %v1920, %v1930
    %v2165 = vadd.f32 %v2164, %v1940
    %v2166 = vadd.f32 %v2165, %v1950
    %v2167 = vadd.f32 %v2166, %v1960
    %v2168 = vadd.f32 %v2167, %v1970
    %v2169 = vadd.f32 %v2168, %v1980
    %v2170 = vadd.f32 %v2169, %v1990
    %v2171 = vrot.slane %v2170, 4
    %v2172 = vadd.f32 %v2170, %v2171
    %v2173 = vrot.slane %v2172, 2
    %v2174 = vadd.f32 %v2172, %v2173
    %v2175 = vrot.slane %v2174, 1
    %v2176 = vadd.f32 %v2174, %v2175
    %v2177 = vadd.f32 %v1921, %v1931
    %v2178 = vadd.f32 %v2177, %v1941
    %v2179 = vadd.f32 %v2178, %v1951
    %v2180 = vadd.f32 %v2179, %v1961
    %v2181 = vadd.f32 %v2180, %v1971
    %v2182 = vadd.f32 %v2181, %v1981
    %v2183 = vadd.f32 %v2182, %v1991
    %v2184 = vrot.slane %v2183, 4
    %v2185 = vadd.f32 %v2183, %v2184
    %v2186 = vrot.slane %v2185, 2
    %v2187 = vadd.f32 %v2185, %v2186
    %v2188 = vrot.slane %v2187, 1
    %v2189 = vadd.f32 %v2187, %v2188
    %v2190 = vadd.f32 %v1922, %v1932
    %v2191 = vadd.f32 %v2190, %v1942
    %v2192 = vadd.f32 %v2191, %v1952
    %v2193 = vadd.f32 %v2192, %v1962
    %v2194 = vadd.f32 %v2193, %v1972
    %v2195 = vadd.f32 %v2194, %v1982
    %v2196 = vadd.f32 %v2195, %v1992
    %v2197 = vrot.slane %v2196, 4
    %v2198 = vadd.f32 %v2196, %v2197
    %v2199 = vrot.slane %v2198, 2
    %v2200 = vadd.f32 %v2198, %v2199
    %v2201 = vrot.slane %v2200, 1
    %v2202 = vadd.f32 %v2200, %v2201
    %v2203 = vadd.f32 %v1993, %v2003
    %v2204 = vadd.f32 %v2203, %v2013
    %v2205 = vadd.f32 %v2204, %v2023
    %v2206 = vadd.f32 %v2205, %v2033
    %v2207 = vadd.f32 %v2206, %v2043
    %v2208 = vadd.f32 %v2207, %v2053
    %v2209 = vadd.f32 %v2208, %v2063
    %v2210 = vrot.slane %v2209, 4
    %v2211 = vadd.f32 %v2209, %v2210
    %v2212 = vrot.slane %v2211, 2
    %v2213 = vadd.f32 %v2211, %v2212
    %v2214 = vrot.slane %v2213, 1
    %v2215 = vadd.f32 %v2213, %v2214
    %v2216 = vadd.f32 %v1994, %v2004
    %v2217 = vadd.f32 %v2216, %v2014
    %v2218 = vadd.f32 %v2217, %v2024
    %v2219 = vadd.f32 %v2218, %v2034
    %v2220 = vadd.f32 %v2219, %v2044
    %v2221 = vadd.f32 %v2220, %v2054
    %v2222 = vadd.f32 %v2221, %v2064
    %v2223 = vrot.slane %v2222, 4
    %v2224 = vadd.f32 %v2222, %v2223
    %v2225 = vrot.slane %v2224, 2
    %v2226 = vadd.f32 %v2224, %v2225
    %v2227 = vrot.slane %v2226, 1
    %v2228 = vadd.f32 %v2226, %v2227
    %v2229 = vadd.f32 %v1995, %v2005
    %v2230 = vadd.f32 %v2229, %v2015
    %v2231 = vadd.f32 %v2230, %v2025
    %v2232 = vadd.f32 %v2231, %v2035
    %v2233 = vadd.f32 %v2232, %v2045
    %v2234 = vadd.f32 %v2233, %v2055
    %v2235 = vadd.f32 %v2234, %v2065
    %v2236 = vrot.slane %v2235, 4
    %v2237 = vadd.f32 %v2235, %v2236
    %v2238 = vrot.slane %v2237, 2
    %v2239 = vadd.f32 %v2237, %v2238
    %v2240 = vrot.slane %v2239, 1
    %v2241 = vadd.f32 %v2239, %v2240
    %v2242 = vadd.f32 %v1996, %v2006
    %v2243 = vadd.f32 %v2242, %v2016
    %v2244 = vadd.f32 %v2243, %v2026
    %v2245 = vadd.f32 %v2244, %v2036
    %v2246 = vadd.f32 %v2245, %v2046
    %v2247 = vadd.f32 %v2246, %v2056
    %v2248 = vadd.f32 %v2247, %v2066
    %v2249 = vrot.slane %v2248, 4
    %v2250 = vadd.f32 %v2248, %v2249
    %v2251 = vrot.slane %v2250, 2
    %v2252 = vadd.f32 %v2250, %v2251
    %v2253 = vrot.slane %v2252, 1
    %v2254 = vadd.f32 %v2252, %v2253
    %v2255 = vadd.f32 %v1997, %v2007
    %v2256 = vadd.f32 %v2255, %v2017
    %v2257 = vadd.f32 %v2256, %v2027
    %v2258 = vadd.f32 %v2257, %v2037
    %v2259 = vadd.f32 %v2258, %v2047
    %v2260 = vadd.f32 %v2259, %v2057
    %v2261 = vadd.f32 %v2260, %v2067
    %v2262 = vrot.slane %v2261, 4
    %v2263 = vadd.f32 %v2261, %v2262
    %v2264 = vrot.slane %v2263, 2
    %v2265 = vadd.f32 %v2263, %v2264
    %v2266 = vrot.slane %v2265, 1
    %v2267 = vadd.f32 %v2265, %v2266
    %v2268 = vadd.f32 %v1998, %v2008
    %v2269 = vadd.f32 %v2268, %v2018
    %v2270 = vadd.f32 %v2269, %v2028
    %v2271 = vadd.f32 %v2270, %v2038
    %v2272 = vadd.f32 %v2271, %v2048
    %v2273 = vadd.f32 %v2272, %v2058
    %v2274 = vadd.f32 %v2273, %v2068
    %v2275 = vrot.slane %v2274, 4
    %v2276 = vadd.f32 %v2274, %v2275
    %v2277 = vrot.slane %v2276, 2
    %v2278 = vadd.f32 %v2276, %v2277
    %v2279 = vrot.slane %v2278, 1
    %v2280 = vadd.f32 %v2278, %v2279
    %v2281 = vadd.f32 %v1999, %v2009
    %v2282 = vadd.f32 %v2281, %v2019
    %v2283 = vadd.f32 %v2282, %v2029
    %v2284 = vadd.f32 %v2283, %v2039
    %v2285 = vadd.f32 %v2284, %v2049
    %v2286 = vadd.f32 %v2285, %v2059
    %v2287 = vadd.f32 %v2286, %v2069
    %v2288 = vrot.slane %v2287, 4
    %v2289 = vadd.f32 %v2287, %v2288
    %v2290 = vrot.slane %v2289, 2
    %v2291 = vadd.f32 %v2289, %v2290
    %v2292 = vrot.slane %v2291, 1
    %v2293 = vadd.f32 %v2291, %v2292
    %v2294 = vadd.f32 %v2000, %v2010
    %v2295 = vadd.f32 %v2294, %v2020
    %v2296 = vadd.f32 %v2295, %v2030
    %v2297 = vadd.f32 %v2296, %v2040
    %v2298 = vadd.f32 %v2297, %v2050
    %v2299 = vadd.f32 %v2298, %v2060
    %v2300 = vadd.f32 %v2299, %v2070
    %v2301 = vrot.slane %v2300, 4
    %v2302 = vadd.f32 %v2300, %v2301
    %v2303 = vrot.slane %v2302, 2
    %v2304 = vadd.f32 %v2302, %v2303
    %v2305 = vrot.slane %v2304, 1
    %v2306 = vadd.f32 %v2304, %v2305
    %v2307 = vadd.f32 %v2001, %v2011
    %v2308 = vadd.f32 %v2307, %v2021
    %v2309 = vadd.f32 %v2308, %v2031
    %v2310 = vadd.f32 %v2309, %v2041
    %v2311 = vadd.f32 %v2310, %v2051
    %v2312 = vadd.f32 %v2311, %v2061
    %v2313 = vadd.f32 %v2312, %v2071
    %v2314 = vrot.slane %v2313, 4
    %v2315 = vadd.f32 %v2313, %v2314
    %v2316 = vrot.slane %v2315, 2
    %v2317 = vadd.f32 %v2315, %v2316
    %v2318 = vrot.slane %v2317, 1
    %v2319 = vadd.f32 %v2317, %v2318
    %v2320 = vadd.f32 %v2002, %v2012
    %v2321 = vadd.f32 %v2320, %v2022
    %v2322 = vadd.f32 %v2321, %v2032
    %v2323 = vadd.f32 %v2322, %v2042
    %v2324 = vadd.f32 %v2323, %v2052
    %v2325 = vadd.f32 %v2324, %v2062
    %v2326 = vadd.f32 %v2325, %v2072
    %v2327 = vrot.slane %v2326, 4
    %v2328 = vadd.f32 %v2326, %v2327
    %v2329 = vrot.slane %v2328, 2
    %v2330 = vadd.f32 %v2328, %v2329
    %v2331 = vrot.slane %v2330, 1
    %v2332 = vadd.f32 %v2330, %v2331
    %v2333 = vpack.c.bf16 %v2085, %v2085
    %v2334 = vpack.c.bf16 %v2098, %v2098
    %v2335 = vpack.c.bf16 %v2111, %v2111
    %v2336 = vpack.c.bf16 %v2124, %v2124
    %v2337 = vpack.c.bf16 %v2137, %v2137
    %v2338 = vpack.c.bf16 %v2150, %v2150
    %v2339 = vpack.c.bf16 %v2163, %v2163
    %v2340 = vpack.c.bf16 %v2176, %v2176
    %v2341 = vpack.c.bf16 %v2189, %v2189
    %v2342 = vpack.c.bf16 %v2202, %v2202
    %v2343 = vpack.c.bf16 %v2215, %v2215
    %v2344 = vpack.c.bf16 %v2228, %v2228
    %v2345 = vpack.c.bf16 %v2241, %v2241
    %v2346 = vpack.c.bf16 %v2254, %v2254
    %v2347 = vpack.c.bf16 %v2267, %v2267
    %v2348 = vpack.c.bf16 %v2280, %v2280
    %v2349 = vpack.c.bf16 %v2293, %v2293
    %v2350 = vpack.c.bf16 %v2306, %v2306
    %v2351 = vpack.c.bf16 %v2319, %v2319
    %v2352 = vpack.c.bf16 %v2332, %v2332
    %v2353 = vld [vmem:[#allocation8] sm:$0xff]
    %v2354 = vld [vmem:[#allocation8 + $0x8] sm:$0xff]
    %v2355 = vld [vmem:[#allocation8 + $0x10] sm:$0xff]
    %v2356 = vld [vmem:[#allocation8 + $0x18] sm:$0xff]
    %v2357 = vld [vmem:[#allocation8 + $0x20] sm:$0xff]
    %v2358 = vld [vmem:[#allocation8 + $0x28] sm:$0xff]
    %v2359 = vld [vmem:[#allocation8 + $0x30] sm:$0xff]
    %v2360 = vld [vmem:[#allocation8 + $0x38] sm:$0xff]
    %v2361 = vld [vmem:[#allocation8 + $0x40] sm:$0xff]
    %v2362 = vld [vmem:[#allocation8 + $0x48] sm:$0xff]
    %v2363 = vld [vmem:[#allocation8 + $0x50] sm:$0xff]
    %v2364 = vld [vmem:[#allocation8 + $0x58] sm:$0xff]
    %v2365 = vld [vmem:[#allocation8 + $0x60] sm:$0xff]
    %v2366 = vld [vmem:[#allocation8 + $0x68] sm:$0xff]
    %v2367 = vld [vmem:[#allocation8 + $0x70] sm:$0xff]
    %v2368 = vld [vmem:[#allocation8 + $0x78] sm:$0xff]
    %v2369 = vld [vmem:[#allocation8 + $0x80] sm:$0xff]
    %v2370 = vld [vmem:[#allocation8 + $0x88] sm:$0xff]
    %v2371 = vld [vmem:[#allocation8 + $0x90] sm:$0xff]
    %v2372 = vld [vmem:[#allocation8 + $0x98] sm:$0xff]
    %v2373 = vld [vmem:[#allocation8 + $0xa0] sm:$0xff]
    %v2374 = vld [vmem:[#allocation8 + $0xa8] sm:$0xff]
    %v2375 = vld [vmem:[#allocation8 + $0xb0] sm:$0xff]
    %v2376 = vld [vmem:[#allocation8 + $0xb8] sm:$0xff]
    %v2377 = vld [vmem:[#allocation8 + $0xc0] sm:$0xff]
    %v2378 = vld [vmem:[#allocation8 + $0xc8] sm:$0xff]
    %v2379 = vld [vmem:[#allocation8 + $0xd0] sm:$0xff]
    %v2380 = vld [vmem:[#allocation8 + $0xd8] sm:$0xff]
    %v2381 = vld [vmem:[#allocation8 + $0xe0] sm:$0xff]
    %v2382 = vld [vmem:[#allocation8 + $0xe8] sm:$0xff]
    %v2383 = vld [vmem:[#allocation8 + $0xf0] sm:$0xff]
    %v2384 = vld [vmem:[#allocation8 + $0xf8] sm:$0xff]
    %v2385 = vld [vmem:[#allocation8 + $0x100] sm:$0xff]
    %v2386 = vld [vmem:[#allocation8 + $0x108] sm:$0xff]
    %v2387 = vld [vmem:[#allocation8 + $0x110] sm:$0xff]
    %v2388 = vld [vmem:[#allocation8 + $0x118] sm:$0xff]
    %v2389 = vld [vmem:[#allocation8 + $0x120] sm:$0xff]
    %v2390 = vld [vmem:[#allocation8 + $0x128] sm:$0xff]
    %v2391 = vld [vmem:[#allocation8 + $0x130] sm:$0xff]
    %v2392 = vld [vmem:[#allocation8 + $0x138] sm:$0xff]
    %v2393 = vld [vmem:[#allocation8 + $0x140] sm:$0xff]
    %v2394 = vld [vmem:[#allocation8 + $0x148] sm:$0xff]
    %v2395 = vld [vmem:[#allocation8 + $0x150] sm:$0xff]
    %v2396 = vld [vmem:[#allocation8 + $0x158] sm:$0xff]
    %v2397 = vld [vmem:[#allocation8 + $0x160] sm:$0xff]
    %v2398 = vld [vmem:[#allocation8 + $0x168] sm:$0xff]
    %v2399 = vld [vmem:[#allocation8 + $0x170] sm:$0xff]
    %v2400 = vld [vmem:[#allocation8 + $0x178] sm:$0xff]
    %v2401 = vld [vmem:[#allocation8 + $0x180] sm:$0xff]
    %v2402 = vld [vmem:[#allocation8 + $0x188] sm:$0xff]
    %v2403 = vld [vmem:[#allocation8 + $0x190] sm:$0xff]
    %v2404 = vld [vmem:[#allocation8 + $0x198] sm:$0xff]
    %v2405 = vld [vmem:[#allocation8 + $0x1a0] sm:$0xff]
    %v2406 = vld [vmem:[#allocation8 + $0x1a8] sm:$0xff]
    %v2407 = vld [vmem:[#allocation8 + $0x1b0] sm:$0xff]
    %v2408 = vld [vmem:[#allocation8 + $0x1b8] sm:$0xff]
    %v2409 = vld [vmem:[#allocation8 + $0x1c0] sm:$0xff]
    %v2410 = vld [vmem:[#allocation8 + $0x1c8] sm:$0xff]
    %v2411 = vld [vmem:[#allocation8 + $0x1d0] sm:$0xff]
    %v2412 = vld [vmem:[#allocation8 + $0x1d8] sm:$0xff]
    %v2413 = vld [vmem:[#allocation8 + $0x1e0] sm:$0xff]
    %v2414 = vld [vmem:[#allocation8 + $0x1e8] sm:$0xff]
    %v2415 = vld [vmem:[#allocation8 + $0x1f0] sm:$0xff]
    %v2416 = vld [vmem:[#allocation8 + $0x1f8] sm:$0xff]
    %v2417 = vld [vmem:[#allocation8 + $0x200] sm:$0xff]
    %v2418 = vld [vmem:[#allocation8 + $0x208] sm:$0xff]
    %v2419 = vld [vmem:[#allocation8 + $0x210] sm:$0xff]
    %v2420 = vld [vmem:[#allocation8 + $0x218] sm:$0xff]
    %v2421 = vld [vmem:[#allocation8 + $0x220] sm:$0xff]
    %v2422 = vld [vmem:[#allocation8 + $0x228] sm:$0xff]
    %v2423 = vld [vmem:[#allocation8 + $0x230] sm:$0xff]
    %v2424 = vld [vmem:[#allocation8 + $0x238] sm:$0xff]
    %v2425 = vld [vmem:[#allocation8 + $0x240] sm:$0xff]
    %v2426 = vld [vmem:[#allocation8 + $0x248] sm:$0xff]
    %v2427 = vld [vmem:[#allocation8 + $0x250] sm:$0xff]
    %v2428 = vld [vmem:[#allocation8 + $0x258] sm:$0xff]
    %v2429 = vld [vmem:[#allocation8 + $0x260] sm:$0xff]
    %v2430 = vld [vmem:[#allocation8 + $0x268] sm:$0xff]
    %v2431 = vld [vmem:[#allocation8 + $0x270] sm:$0xff]
    %v2432 = vld [vmem:[#allocation8 + $0x278] sm:$0xff]
    %v2433 = vld [vmem:[#allocation8 + $0x280] sm:$0xff]
    %v2434 = vld [vmem:[#allocation8 + $0x288] sm:$0xff]
    %v2435 = vld [vmem:[#allocation8 + $0x290] sm:$0xff]
    %v2436 = vld [vmem:[#allocation8 + $0x298] sm:$0xff]
    %v2437 = vld [vmem:[#allocation8 + $0x2a0] sm:$0xff]
    %v2438 = vld [vmem:[#allocation8 + $0x2a8] sm:$0xff]
    %v2439 = vld [vmem:[#allocation8 + $0x2b0] sm:$0xff]
    %v2440 = vld [vmem:[#allocation8 + $0x2b8] sm:$0xff]
    %v2441 = vld [vmem:[#allocation8 + $0x2c0] sm:$0xff]
    %v2442 = vld [vmem:[#allocation8 + $0x2c8] sm:$0xff]
    %v2443 = vld [vmem:[#allocation8 + $0x2d0] sm:$0xff]
    %v2444 = vld [vmem:[#allocation8 + $0x2d8] sm:$0xff]
    %v2445 = vld [vmem:[#allocation8 + $0x2e0] sm:$0xff]
    %v2446 = vld [vmem:[#allocation8 + $0x2e8] sm:$0xff]
    %v2447 = vld [vmem:[#allocation8 + $0x2f0] sm:$0xff]
    %v2448 = vld [vmem:[#allocation8 + $0x2f8] sm:$0xff]
    %v2449 = vld [vmem:[#allocation8 + $0x300] sm:$0xff]
    %v2450 = vld [vmem:[#allocation8 + $0x308] sm:$0xff]
    %v2451 = vld [vmem:[#allocation8 + $0x310] sm:$0xff]
    %v2452 = vld [vmem:[#allocation8 + $0x318] sm:$0xff]
    %v2453 = vld [vmem:[#allocation8 + $0x320] sm:$0xff]
    %v2454 = vld [vmem:[#allocation8 + $0x328] sm:$0xff]
    %v2455 = vld [vmem:[#allocation8 + $0x330] sm:$0xff]
    %v2456 = vld [vmem:[#allocation8 + $0x338] sm:$0xff]
    %v2457 = vld [vmem:[#allocation8 + $0x340] sm:$0xff]
    %v2458 = vld [vmem:[#allocation8 + $0x348] sm:$0xff]
    %v2459 = vld [vmem:[#allocation8 + $0x350] sm:$0xff]
    %v2460 = vld [vmem:[#allocation8 + $0x358] sm:$0xff]
    %v2461 = vld [vmem:[#allocation8 + $0x360] sm:$0xff]
    %v2462 = vld [vmem:[#allocation8 + $0x368] sm:$0xff]
    %v2463 = vld [vmem:[#allocation8 + $0x370] sm:$0xff]
    %v2464 = vld [vmem:[#allocation8 + $0x378] sm:$0xff]
    %v2465 = vld [vmem:[#allocation8 + $0x380] sm:$0xff]
    %v2466 = vld [vmem:[#allocation8 + $0x388] sm:$0xff]
    %v2467 = vld [vmem:[#allocation8 + $0x390] sm:$0xff]
    %v2468 = vld [vmem:[#allocation8 + $0x398] sm:$0xff]
    %v2469 = vld [vmem:[#allocation8 + $0x3a0] sm:$0xff]
    %v2470 = vld [vmem:[#allocation8 + $0x3a8] sm:$0xff]
    %v2471 = vld [vmem:[#allocation8 + $0x3b0] sm:$0xff]
    %v2472 = vld [vmem:[#allocation8 + $0x3b8] sm:$0xff]
    %v2473 = vld [vmem:[#allocation8 + $0x3c0] sm:$0xff]
    %v2474 = vld [vmem:[#allocation8 + $0x3c8] sm:$0xff]
    %v2475 = vld [vmem:[#allocation8 + $0x3d0] sm:$0xff]
    %v2476 = vld [vmem:[#allocation8 + $0x3d8] sm:$0xff]
    %v2477 = vld [vmem:[#allocation8 + $0x3e0] sm:$0xff]
    %v2478 = vld [vmem:[#allocation8 + $0x3e8] sm:$0xff]
    %v2479 = vld [vmem:[#allocation8 + $0x3f0] sm:$0xff]
    %v2480 = vld [vmem:[#allocation8 + $0x3f8] sm:$0xff]
    %v2481 = vld [vmem:[#allocation8 + $0x400] sm:$0xff]
    %v2482 = vld [vmem:[#allocation8 + $0x408] sm:$0xff]
    %v2483 = vld [vmem:[#allocation8 + $0x410] sm:$0xff]
    %v2484 = vld [vmem:[#allocation8 + $0x418] sm:$0xff]
    %v2485 = vld [vmem:[#allocation8 + $0x420] sm:$0xff]
    %v2486 = vld [vmem:[#allocation8 + $0x428] sm:$0xff]
    %v2487 = vld [vmem:[#allocation8 + $0x430] sm:$0xff]
    %v2488 = vld [vmem:[#allocation8 + $0x438] sm:$0xff]
    %v2489 = vld [vmem:[#allocation8 + $0x440] sm:$0xff]
    %v2490 = vld [vmem:[#allocation8 + $0x448] sm:$0xff]
    %v2491 = vld [vmem:[#allocation8 + $0x450] sm:$0xff]
    %v2492 = vld [vmem:[#allocation8 + $0x458] sm:$0xff]
    %v2493 = vld [vmem:[#allocation8 + $0x460] sm:$0xff]
    %v2494 = vld [vmem:[#allocation8 + $0x468] sm:$0xff]
    %v2495 = vld [vmem:[#allocation8 + $0x470] sm:$0xff]
    %v2496 = vld [vmem:[#allocation8 + $0x478] sm:$0xff]
    %v2497 = vld [vmem:[#allocation8 + $0x480] sm:$0xff]
    %v2498 = vld [vmem:[#allocation8 + $0x488] sm:$0xff]
    %v2499 = vld [vmem:[#allocation8 + $0x490] sm:$0xff]
    %v2500 = vld [vmem:[#allocation8 + $0x498] sm:$0xff]
    %v2501 = vld [vmem:[#allocation8 + $0x4a0] sm:$0xff]
    %v2502 = vld [vmem:[#allocation8 + $0x4a8] sm:$0xff]
    %v2503 = vld [vmem:[#allocation8 + $0x4b0] sm:$0xff]
    %v2504 = vld [vmem:[#allocation8 + $0x4b8] sm:$0xff]
    %v2505 = vld [vmem:[#allocation8 + $0x4c0] sm:$0xff]
    %v2506 = vld [vmem:[#allocation8 + $0x4c8] sm:$0xff]
    %v2507 = vld [vmem:[#allocation8 + $0x4d0] sm:$0xff]
    %v2508 = vld [vmem:[#allocation8 + $0x4d8] sm:$0xff]
    %v2509 = vld [vmem:[#allocation8 + $0x4e0] sm:$0xff]
    %v2510 = vld [vmem:[#allocation8 + $0x4e8] sm:$0xff]
    %v2511 = vld [vmem:[#allocation8 + $0x4f0] sm:$0xff]
    %v2512 = vld [vmem:[#allocation8 + $0x4f8] sm:$0xff]
    %v2513 = vld [vmem:[#allocation8 + $0x500] sm:$0xff]
    %v2514 = vld [vmem:[#allocation8 + $0x508] sm:$0xff]
    %v2515 = vld [vmem:[#allocation8 + $0x510] sm:$0xff]
    %v2516 = vld [vmem:[#allocation8 + $0x518] sm:$0xff]
    %v2517 = vld [vmem:[#allocation8 + $0x520] sm:$0xff]
    %v2518 = vld [vmem:[#allocation8 + $0x528] sm:$0xff]
    %v2519 = vld [vmem:[#allocation8 + $0x530] sm:$0xff]
    %v2520 = vld [vmem:[#allocation8 + $0x538] sm:$0xff]
    %v2521 = vld [vmem:[#allocation8 + $0x540] sm:$0xff]
    %v2522 = vld [vmem:[#allocation8 + $0x548] sm:$0xff]
    %v2523 = vld [vmem:[#allocation8 + $0x550] sm:$0xff]
    %v2524 = vld [vmem:[#allocation8 + $0x558] sm:$0xff]
    %v2525 = vld [vmem:[#allocation8 + $0x560] sm:$0xff]
    %v2526 = vld [vmem:[#allocation8 + $0x568] sm:$0xff]
    %v2527 = vld [vmem:[#allocation8 + $0x570] sm:$0xff]
    %v2528 = vld [vmem:[#allocation8 + $0x578] sm:$0xff]
    %v2529 = vld [vmem:[#allocation8 + $0x580] sm:$0xff]
    %v2530 = vld [vmem:[#allocation8 + $0x588] sm:$0xff]
    %v2531 = vld [vmem:[#allocation8 + $0x590] sm:$0xff]
    %v2532 = vld [vmem:[#allocation8 + $0x598] sm:$0xff]
    %v2533 = vld [vmem:[#allocation8 + $0x5a0] sm:$0xff]
    %v2534 = vld [vmem:[#allocation8 + $0x5a8] sm:$0xff]
    %v2535 = vld [vmem:[#allocation8 + $0x5b0] sm:$0xff]
    %v2536 = vld [vmem:[#allocation8 + $0x5b8] sm:$0xff]
    %v2537 = vld [vmem:[#allocation8 + $0x5c0] sm:$0xff]
    %v2538 = vld [vmem:[#allocation8 + $0x5c8] sm:$0xff]
    %v2539 = vld [vmem:[#allocation8 + $0x5d0] sm:$0xff]
    %v2540 = vld [vmem:[#allocation8 + $0x5d8] sm:$0xff]
    %v2541 = vld [vmem:[#allocation8 + $0x5e0] sm:$0xff]
    %v2542 = vld [vmem:[#allocation8 + $0x5e8] sm:$0xff]
    %v2543 = vld [vmem:[#allocation8 + $0x5f0] sm:$0xff]
    %v2544 = vld [vmem:[#allocation8 + $0x5f8] sm:$0xff]
    %v2545 = vld [vmem:[#allocation8 + $0x600] sm:$0xff]
    %v2546 = vld [vmem:[#allocation8 + $0x608] sm:$0xff]
    %v2547 = vld [vmem:[#allocation8 + $0x610] sm:$0xff]
    %v2548 = vld [vmem:[#allocation8 + $0x618] sm:$0xff]
    %v2549 = vld [vmem:[#allocation8 + $0x620] sm:$0xff]
    %v2550 = vld [vmem:[#allocation8 + $0x628] sm:$0xff]
    %v2551 = vld [vmem:[#allocation8 + $0x630] sm:$0xff]
    %v2552 = vld [vmem:[#allocation8 + $0x638] sm:$0xff]
    %v2553 = vld [vmem:[#allocation8 + $0x640] sm:$0xff]
    %v2554 = vld [vmem:[#allocation8 + $0x648] sm:$0xff]
    %v2555 = vld [vmem:[#allocation8 + $0x650] sm:$0xff]
    %v2556 = vld [vmem:[#allocation8 + $0x658] sm:$0xff]
    %v2557 = vld [vmem:[#allocation8 + $0x660] sm:$0xff]
    %v2558 = vld [vmem:[#allocation8 + $0x668] sm:$0xff]
    %v2559 = vld [vmem:[#allocation8 + $0x670] sm:$0xff]
    %v2560 = vld [vmem:[#allocation8 + $0x678] sm:$0xff]
    %v2561 = vld [vmem:[#allocation8 + $0x680] sm:$0xff]
    %v2562 = vld [vmem:[#allocation8 + $0x688] sm:$0xff]
    %v2563 = vld [vmem:[#allocation8 + $0x690] sm:$0xff]
    %v2564 = vld [vmem:[#allocation8 + $0x698] sm:$0xff]
    %v2565 = vld [vmem:[#allocation8 + $0x6a0] sm:$0xff]
    %v2566 = vld [vmem:[#allocation8 + $0x6a8] sm:$0xff]
    %v2567 = vld [vmem:[#allocation8 + $0x6b0] sm:$0xff]
    %v2568 = vld [vmem:[#allocation8 + $0x6b8] sm:$0xff]
    %v2569 = vld [vmem:[#allocation8 + $0x6c0] sm:$0xff]
    %v2570 = vld [vmem:[#allocation8 + $0x6c8] sm:$0xff]
    %v2571 = vld [vmem:[#allocation8 + $0x6d0] sm:$0xff]
    %v2572 = vld [vmem:[#allocation8 + $0x6d8] sm:$0xff]
    %v2573 = vld [vmem:[#allocation8 + $0x6e0] sm:$0xff]
    %v2574 = vld [vmem:[#allocation8 + $0x6e8] sm:$0xff]
    %v2575 = vld [vmem:[#allocation8 + $0x6f0] sm:$0xff]
    %v2576 = vld [vmem:[#allocation8 + $0x6f8] sm:$0xff]
    %v2577 = vld [vmem:[#allocation8 + $0x700] sm:$0xff]
    %v2578 = vld [vmem:[#allocation8 + $0x708] sm:$0xff]
    %v2579 = vld [vmem:[#allocation8 + $0x710] sm:$0xff]
    %v2580 = vld [vmem:[#allocation8 + $0x718] sm:$0xff]
    %v2581 = vld [vmem:[#allocation8 + $0x720] sm:$0xff]
    %v2582 = vld [vmem:[#allocation8 + $0x728] sm:$0xff]
    %v2583 = vld [vmem:[#allocation8 + $0x730] sm:$0xff]
    %v2584 = vld [vmem:[#allocation8 + $0x738] sm:$0xff]
    %v2585 = vld [vmem:[#allocation8 + $0x740] sm:$0xff]
    %v2586 = vld [vmem:[#allocation8 + $0x748] sm:$0xff]
    %v2587 = vld [vmem:[#allocation8 + $0x750] sm:$0xff]
    %v2588 = vld [vmem:[#allocation8 + $0x758] sm:$0xff]
    %v2589 = vld [vmem:[#allocation8 + $0x760] sm:$0xff]
    %v2590 = vld [vmem:[#allocation8 + $0x768] sm:$0xff]
    %v2591 = vld [vmem:[#allocation8 + $0x770] sm:$0xff]
    %v2592 = vld [vmem:[#allocation8 + $0x778] sm:$0xff]
    %v2593 = vld [vmem:[#allocation8 + $0x780] sm:$0xff]
    %v2594 = vld [vmem:[#allocation8 + $0x788] sm:$0xff]
    %v2595 = vld [vmem:[#allocation8 + $0x790] sm:$0xff]
    %v2596 = vld [vmem:[#allocation8 + $0x798] sm:$0xff]
    %v2597 = vld [vmem:[#allocation8 + $0x7a0] sm:$0xff]
    %v2598 = vld [vmem:[#allocation8 + $0x7a8] sm:$0xff]
    %v2599 = vld [vmem:[#allocation8 + $0x7b0] sm:$0xff]
    %v2600 = vld [vmem:[#allocation8 + $0x7b8] sm:$0xff]
    %v2601 = vld [vmem:[#allocation8 + $0x7c0] sm:$0xff]
    %v2602 = vld [vmem:[#allocation8 + $0x7c8] sm:$0xff]
    %v2603 = vld [vmem:[#allocation8 + $0x7d0] sm:$0xff]
    %v2604 = vld [vmem:[#allocation8 + $0x7d8] sm:$0xff]
    %v2605 = vld [vmem:[#allocation8 + $0x7e0] sm:$0xff]
    %v2606 = vld [vmem:[#allocation8 + $0x7e8] sm:$0xff]
    %v2607 = vld [vmem:[#allocation8 + $0x7f0] sm:$0xff]
    %v2608 = vld [vmem:[#allocation8 + $0x7f8] sm:$0xff]
    %v2609 = vld [vmem:[#allocation8 + $0x800] sm:$0xff]
    %v2610 = vld [vmem:[#allocation8 + $0x808] sm:$0xff]
    %v2611 = vld [vmem:[#allocation8 + $0x810] sm:$0xff]
    %v2612 = vld [vmem:[#allocation8 + $0x818] sm:$0xff]
    %v2613 = vld [vmem:[#allocation8 + $0x820] sm:$0xff]
    %v2614 = vld [vmem:[#allocation8 + $0x828] sm:$0xff]
    %v2615 = vld [vmem:[#allocation8 + $0x830] sm:$0xff]
    %v2616 = vld [vmem:[#allocation8 + $0x838] sm:$0xff]
    %v2617 = vld [vmem:[#allocation8 + $0x840] sm:$0xff]
    %v2618 = vld [vmem:[#allocation8 + $0x848] sm:$0xff]
    %v2619 = vld [vmem:[#allocation8 + $0x850] sm:$0xff]
    %v2620 = vld [vmem:[#allocation8 + $0x858] sm:$0xff]
    %v2621 = vld [vmem:[#allocation8 + $0x860] sm:$0xff]
    %v2622 = vld [vmem:[#allocation8 + $0x868] sm:$0xff]
    %v2623 = vld [vmem:[#allocation8 + $0x870] sm:$0xff]
    %v2624 = vld [vmem:[#allocation8 + $0x878] sm:$0xff]
    %v2625 = vld [vmem:[#allocation8 + $0x880] sm:$0xff]
    %v2626 = vld [vmem:[#allocation8 + $0x888] sm:$0xff]
    %v2627 = vld [vmem:[#allocation8 + $0x890] sm:$0xff]
    %v2628 = vld [vmem:[#allocation8 + $0x898] sm:$0xff]
    %v2629 = vld [vmem:[#allocation8 + $0x8a0] sm:$0xff]
    %v2630 = vld [vmem:[#allocation8 + $0x8a8] sm:$0xff]
    %v2631 = vld [vmem:[#allocation8 + $0x8b0] sm:$0xff]
    %v2632 = vld [vmem:[#allocation8 + $0x8b8] sm:$0xff]
    %v2633 = vld [vmem:[#allocation8 + $0x8c0] sm:$0xff]
    %v2634 = vld [vmem:[#allocation8 + $0x8c8] sm:$0xff]
    %v2635 = vld [vmem:[#allocation8 + $0x8d0] sm:$0xff]
    %v2636 = vld [vmem:[#allocation8 + $0x8d8] sm:$0xff]
    %v2637 = vld [vmem:[#allocation8 + $0x8e0] sm:$0xff]
    %v2638 = vld [vmem:[#allocation8 + $0x8e8] sm:$0xff]
    %v2639 = vld [vmem:[#allocation8 + $0x8f0] sm:$0xff]
    %v2640 = vld [vmem:[#allocation8 + $0x8f8] sm:$0xff]
    %v2641 = vld [vmem:[#allocation8 + $0x900] sm:$0xff]
    %v2642 = vld [vmem:[#allocation8 + $0x908] sm:$0xff]
    %v2643 = vld [vmem:[#allocation8 + $0x910] sm:$0xff]
    %v2644 = vld [vmem:[#allocation8 + $0x918] sm:$0xff]
    %v2645 = vld [vmem:[#allocation8 + $0x920] sm:$0xff]
    %v2646 = vld [vmem:[#allocation8 + $0x928] sm:$0xff]
    %v2647 = vld [vmem:[#allocation8 + $0x930] sm:$0xff]
    %v2648 = vld [vmem:[#allocation8 + $0x938] sm:$0xff]
    %v2649 = vld [vmem:[#allocation8 + $0x940] sm:$0xff]
    %v2650 = vld [vmem:[#allocation8 + $0x948] sm:$0xff]
    %v2651 = vld [vmem:[#allocation8 + $0x950] sm:$0xff]
    %v2652 = vld [vmem:[#allocation8 + $0x958] sm:$0xff]
    %v2653 = vld [vmem:[#allocation8 + $0x960] sm:$0xff]
    %v2654 = vld [vmem:[#allocation8 + $0x968] sm:$0xff]
    %v2655 = vld [vmem:[#allocation8 + $0x970] sm:$0xff]
    %v2656 = vld [vmem:[#allocation8 + $0x978] sm:$0xff]
    %v2657 = vld [vmem:[#allocation8 + $0x980] sm:$0xff]
    %v2658 = vld [vmem:[#allocation8 + $0x988] sm:$0xff]
    %v2659 = vld [vmem:[#allocation8 + $0x990] sm:$0xff]
    %v2660 = vld [vmem:[#allocation8 + $0x998] sm:$0xff]
    %v2661 = vld [vmem:[#allocation8 + $0x9a0] sm:$0xff]
    %v2662 = vld [vmem:[#allocation8 + $0x9a8] sm:$0xff]
    %v2663 = vld [vmem:[#allocation8 + $0x9b0] sm:$0xff]
    %v2664 = vld [vmem:[#allocation8 + $0x9b8] sm:$0xff]
    %v2665 = vld [vmem:[#allocation8 + $0x9c0] sm:$0xff]
    %v2666 = vld [vmem:[#allocation8 + $0x9c8] sm:$0xff]
    %v2667 = vld [vmem:[#allocation8 + $0x9d0] sm:$0xff]
    %v2668 = vld [vmem:[#allocation8 + $0x9d8] sm:$0xff]
    %v2669 = vld [vmem:[#allocation8 + $0x9e0] sm:$0xff]
    %v2670 = vld [vmem:[#allocation8 + $0x9e8] sm:$0xff]
    %v2671 = vld [vmem:[#allocation8 + $0x9f0] sm:$0xff]
    %v2672 = vld [vmem:[#allocation8 + $0x9f8] sm:$0xff]
    %v2673 = vld [vmem:[#allocation8 + $0xa00] sm:$0xff]
    %v2674 = vld [vmem:[#allocation8 + $0xa08] sm:$0xff]
    %v2675 = vld [vmem:[#allocation8 + $0xa10] sm:$0xff]
    %v2676 = vld [vmem:[#allocation8 + $0xa18] sm:$0xff]
    %v2677 = vld [vmem:[#allocation8 + $0xa20] sm:$0xff]
    %v2678 = vld [vmem:[#allocation8 + $0xa28] sm:$0xff]
    %v2679 = vld [vmem:[#allocation8 + $0xa30] sm:$0xff]
    %v2680 = vld [vmem:[#allocation8 + $0xa38] sm:$0xff]
    %v2681 = vld [vmem:[#allocation8 + $0xa40] sm:$0xff]
    %v2682 = vld [vmem:[#allocation8 + $0xa48] sm:$0xff]
    %v2683 = vld [vmem:[#allocation8 + $0xa50] sm:$0xff]
    %v2684 = vld [vmem:[#allocation8 + $0xa58] sm:$0xff]
    %v2685 = vld [vmem:[#allocation8 + $0xa60] sm:$0xff]
    %v2686 = vld [vmem:[#allocation8 + $0xa68] sm:$0xff]
    %v2687 = vld [vmem:[#allocation8 + $0xa70] sm:$0xff]
    %v2688 = vld [vmem:[#allocation8 + $0xa78] sm:$0xff]
    %v2689 = vld [vmem:[#allocation8 + $0xa80] sm:$0xff]
    %v2690 = vld [vmem:[#allocation8 + $0xa88] sm:$0xff]
    %v2691 = vld [vmem:[#allocation8 + $0xa90] sm:$0xff]
    %v2692 = vld [vmem:[#allocation8 + $0xa98] sm:$0xff]
    %v2693 = vld [vmem:[#allocation8 + $0xaa0] sm:$0xff]
    %v2694 = vld [vmem:[#allocation8 + $0xaa8] sm:$0xff]
    %v2695 = vld [vmem:[#allocation8 + $0xab0] sm:$0xff]
    %v2696 = vld [vmem:[#allocation8 + $0xab8] sm:$0xff]
    %v2697 = vld [vmem:[#allocation8 + $0xac0] sm:$0xff]
    %v2698 = vld [vmem:[#allocation8 + $0xac8] sm:$0xff]
    %v2699 = vld [vmem:[#allocation8 + $0xad0] sm:$0xff]
    %v2700 = vld [vmem:[#allocation8 + $0xad8] sm:$0xff]
    %v2701 = vld [vmem:[#allocation8 + $0xae0] sm:$0xff]
    %v2702 = vld [vmem:[#allocation8 + $0xae8] sm:$0xff]
    %v2703 = vld [vmem:[#allocation8 + $0xaf0] sm:$0xff]
    %v2704 = vld [vmem:[#allocation8 + $0xaf8] sm:$0xff]
    %v2705 = vld [vmem:[#allocation8 + $0xb00] sm:$0xff]
    %v2706 = vld [vmem:[#allocation8 + $0xb08] sm:$0xff]
    %v2707 = vld [vmem:[#allocation8 + $0xb10] sm:$0xff]
    %v2708 = vld [vmem:[#allocation8 + $0xb18] sm:$0xff]
    %v2709 = vld [vmem:[#allocation8 + $0xb20] sm:$0xff]
    %v2710 = vld [vmem:[#allocation8 + $0xb28] sm:$0xff]
    %v2711 = vld [vmem:[#allocation8 + $0xb30] sm:$0xff]
    %v2712 = vld [vmem:[#allocation8 + $0xb38] sm:$0xff]
    %v2713 = vld [vmem:[#allocation8 + $0xb40] sm:$0xff]
    %v2714 = vld [vmem:[#allocation8 + $0xb48] sm:$0xff]
    %v2715 = vld [vmem:[#allocation8 + $0xb50] sm:$0xff]
    %v2716 = vld [vmem:[#allocation8 + $0xb58] sm:$0xff]
    %v2717 = vld [vmem:[#allocation8 + $0xb60] sm:$0xff]
    %v2718 = vld [vmem:[#allocation8 + $0xb68] sm:$0xff]
    %v2719 = vld [vmem:[#allocation8 + $0xb70] sm:$0xff]
    %v2720 = vld [vmem:[#allocation8 + $0xb78] sm:$0xff]
    %v2721 = vld [vmem:[#allocation8 + $0xb80] sm:$0xff]
    %v2722 = vld [vmem:[#allocation8 + $0xb88] sm:$0xff]
    %v2723 = vld [vmem:[#allocation8 + $0xb90] sm:$0xff]
    %v2724 = vld [vmem:[#allocation8 + $0xb98] sm:$0xff]
    %v2725 = vld [vmem:[#allocation8 + $0xba0] sm:$0xff]
    %v2726 = vld [vmem:[#allocation8 + $0xba8] sm:$0xff]
    %v2727 = vld [vmem:[#allocation8 + $0xbb0] sm:$0xff]
    %v2728 = vld [vmem:[#allocation8 + $0xbb8] sm:$0xff]
    %v2729 = vld [vmem:[#allocation8 + $0xbc0] sm:$0xff]
    %v2730 = vld [vmem:[#allocation8 + $0xbc8] sm:$0xff]
    %v2731 = vld [vmem:[#allocation8 + $0xbd0] sm:$0xff]
    %v2732 = vld [vmem:[#allocation8 + $0xbd8] sm:$0xff]
    %v2733 = vld [vmem:[#allocation8 + $0xbe0] sm:$0xff]
    %v2734 = vld [vmem:[#allocation8 + $0xbe8] sm:$0xff]
    %v2735 = vld [vmem:[#allocation8 + $0xbf0] sm:$0xff]
    %v2736 = vld [vmem:[#allocation8 + $0xbf8] sm:$0xff]
    %v2737 = vld [vmem:[#allocation8 + $0xc00] sm:$0xff]
    %v2738 = vld [vmem:[#allocation8 + $0xc08] sm:$0xff]
    %v2739 = vld [vmem:[#allocation8 + $0xc10] sm:$0xff]
    %v2740 = vld [vmem:[#allocation8 + $0xc18] sm:$0xff]
    %v2741 = vld [vmem:[#allocation8 + $0xc20] sm:$0xff]
    %v2742 = vld [vmem:[#allocation8 + $0xc28] sm:$0xff]
    %v2743 = vld [vmem:[#allocation8 + $0xc30] sm:$0xff]
    %v2744 = vld [vmem:[#allocation8 + $0xc38] sm:$0xff]
    %v2745 = vld [vmem:[#allocation8 + $0xc40] sm:$0xff]
    %v2746 = vld [vmem:[#allocation8 + $0xc48] sm:$0xff]
    %v2747 = vld [vmem:[#allocation8 + $0xc50] sm:$0xff]
    %v2748 = vld [vmem:[#allocation8 + $0xc58] sm:$0xff]
    %v2749 = vld [vmem:[#allocation8 + $0xc60] sm:$0xff]
    %v2750 = vld [vmem:[#allocation8 + $0xc68] sm:$0xff]
    %v2751 = vld [vmem:[#allocation8 + $0xc70] sm:$0xff]
    %v2752 = vld [vmem:[#allocation8 + $0xc78] sm:$0xff]
    %v2753 = vld [vmem:[#allocation8 + $0xc80] sm:$0xff]
    %v2754 = vld [vmem:[#allocation8 + $0xc88] sm:$0xff]
    %v2755 = vld [vmem:[#allocation8 + $0xc90] sm:$0xff]
    %v2756 = vld [vmem:[#allocation8 + $0xc98] sm:$0xff]
    %v2757 = vld [vmem:[#allocation8 + $0xca0] sm:$0xff]
    %v2758 = vld [vmem:[#allocation8 + $0xca8] sm:$0xff]
    %v2759 = vld [vmem:[#allocation8 + $0xcb0] sm:$0xff]
    %v2760 = vld [vmem:[#allocation8 + $0xcb8] sm:$0xff]
    %v2761 = vld [vmem:[#allocation8 + $0xcc0] sm:$0xff]
    %v2762 = vld [vmem:[#allocation8 + $0xcc8] sm:$0xff]
    %v2763 = vld [vmem:[#allocation8 + $0xcd0] sm:$0xff]
    %v2764 = vld [vmem:[#allocation8 + $0xcd8] sm:$0xff]
    %v2765 = vld [vmem:[#allocation8 + $0xce0] sm:$0xff]
    %v2766 = vld [vmem:[#allocation8 + $0xce8] sm:$0xff]
    %v2767 = vld [vmem:[#allocation8 + $0xcf0] sm:$0xff]
    %v2768 = vld [vmem:[#allocation8 + $0xcf8] sm:$0xff]
    %v2769 = vld [vmem:[#allocation8 + $0xd00] sm:$0xff]
    %v2770 = vld [vmem:[#allocation8 + $0xd08] sm:$0xff]
    %v2771 = vld [vmem:[#allocation8 + $0xd10] sm:$0xff]
    %v2772 = vld [vmem:[#allocation8 + $0xd18] sm:$0xff]
    %v2773 = vld [vmem:[#allocation8 + $0xd20] sm:$0xff]
    %v2774 = vld [vmem:[#allocation8 + $0xd28] sm:$0xff]
    %v2775 = vld [vmem:[#allocation8 + $0xd30] sm:$0xff]
    %v2776 = vld [vmem:[#allocation8 + $0xd38] sm:$0xff]
    %v2777 = vld [vmem:[#allocation8 + $0xd40] sm:$0xff]
    %v2778 = vld [vmem:[#allocation8 + $0xd48] sm:$0xff]
    %v2779 = vld [vmem:[#allocation8 + $0xd50] sm:$0xff]
    %v2780 = vld [vmem:[#allocation8 + $0xd58] sm:$0xff]
    %v2781 = vld [vmem:[#allocation8 + $0xd60] sm:$0xff]
    %v2782 = vld [vmem:[#allocation8 + $0xd68] sm:$0xff]
    %v2783 = vld [vmem:[#allocation8 + $0xd70] sm:$0xff]
    %v2784 = vld [vmem:[#allocation8 + $0xd78] sm:$0xff]
    %v2785 = vld [vmem:[#allocation8 + $0xd80] sm:$0xff]
    %v2786 = vld [vmem:[#allocation8 + $0xd88] sm:$0xff]
    %v2787 = vld [vmem:[#allocation8 + $0xd90] sm:$0xff]
    %v2788 = vld [vmem:[#allocation8 + $0xd98] sm:$0xff]
    %v2789 = vld [vmem:[#allocation8 + $0xda0] sm:$0xff]
    %v2790 = vld [vmem:[#allocation8 + $0xda8] sm:$0xff]
    %v2791 = vld [vmem:[#allocation8 + $0xdb0] sm:$0xff]
    %v2792 = vld [vmem:[#allocation8 + $0xdb8] sm:$0xff]
    %v2793 = vld [vmem:[#allocation8 + $0xdc0] sm:$0xff]
    %v2794 = vld [vmem:[#allocation8 + $0xdc8] sm:$0xff]
    %v2795 = vld [vmem:[#allocation8 + $0xdd0] sm:$0xff]
    %v2796 = vld [vmem:[#allocation8 + $0xdd8] sm:$0xff]
    %v2797 = vld [vmem:[#allocation8 + $0xde0] sm:$0xff]
    %v2798 = vld [vmem:[#allocation8 + $0xde8] sm:$0xff]
    %v2799 = vld [vmem:[#allocation8 + $0xdf0] sm:$0xff]
    %v2800 = vld [vmem:[#allocation8 + $0xdf8] sm:$0xff]
    %v2801 = vld [vmem:[#allocation8 + $0xe00] sm:$0xff]
    %v2802 = vld [vmem:[#allocation8 + $0xe08] sm:$0xff]
    %v2803 = vld [vmem:[#allocation8 + $0xe10] sm:$0xff]
    %v2804 = vld [vmem:[#allocation8 + $0xe18] sm:$0xff]
    %v2805 = vld [vmem:[#allocation8 + $0xe20] sm:$0xff]
    %v2806 = vld [vmem:[#allocation8 + $0xe28] sm:$0xff]
    %v2807 = vld [vmem:[#allocation8 + $0xe30] sm:$0xff]
    %v2808 = vld [vmem:[#allocation8 + $0xe38] sm:$0xff]
    %v2809 = vld [vmem:[#allocation8 + $0xe40] sm:$0xff]
    %v2810 = vld [vmem:[#allocation8 + $0xe48] sm:$0xff]
    %v2811 = vld [vmem:[#allocation8 + $0xe50] sm:$0xff]
    %v2812 = vld [vmem:[#allocation8 + $0xe58] sm:$0xff]
    %v2813 = vld [vmem:[#allocation8 + $0xe60] sm:$0xff]
    %v2814 = vld [vmem:[#allocation8 + $0xe68] sm:$0xff]
    %v2815 = vld [vmem:[#allocation8 + $0xe70] sm:$0xff]
    %v2816 = vld [vmem:[#allocation8 + $0xe78] sm:$0xff]
    %v2817 = vld [vmem:[#allocation8 + $0xe80] sm:$0xff]
    %v2818 = vld [vmem:[#allocation8 + $0xe88] sm:$0xff]
    %v2819 = vld [vmem:[#allocation8 + $0xe90] sm:$0xff]
    %v2820 = vld [vmem:[#allocation8 + $0xe98] sm:$0xff]
    %v2821 = vld [vmem:[#allocation8 + $0xea0] sm:$0xff]
    %v2822 = vld [vmem:[#allocation8 + $0xea8] sm:$0xff]
    %v2823 = vld [vmem:[#allocation8 + $0xeb0] sm:$0xff]
    %v2824 = vld [vmem:[#allocation8 + $0xeb8] sm:$0xff]
    %v2825 = vld [vmem:[#allocation8 + $0xec0] sm:$0xff]
    %v2826 = vld [vmem:[#allocation8 + $0xec8] sm:$0xff]
    %v2827 = vld [vmem:[#allocation8 + $0xed0] sm:$0xff]
    %v2828 = vld [vmem:[#allocation8 + $0xed8] sm:$0xff]
    %v2829 = vld [vmem:[#allocation8 + $0xee0] sm:$0xff]
    %v2830 = vld [vmem:[#allocation8 + $0xee8] sm:$0xff]
    %v2831 = vld [vmem:[#allocation8 + $0xef0] sm:$0xff]
    %v2832 = vld [vmem:[#allocation8 + $0xef8] sm:$0xff]
    %v2833 = vld [vmem:[#allocation8 + $0xf00] sm:$0xff]
    %v2834 = vld [vmem:[#allocation8 + $0xf08] sm:$0xff]
    %v2835 = vld [vmem:[#allocation8 + $0xf10] sm:$0xff]
    %v2836 = vld [vmem:[#allocation8 + $0xf18] sm:$0xff]
    %v2837 = vld [vmem:[#allocation8 + $0xf20] sm:$0xff]
    %v2838 = vld [vmem:[#allocation8 + $0xf28] sm:$0xff]
    %v2839 = vld [vmem:[#allocation8 + $0xf30] sm:$0xff]
    %v2840 = vld [vmem:[#allocation8 + $0xf38] sm:$0xff]
    %v2841 = vld [vmem:[#allocation8 + $0xf40] sm:$0xff]
    %v2842 = vld [vmem:[#allocation8 + $0xf48] sm:$0xff]
    %v2843 = vld [vmem:[#allocation8 + $0xf50] sm:$0xff]
    %v2844 = vld [vmem:[#allocation8 + $0xf58] sm:$0xff]
    %v2845 = vld [vmem:[#allocation8 + $0xf60] sm:$0xff]
    %v2846 = vld [vmem:[#allocation8 + $0xf68] sm:$0xff]
    %v2847 = vld [vmem:[#allocation8 + $0xf70] sm:$0xff]
    %v2848 = vld [vmem:[#allocation8 + $0xf78] sm:$0xff]
    %v2849 = vld [vmem:[#allocation8 + $0xf80] sm:$0xff]
    %v2850 = vld [vmem:[#allocation8 + $0xf88] sm:$0xff]
    %v2851 = vld [vmem:[#allocation8 + $0xf90] sm:$0xff]
    %v2852 = vld [vmem:[#allocation8 + $0xf98] sm:$0xff]
    %v2853 = vld [vmem:[#allocation8 + $0xfa0] sm:$0xff]
    %v2854 = vld [vmem:[#allocation8 + $0xfa8] sm:$0xff]
    %v2855 = vld [vmem:[#allocation8 + $0xfb0] sm:$0xff]
    %v2856 = vld [vmem:[#allocation8 + $0xfb8] sm:$0xff]
    %v2857 = vld [vmem:[#allocation8 + $0xfc0] sm:$0xff]
    %v2858 = vld [vmem:[#allocation8 + $0xfc8] sm:$0xff]
    %v2859 = vld [vmem:[#allocation8 + $0xfd0] sm:$0xff]
    %v2860 = vld [vmem:[#allocation8 + $0xfd8] sm:$0xff]
    %v2861 = vld [vmem:[#allocation8 + $0xfe0] sm:$0xff]
    %v2862 = vld [vmem:[#allocation8 + $0xfe8] sm:$0xff]
    %v2863 = vld [vmem:[#allocation8 + $0xff0] sm:$0xff]
    %v2864 = vld [vmem:[#allocation8 + $0xff8] sm:$0xff]
    %v2865 = vld [vmem:[#allocation8 + $0x1000] sm:$0xff]
    %v2866 = vld [vmem:[#allocation8 + $0x1008] sm:$0xff]
    %v2867 = vld [vmem:[#allocation8 + $0x1010] sm:$0xff]
    %v2868 = vld [vmem:[#allocation8 + $0x1018] sm:$0xff]
    %v2869 = vld [vmem:[#allocation8 + $0x1020] sm:$0xff]
    %v2870 = vld [vmem:[#allocation8 + $0x1028] sm:$0xff]
    %v2871 = vld [vmem:[#allocation8 + $0x1030] sm:$0xff]
    %v2872 = vld [vmem:[#allocation8 + $0x1038] sm:$0xff]
    %v2873 = vld [vmem:[#allocation8 + $0x1040] sm:$0xff]
    %v2874 = vld [vmem:[#allocation8 + $0x1048] sm:$0xff]
    %v2875 = vld [vmem:[#allocation8 + $0x1050] sm:$0xff]
    %v2876 = vld [vmem:[#allocation8 + $0x1058] sm:$0xff]
    %v2877 = vld [vmem:[#allocation8 + $0x1060] sm:$0xff]
    %v2878 = vld [vmem:[#allocation8 + $0x1068] sm:$0xff]
    %v2879 = vld [vmem:[#allocation8 + $0x1070] sm:$0xff]
    %v2880 = vld [vmem:[#allocation8 + $0x1078] sm:$0xff]
    %v2881 = vld [vmem:[#allocation8 + $0x1080] sm:$0xff]
    %v2882 = vld [vmem:[#allocation8 + $0x1088] sm:$0xff]
    %v2883 = vld [vmem:[#allocation8 + $0x1090] sm:$0xff]
    %v2884 = vld [vmem:[#allocation8 + $0x1098] sm:$0xff]
    %v2885 = vld [vmem:[#allocation8 + $0x10a0] sm:$0xff]
    %v2886 = vld [vmem:[#allocation8 + $0x10a8] sm:$0xff]
    %v2887 = vld [vmem:[#allocation8 + $0x10b0] sm:$0xff]
    %v2888 = vld [vmem:[#allocation8 + $0x10b8] sm:$0xff]
    %v2889 = vld [vmem:[#allocation8 + $0x10c0] sm:$0xff]
    %v2890 = vld [vmem:[#allocation8 + $0x10c8] sm:$0xff]
    %v2891 = vld [vmem:[#allocation8 + $0x10d0] sm:$0xff]
    %v2892 = vld [vmem:[#allocation8 + $0x10d8] sm:$0xff]
    %v2893 = vld [vmem:[#allocation8 + $0x10e0] sm:$0xff]
    %v2894 = vld [vmem:[#allocation8 + $0x10e8] sm:$0xff]
    %v2895 = vld [vmem:[#allocation8 + $0x10f0] sm:$0xff]
    %v2896 = vld [vmem:[#allocation8 + $0x10f8] sm:$0xff]
    %v2897 = vld [vmem:[#allocation8 + $0x1100] sm:$0xff]
    %v2898 = vld [vmem:[#allocation8 + $0x1108] sm:$0xff]
    %v2899 = vld [vmem:[#allocation8 + $0x1110] sm:$0xff]
    %v2900 = vld [vmem:[#allocation8 + $0x1118] sm:$0xff]
    %v2901 = vld [vmem:[#allocation8 + $0x1120] sm:$0xff]
    %v2902 = vld [vmem:[#allocation8 + $0x1128] sm:$0xff]
    %v2903 = vld [vmem:[#allocation8 + $0x1130] sm:$0xff]
    %v2904 = vld [vmem:[#allocation8 + $0x1138] sm:$0xff]
    %v2905 = vld [vmem:[#allocation8 + $0x1140] sm:$0xff]
    %v2906 = vld [vmem:[#allocation8 + $0x1148] sm:$0xff]
    %v2907 = vld [vmem:[#allocation8 + $0x1150] sm:$0xff]
    %v2908 = vld [vmem:[#allocation8 + $0x1158] sm:$0xff]
    %v2909 = vld [vmem:[#allocation8 + $0x1160] sm:$0xff]
    %v2910 = vld [vmem:[#allocation8 + $0x1168] sm:$0xff]
    %v2911 = vld [vmem:[#allocation8 + $0x1170] sm:$0xff]
    %v2912 = vld [vmem:[#allocation8 + $0x1178] sm:$0xff]
    %v2913 = vld [vmem:[#allocation8 + $0x1180] sm:$0xff]
    %v2914 = vld [vmem:[#allocation8 + $0x1188] sm:$0xff]
    %v2915 = vld [vmem:[#allocation8 + $0x1190] sm:$0xff]
    %v2916 = vld [vmem:[#allocation8 + $0x1198] sm:$0xff]
    %v2917 = vld [vmem:[#allocation8 + $0x11a0] sm:$0xff]
    %v2918 = vld [vmem:[#allocation8 + $0x11a8] sm:$0xff]
    %v2919 = vld [vmem:[#allocation8 + $0x11b0] sm:$0xff]
    %v2920 = vld [vmem:[#allocation8 + $0x11b8] sm:$0xff]
    %v2921 = vld [vmem:[#allocation8 + $0x11c0] sm:$0xff]
    %v2922 = vld [vmem:[#allocation8 + $0x11c8] sm:$0xff]
    %v2923 = vld [vmem:[#allocation8 + $0x11d0] sm:$0xff]
    %v2924 = vld [vmem:[#allocation8 + $0x11d8] sm:$0xff]
    %v2925 = vld [vmem:[#allocation8 + $0x11e0] sm:$0xff]
    %v2926 = vld [vmem:[#allocation8 + $0x11e8] sm:$0xff]
    %v2927 = vld [vmem:[#allocation8 + $0x11f0] sm:$0xff]
    %v2928 = vld [vmem:[#allocation8 + $0x11f8] sm:$0xff]
    %v2929 = vld [vmem:[#allocation8 + $0x1200] sm:$0xff]
    %v2930 = vld [vmem:[#allocation8 + $0x1208] sm:$0xff]
    %v2931 = vld [vmem:[#allocation8 + $0x1210] sm:$0xff]
    %v2932 = vld [vmem:[#allocation8 + $0x1218] sm:$0xff]
    %v2933 = vld [vmem:[#allocation8 + $0x1220] sm:$0xff]
    %v2934 = vld [vmem:[#allocation8 + $0x1228] sm:$0xff]
    %v2935 = vld [vmem:[#allocation8 + $0x1230] sm:$0xff]
    %v2936 = vld [vmem:[#allocation8 + $0x1238] sm:$0xff]
    %v2937 = vld [vmem:[#allocation8 + $0x1240] sm:$0xff]
    %v2938 = vld [vmem:[#allocation8 + $0x1248] sm:$0xff]
    %v2939 = vld [vmem:[#allocation8 + $0x1250] sm:$0xff]
    %v2940 = vld [vmem:[#allocation8 + $0x1258] sm:$0xff]
    %v2941 = vld [vmem:[#allocation8 + $0x1260] sm:$0xff]
    %v2942 = vld [vmem:[#allocation8 + $0x1268] sm:$0xff]
    %v2943 = vld [vmem:[#allocation8 + $0x1270] sm:$0xff]
    %v2944 = vld [vmem:[#allocation8 + $0x1278] sm:$0xff]
    %v2945 = vld [vmem:[#allocation8 + $0x1280] sm:$0xff]
    %v2946 = vld [vmem:[#allocation8 + $0x1288] sm:$0xff]
    %v2947 = vld [vmem:[#allocation8 + $0x1290] sm:$0xff]
    %v2948 = vld [vmem:[#allocation8 + $0x1298] sm:$0xff]
    %v2949 = vld [vmem:[#allocation8 + $0x12a0] sm:$0xff]
    %v2950 = vld [vmem:[#allocation8 + $0x12a8] sm:$0xff]
    %v2951 = vld [vmem:[#allocation8 + $0x12b0] sm:$0xff]
    %v2952 = vld [vmem:[#allocation8 + $0x12b8] sm:$0xff]
    %v2953 = vld [vmem:[#allocation8 + $0x12c0] sm:$0xff]
    %v2954 = vld [vmem:[#allocation8 + $0x12c8] sm:$0xff]
    %v2955 = vld [vmem:[#allocation8 + $0x12d0] sm:$0xff]
    %v2956 = vld [vmem:[#allocation8 + $0x12d8] sm:$0xff]
    %v2957 = vld [vmem:[#allocation8 + $0x12e0] sm:$0xff]
    %v2958 = vld [vmem:[#allocation8 + $0x12e8] sm:$0xff]
    %v2959 = vld [vmem:[#allocation8 + $0x12f0] sm:$0xff]
    %v2960 = vld [vmem:[#allocation8 + $0x12f8] sm:$0xff]
    %v2961 = vld [vmem:[#allocation8 + $0x1300] sm:$0xff]
    %v2962 = vld [vmem:[#allocation8 + $0x1308] sm:$0xff]
    %v2963 = vld [vmem:[#allocation8 + $0x1310] sm:$0xff]
    %v2964 = vld [vmem:[#allocation8 + $0x1318] sm:$0xff]
    %v2965 = vld [vmem:[#allocation8 + $0x1320] sm:$0xff]
    %v2966 = vld [vmem:[#allocation8 + $0x1328] sm:$0xff]
    %v2967 = vld [vmem:[#allocation8 + $0x1330] sm:$0xff]
    %v2968 = vld [vmem:[#allocation8 + $0x1338] sm:$0xff]
    %v2969 = vld [vmem:[#allocation8 + $0x1340] sm:$0xff]
    %v2970 = vld [vmem:[#allocation8 + $0x1348] sm:$0xff]
    %v2971 = vld [vmem:[#allocation8 + $0x1350] sm:$0xff]
    %v2972 = vld [vmem:[#allocation8 + $0x1358] sm:$0xff]
    %v2973 = vld [vmem:[#allocation8 + $0x1360] sm:$0xff]
    %v2974 = vld [vmem:[#allocation8 + $0x1368] sm:$0xff]
    %v2975 = vld [vmem:[#allocation8 + $0x1370] sm:$0xff]
    %v2976 = vld [vmem:[#allocation8 + $0x1378] sm:$0xff]
    %v2977 = vld [vmem:[#allocation8 + $0x1380] sm:$0xff]
    %v2978 = vld [vmem:[#allocation8 + $0x1388] sm:$0xff]
    %v2979 = vld [vmem:[#allocation8 + $0x1390] sm:$0xff]
    %v2980 = vld [vmem:[#allocation8 + $0x1398] sm:$0xff]
    %v2981 = vld [vmem:[#allocation8 + $0x13a0] sm:$0xff]
    %v2982 = vld [vmem:[#allocation8 + $0x13a8] sm:$0xff]
    %v2983 = vld [vmem:[#allocation8 + $0x13b0] sm:$0xff]
    %v2984 = vld [vmem:[#allocation8 + $0x13b8] sm:$0xff]
    %v2985 = vld [vmem:[#allocation8 + $0x13c0] sm:$0xff]
    %v2986 = vld [vmem:[#allocation8 + $0x13c8] sm:$0xff]
    %v2987 = vld [vmem:[#allocation8 + $0x13d0] sm:$0xff]
    %v2988 = vld [vmem:[#allocation8 + $0x13d8] sm:$0xff]
    %v2989 = vld [vmem:[#allocation8 + $0x13e0] sm:$0xff]
    %v2990 = vld [vmem:[#allocation8 + $0x13e8] sm:$0xff]
    %v2991 = vld [vmem:[#allocation8 + $0x13f0] sm:$0xff]
    %v2992 = vld [vmem:[#allocation8 + $0x13f8] sm:$0xff]
    %v2993 = vld [vmem:[#allocation10] sm:$0xff]
    %v2995 = vlaneseq
    %v2996 = vshrl.u32 %v2995, 7
    %v2997 = vsub.s32 0, %v2996
    %v2998 = vrot.slane %v2993, %v2997
    %v2999 = vlaneseq
    %v3000 = vshrl.u32 %v2999, 7
    %v3001 = vsub.s32 1, %v3000
    %v3002 = vrot.slane %v2993, %v3001
    %v3003 = vlaneseq
    %v3004 = vshrl.u32 %v3003, 7
    %v3005 = vsub.s32 2, %v3004
    %v3006 = vrot.slane %v2993, %v3005
    %v3007 = vlaneseq
    %v3008 = vshrl.u32 %v3007, 7
    %v3009 = vsub.s32 3, %v3008
    %v3010 = vrot.slane %v2993, %v3009
    %v3011 = vlaneseq
    %v3012 = vshrl.u32 %v3011, 7
    %v3013 = vsub.s32 4, %v3012
    %v3014 = vrot.slane %v2993, %v3013
    %v3015 = vlaneseq
    %v3016 = vshrl.u32 %v3015, 7
    %v3017 = vsub.s32 5, %v3016
    %v3018 = vrot.slane %v2993, %v3017
    %v3019 = vlaneseq
    %v3020 = vshrl.u32 %v3019, 7
    %v3021 = vsub.s32 6, %v3020
    %v3022 = vrot.slane %v2993, %v3021
    %v3023 = vlaneseq
    %v3024 = vshrl.u32 %v3023, 7
    %v3025 = vsub.s32 7, %v3024
    %v3026 = vrot.slane %v2993, %v3025
    %v3055 = vunpack.c.l.b16 %v2333
    %v3056 = vunpack.c.l.b16 %v2334
    %v3057 = vunpack.c.l.b16 %v2335
    %v3058 = vunpack.c.l.b16 %v2336
    %v3059 = vunpack.c.l.b16 %v2337
    %v3060 = vunpack.c.l.b16 %v2338
    %v3061 = vunpack.c.l.b16 %v2339
    %v3062 = vunpack.c.l.b16 %v2340
    %v3063 = vunpack.c.l.b16 %v2341
    %v3064 = vunpack.c.l.b16 %v2342
    %v3065 = vunpack.c.l.b16 %v2343
    %v3066 = vunpack.c.l.b16 %v2344
    %v3067 = vunpack.c.l.b16 %v2345
    %v3068 = vunpack.c.l.b16 %v2346
    %v3069 = vunpack.c.l.b16 %v2347
    %v3070 = vunpack.c.l.b16 %v2348
    %v3071 = vunpack.c.l.b16 %v2349
    %v3072 = vunpack.c.l.b16 %v2350
    %v3073 = vunpack.c.l.b16 %v2351
    %v3074 = vunpack.c.l.b16 %v2352
    %vm3075 = vcmask 1041409
    %v3076 = vsel %vm3075, %v3065, %v3055
    %v3077 = vsel %vm3075, %v3066, %v3056
    %v3078 = vsel %vm3075, %v3067, %v3057
    %v3079 = vsel %vm3075, %v3068, %v3058
    %v3080 = vsel %vm3075, %v3069, %v3059
    %v3081 = vsel %vm3075, %v3070, %v3060
    %v3082 = vsel %vm3075, %v3071, %v3061
    %v3083 = vsel %vm3075, %v3072, %v3062
    %v3084 = vsel %vm3075, %v3073, %v3063
    %v3085 = vsel %vm3075, %v3074, %v3064
    %v3086 = vpack.c.b16 %v3076, %v3076
    %v3087 = vpack.c.b16 %v3077, %v3077
    %v3088 = vpack.c.b16 %v3078, %v3078
    %v3089 = vpack.c.b16 %v3079, %v3079
    %v3090 = vpack.c.b16 %v3080, %v3080
    %v3091 = vpack.c.b16 %v3081, %v3081
    %v3092 = vpack.c.b16 %v3082, %v3082
    %v3093 = vpack.c.b16 %v3083, %v3083
    %v3094 = vpack.c.b16 %v3084, %v3084
    %v3095 = vpack.c.b16 %v3085, %v3085
    %v3746 = vunpack.c.l.b16 %v2353
    %v3747 = vunpack.c.h.b16 %v2353
    %v3748 = vunpack.c.l.b16 %v2354
    %v3749 = vunpack.c.h.b16 %v2354
    %v3750 = vunpack.c.l.b16 %v2355
    %v3751 = vunpack.c.h.b16 %v2355
    %v3752 = vunpack.c.l.b16 %v2356
    %v3753 = vunpack.c.h.b16 %v2356
    %v3754 = vunpack.c.l.b16 %v2357
    %v3755 = vunpack.c.h.b16 %v2357
    %v3756 = vunpack.c.l.b16 %v2358
    %v3757 = vunpack.c.h.b16 %v2358
    %v3758 = vunpack.c.l.b16 %v2359
    %v3759 = vunpack.c.h.b16 %v2359
    %v3760 = vunpack.c.l.b16 %v2360
    %v3761 = vunpack.c.h.b16 %v2360
    %v3762 = vunpack.c.l.b16 %v2361
    %v3763 = vunpack.c.h.b16 %v2361
    %v3764 = vunpack.c.l.b16 %v2362
    %v3765 = vunpack.c.h.b16 %v2362
    %v3766 = vunpack.c.l.b16 %v2363
    %v3767 = vunpack.c.h.b16 %v2363
    %v3768 = vunpack.c.l.b16 %v2364
    %v3769 = vunpack.c.h.b16 %v2364
    %v3770 = vunpack.c.l.b16 %v2365
    %v3771 = vunpack.c.h.b16 %v2365
    %v3772 = vunpack.c.l.b16 %v2366
    %v3773 = vunpack.c.h.b16 %v2366
    %v3774 = vunpack.c.l.b16 %v2367
    %v3775 = vunpack.c.h.b16 %v2367
    %v3776 = vunpack.c.l.b16 %v2368
    %v3777 = vunpack.c.h.b16 %v2368
    %v3778 = vunpack.c.l.b16 %v2369
    %v3779 = vunpack.c.h.b16 %v2369
    %v3780 = vunpack.c.l.b16 %v2370
    %v3781 = vunpack.c.h.b16 %v2370
    %v3782 = vunpack.c.l.b16 %v2371
    %v3783 = vunpack.c.h.b16 %v2371
    %v3784 = vunpack.c.l.b16 %v2372
    %v3785 = vunpack.c.h.b16 %v2372
    %v3786 = vunpack.c.l.b16 %v2373
    %v3787 = vunpack.c.h.b16 %v2373
    %v3788 = vunpack.c.l.b16 %v2374
    %v3789 = vunpack.c.h.b16 %v2374
    %v3790 = vunpack.c.l.b16 %v2375
    %v3791 = vunpack.c.h.b16 %v2375
    %v3792 = vunpack.c.l.b16 %v2376
    %v3793 = vunpack.c.h.b16 %v2376
    %v3794 = vunpack.c.l.b16 %v2377
    %v3795 = vunpack.c.h.b16 %v2377
    %v3796 = vunpack.c.l.b16 %v2378
    %v3797 = vunpack.c.h.b16 %v2378
    %v3798 = vunpack.c.l.b16 %v2379
    %v3799 = vunpack.c.h.b16 %v2379
    %v3800 = vunpack.c.l.b16 %v2380
    %v3801 = vunpack.c.h.b16 %v2380
    %v3802 = vunpack.c.l.b16 %v2381
    %v3803 = vunpack.c.h.b16 %v2381
    %v3804 = vunpack.c.l.b16 %v2382
    %v3805 = vunpack.c.h.b16 %v2382
    %v3806 = vunpack.c.l.b16 %v2383
    %v3807 = vunpack.c.h.b16 %v2383
    %v3808 = vunpack.c.l.b16 %v2384
    %v3809 = vunpack.c.h.b16 %v2384
    %v3810 = vunpack.c.l.b16 %v2385
    %v3811 = vunpack.c.h.b16 %v2385
    %v3812 = vunpack.c.l.b16 %v2386
    %v3813 = vunpack.c.h.b16 %v2386
    %v3814 = vunpack.c.l.b16 %v2387
    %v3815 = vunpack.c.h.b16 %v2387
    %v3816 = vunpack.c.l.b16 %v2388
    %v3817 = vunpack.c.h.b16 %v2388
    %v3818 = vunpack.c.l.b16 %v2389
    %v3819 = vunpack.c.h.b16 %v2389
    %v3820 = vunpack.c.l.b16 %v2390
    %v3821 = vunpack.c.h.b16 %v2390
    %v3822 = vunpack.c.l.b16 %v2391
    %v3823 = vunpack.c.h.b16 %v2391
    %v3824 = vunpack.c.l.b16 %v2392
    %v3825 = vunpack.c.h.b16 %v2392
    %v3826 = vunpack.c.l.b16 %v2393
    %v3827 = vunpack.c.h.b16 %v2393
    %v3828 = vunpack.c.l.b16 %v2394
    %v3829 = vunpack.c.h.b16 %v2394
    %v3830 = vunpack.c.l.b16 %v2395
    %v3831 = vunpack.c.h.b16 %v2395
    %v3832 = vunpack.c.l.b16 %v2396
    %v3833 = vunpack.c.h.b16 %v2396
    %v3834 = vunpack.c.l.b16 %v2397
    %v3835 = vunpack.c.h.b16 %v2397
    %v3836 = vunpack.c.l.b16 %v2398
    %v3837 = vunpack.c.h.b16 %v2398
    %v3838 = vunpack.c.l.b16 %v2399
    %v3839 = vunpack.c.h.b16 %v2399
    %v3840 = vunpack.c.l.b16 %v2400
    %v3841 = vunpack.c.h.b16 %v2400
    %v3842 = vunpack.c.l.b16 %v2401
    %v3843 = vunpack.c.h.b16 %v2401
    %v3844 = vunpack.c.l.b16 %v2402
    %v3845 = vunpack.c.h.b16 %v2402
    %v3846 = vunpack.c.l.b16 %v2403
    %v3847 = vunpack.c.h.b16 %v2403
    %v3848 = vunpack.c.l.b16 %v2404
    %v3849 = vunpack.c.h.b16 %v2404
    %v3850 = vunpack.c.l.b16 %v2405
    %v3851 = vunpack.c.h.b16 %v2405
    %v3852 = vunpack.c.l.b16 %v2406
    %v3853 = vunpack.c.h.b16 %v2406
    %v3854 = vunpack.c.l.b16 %v2407
    %v3855 = vunpack.c.h.b16 %v2407
    %v3856 = vunpack.c.l.b16 %v2408
    %v3857 = vunpack.c.h.b16 %v2408
    %v3858 = vunpack.c.l.b16 %v2409
    %v3859 = vunpack.c.h.b16 %v2409
    %v3860 = vunpack.c.l.b16 %v2410
    %v3861 = vunpack.c.h.b16 %v2410
    %v3862 = vunpack.c.l.b16 %v2411
    %v3863 = vunpack.c.h.b16 %v2411
    %v3864 = vunpack.c.l.b16 %v2412
    %v3865 = vunpack.c.h.b16 %v2412
    %v3866 = vunpack.c.l.b16 %v2413
    %v3867 = vunpack.c.h.b16 %v2413
    %v3868 = vunpack.c.l.b16 %v2414
    %v3869 = vunpack.c.h.b16 %v2414
    %v3870 = vunpack.c.l.b16 %v2415
    %v3871 = vunpack.c.h.b16 %v2415
    %v3872 = vunpack.c.l.b16 %v2416
    %v3873 = vunpack.c.h.b16 %v2416
    %v3874 = vunpack.c.l.b16 %v2417
    %v3875 = vunpack.c.h.b16 %v2417
    %v3876 = vunpack.c.l.b16 %v2418
    %v3877 = vunpack.c.h.b16 %v2418
    %v3878 = vunpack.c.l.b16 %v2419
    %v3879 = vunpack.c.h.b16 %v2419
    %v3880 = vunpack.c.l.b16 %v2420
    %v3881 = vunpack.c.h.b16 %v2420
    %v3882 = vunpack.c.l.b16 %v2421
    %v3883 = vunpack.c.h.b16 %v2421
    %v3884 = vunpack.c.l.b16 %v2422
    %v3885 = vunpack.c.h.b16 %v2422
    %v3886 = vunpack.c.l.b16 %v2423
    %v3887 = vunpack.c.h.b16 %v2423
    %v3888 = vunpack.c.l.b16 %v2424
    %v3889 = vunpack.c.h.b16 %v2424
    %v3890 = vunpack.c.l.b16 %v2425
    %v3891 = vunpack.c.h.b16 %v2425
    %v3892 = vunpack.c.l.b16 %v2426
    %v3893 = vunpack.c.h.b16 %v2426
    %v3894 = vunpack.c.l.b16 %v2427
    %v3895 = vunpack.c.h.b16 %v2427
    %v3896 = vunpack.c.l.b16 %v2428
    %v3897 = vunpack.c.h.b16 %v2428
    %v3898 = vunpack.c.l.b16 %v2429
    %v3899 = vunpack.c.h.b16 %v2429
    %v3900 = vunpack.c.l.b16 %v2430
    %v3901 = vunpack.c.h.b16 %v2430
    %v3902 = vunpack.c.l.b16 %v2431
    %v3903 = vunpack.c.h.b16 %v2431
    %v3904 = vunpack.c.l.b16 %v2432
    %v3905 = vunpack.c.h.b16 %v2432
    %v3906 = vunpack.c.l.b16 %v2433
    %v3907 = vunpack.c.h.b16 %v2433
    %v3908 = vunpack.c.l.b16 %v2434
    %v3909 = vunpack.c.h.b16 %v2434
    %v3910 = vunpack.c.l.b16 %v2435
    %v3911 = vunpack.c.h.b16 %v2435
    %v3912 = vunpack.c.l.b16 %v2436
    %v3913 = vunpack.c.h.b16 %v2436
    %v3914 = vunpack.c.l.b16 %v2437
    %v3915 = vunpack.c.h.b16 %v2437
    %v3916 = vunpack.c.l.b16 %v2438
    %v3917 = vunpack.c.h.b16 %v2438
    %v3918 = vunpack.c.l.b16 %v2439
    %v3919 = vunpack.c.h.b16 %v2439
    %v3920 = vunpack.c.l.b16 %v2440
    %v3921 = vunpack.c.h.b16 %v2440
    %v3922 = vunpack.c.l.b16 %v2441
    %v3923 = vunpack.c.h.b16 %v2441
    %v3924 = vunpack.c.l.b16 %v2442
    %v3925 = vunpack.c.h.b16 %v2442
    %v3926 = vunpack.c.l.b16 %v2443
    %v3927 = vunpack.c.h.b16 %v2443
    %v3928 = vunpack.c.l.b16 %v2444
    %v3929 = vunpack.c.h.b16 %v2444
    %v3930 = vunpack.c.l.b16 %v2445
    %v3931 = vunpack.c.h.b16 %v2445
    %v3932 = vunpack.c.l.b16 %v2446
    %v3933 = vunpack.c.h.b16 %v2446
    %v3934 = vunpack.c.l.b16 %v2447
    %v3935 = vunpack.c.h.b16 %v2447
    %v3936 = vunpack.c.l.b16 %v2448
    %v3937 = vunpack.c.h.b16 %v2448
    %v3938 = vunpack.c.l.b16 %v2449
    %v3939 = vunpack.c.h.b16 %v2449
    %v3940 = vunpack.c.l.b16 %v2450
    %v3941 = vunpack.c.h.b16 %v2450
    %v3942 = vunpack.c.l.b16 %v2451
    %v3943 = vunpack.c.h.b16 %v2451
    %v3944 = vunpack.c.l.b16 %v2452
    %v3945 = vunpack.c.h.b16 %v2452
    %v3946 = vunpack.c.l.b16 %v2453
    %v3947 = vunpack.c.h.b16 %v2453
    %v3948 = vunpack.c.l.b16 %v2454
    %v3949 = vunpack.c.h.b16 %v2454
    %v3950 = vunpack.c.l.b16 %v2455
    %v3951 = vunpack.c.h.b16 %v2455
    %v3952 = vunpack.c.l.b16 %v2456
    %v3953 = vunpack.c.h.b16 %v2456
    %v3954 = vunpack.c.l.b16 %v2457
    %v3955 = vunpack.c.h.b16 %v2457
    %v3956 = vunpack.c.l.b16 %v2458
    %v3957 = vunpack.c.h.b16 %v2458
    %v3958 = vunpack.c.l.b16 %v2459
    %v3959 = vunpack.c.h.b16 %v2459
    %v3960 = vunpack.c.l.b16 %v2460
    %v3961 = vunpack.c.h.b16 %v2460
    %v3962 = vunpack.c.l.b16 %v2461
    %v3963 = vunpack.c.h.b16 %v2461
    %v3964 = vunpack.c.l.b16 %v2462
    %v3965 = vunpack.c.h.b16 %v2462
    %v3966 = vunpack.c.l.b16 %v2463
    %v3967 = vunpack.c.h.b16 %v2463
    %v3968 = vunpack.c.l.b16 %v2464
    %v3969 = vunpack.c.h.b16 %v2464
    %v3970 = vunpack.c.l.b16 %v2465
    %v3971 = vunpack.c.h.b16 %v2465
    %v3972 = vunpack.c.l.b16 %v2466
    %v3973 = vunpack.c.h.b16 %v2466
    %v3974 = vunpack.c.l.b16 %v2467
    %v3975 = vunpack.c.h.b16 %v2467
    %v3976 = vunpack.c.l.b16 %v2468
    %v3977 = vunpack.c.h.b16 %v2468
    %v3978 = vunpack.c.l.b16 %v2469
    %v3979 = vunpack.c.h.b16 %v2469
    %v3980 = vunpack.c.l.b16 %v2470
    %v3981 = vunpack.c.h.b16 %v2470
    %v3982 = vunpack.c.l.b16 %v2471
    %v3983 = vunpack.c.h.b16 %v2471
    %v3984 = vunpack.c.l.b16 %v2472
    %v3985 = vunpack.c.h.b16 %v2472
    %v3986 = vunpack.c.l.b16 %v2473
    %v3987 = vunpack.c.h.b16 %v2473
    %v3988 = vunpack.c.l.b16 %v2474
    %v3989 = vunpack.c.h.b16 %v2474
    %v3990 = vunpack.c.l.b16 %v2475
    %v3991 = vunpack.c.h.b16 %v2475
    %v3992 = vunpack.c.l.b16 %v2476
    %v3993 = vunpack.c.h.b16 %v2476
    %v3994 = vunpack.c.l.b16 %v2477
    %v3995 = vunpack.c.h.b16 %v2477
    %v3996 = vunpack.c.l.b16 %v2478
    %v3997 = vunpack.c.h.b16 %v2478
    %v3998 = vunpack.c.l.b16 %v2479
    %v3999 = vunpack.c.h.b16 %v2479
    %v4000 = vunpack.c.l.b16 %v2480
    %v4001 = vunpack.c.h.b16 %v2480
    %v4002 = vunpack.c.l.b16 %v2481
    %v4003 = vunpack.c.h.b16 %v2481
    %v4004 = vunpack.c.l.b16 %v2482
    %v4005 = vunpack.c.h.b16 %v2482
    %v4006 = vunpack.c.l.b16 %v2483
    %v4007 = vunpack.c.h.b16 %v2483
    %v4008 = vunpack.c.l.b16 %v2484
    %v4009 = vunpack.c.h.b16 %v2484
    %v4010 = vunpack.c.l.b16 %v2485
    %v4011 = vunpack.c.h.b16 %v2485
    %v4012 = vunpack.c.l.b16 %v2486
    %v4013 = vunpack.c.h.b16 %v2486
    %v4014 = vunpack.c.l.b16 %v2487
    %v4015 = vunpack.c.h.b16 %v2487
    %v4016 = vunpack.c.l.b16 %v2488
    %v4017 = vunpack.c.h.b16 %v2488
    %v4018 = vunpack.c.l.b16 %v2489
    %v4019 = vunpack.c.h.b16 %v2489
    %v4020 = vunpack.c.l.b16 %v2490
    %v4021 = vunpack.c.h.b16 %v2490
    %v4022 = vunpack.c.l.b16 %v2491
    %v4023 = vunpack.c.h.b16 %v2491
    %v4024 = vunpack.c.l.b16 %v2492
    %v4025 = vunpack.c.h.b16 %v2492
    %v4026 = vunpack.c.l.b16 %v2493
    %v4027 = vunpack.c.h.b16 %v2493
    %v4028 = vunpack.c.l.b16 %v2494
    %v4029 = vunpack.c.h.b16 %v2494
    %v4030 = vunpack.c.l.b16 %v2495
    %v4031 = vunpack.c.h.b16 %v2495
    %v4032 = vunpack.c.l.b16 %v2496
    %v4033 = vunpack.c.h.b16 %v2496
    %v4034 = vunpack.c.l.b16 %v2497
    %v4035 = vunpack.c.h.b16 %v2497
    %v4036 = vunpack.c.l.b16 %v2498
    %v4037 = vunpack.c.h.b16 %v2498
    %v4038 = vunpack.c.l.b16 %v2499
    %v4039 = vunpack.c.h.b16 %v2499
    %v4040 = vunpack.c.l.b16 %v2500
    %v4041 = vunpack.c.h.b16 %v2500
    %v4042 = vunpack.c.l.b16 %v2501
    %v4043 = vunpack.c.h.b16 %v2501
    %v4044 = vunpack.c.l.b16 %v2502
    %v4045 = vunpack.c.h.b16 %v2502
    %v4046 = vunpack.c.l.b16 %v2503
    %v4047 = vunpack.c.h.b16 %v2503
    %v4048 = vunpack.c.l.b16 %v2504
    %v4049 = vunpack.c.h.b16 %v2504
    %v4050 = vunpack.c.l.b16 %v2505
    %v4051 = vunpack.c.h.b16 %v2505
    %v4052 = vunpack.c.l.b16 %v2506
    %v4053 = vunpack.c.h.b16 %v2506
    %v4054 = vunpack.c.l.b16 %v2507
    %v4055 = vunpack.c.h.b16 %v2507
    %v4056 = vunpack.c.l.b16 %v2508
    %v4057 = vunpack.c.h.b16 %v2508
    %v4058 = vunpack.c.l.b16 %v2509
    %v4059 = vunpack.c.h.b16 %v2509
    %v4060 = vunpack.c.l.b16 %v2510
    %v4061 = vunpack.c.h.b16 %v2510
    %v4062 = vunpack.c.l.b16 %v2511
    %v4063 = vunpack.c.h.b16 %v2511
    %v4064 = vunpack.c.l.b16 %v2512
    %v4065 = vunpack.c.h.b16 %v2512
    %v4066 = vunpack.c.l.b16 %v2513
    %v4067 = vunpack.c.h.b16 %v2513
    %v4068 = vunpack.c.l.b16 %v2514
    %v4069 = vunpack.c.h.b16 %v2514
    %v4070 = vunpack.c.l.b16 %v2515
    %v4071 = vunpack.c.h.b16 %v2515
    %v4072 = vunpack.c.l.b16 %v2516
    %v4073 = vunpack.c.h.b16 %v2516
    %v4074 = vunpack.c.l.b16 %v2517
    %v4075 = vunpack.c.h.b16 %v2517
    %v4076 = vunpack.c.l.b16 %v2518
    %v4077 = vunpack.c.h.b16 %v2518
    %v4078 = vunpack.c.l.b16 %v2519
    %v4079 = vunpack.c.h.b16 %v2519
    %v4080 = vunpack.c.l.b16 %v2520
    %v4081 = vunpack.c.h.b16 %v2520
    %v4082 = vunpack.c.l.b16 %v2521
    %v4083 = vunpack.c.h.b16 %v2521
    %v4084 = vunpack.c.l.b16 %v2522
    %v4085 = vunpack.c.h.b16 %v2522
    %v4086 = vunpack.c.l.b16 %v2523
    %v4087 = vunpack.c.h.b16 %v2523
    %v4088 = vunpack.c.l.b16 %v2524
    %v4089 = vunpack.c.h.b16 %v2524
    %v4090 = vunpack.c.l.b16 %v2525
    %v4091 = vunpack.c.h.b16 %v2525
    %v4092 = vunpack.c.l.b16 %v2526
    %v4093 = vunpack.c.h.b16 %v2526
    %v4094 = vunpack.c.l.b16 %v2527
    %v4095 = vunpack.c.h.b16 %v2527
    %v4096 = vunpack.c.l.b16 %v2528
    %v4097 = vunpack.c.h.b16 %v2528
    %v4098 = vunpack.c.l.b16 %v2529
    %v4099 = vunpack.c.h.b16 %v2529
    %v4100 = vunpack.c.l.b16 %v2530
    %v4101 = vunpack.c.h.b16 %v2530
    %v4102 = vunpack.c.l.b16 %v2531
    %v4103 = vunpack.c.h.b16 %v2531
    %v4104 = vunpack.c.l.b16 %v2532
    %v4105 = vunpack.c.h.b16 %v2532
    %v4106 = vunpack.c.l.b16 %v2533
    %v4107 = vunpack.c.h.b16 %v2533
    %v4108 = vunpack.c.l.b16 %v2534
    %v4109 = vunpack.c.h.b16 %v2534
    %v4110 = vunpack.c.l.b16 %v2535
    %v4111 = vunpack.c.h.b16 %v2535
    %v4112 = vunpack.c.l.b16 %v2536
    %v4113 = vunpack.c.h.b16 %v2536
    %v4114 = vunpack.c.l.b16 %v2537
    %v4115 = vunpack.c.h.b16 %v2537
    %v4116 = vunpack.c.l.b16 %v2538
    %v4117 = vunpack.c.h.b16 %v2538
    %v4118 = vunpack.c.l.b16 %v2539
    %v4119 = vunpack.c.h.b16 %v2539
    %v4120 = vunpack.c.l.b16 %v2540
    %v4121 = vunpack.c.h.b16 %v2540
    %v4122 = vunpack.c.l.b16 %v2541
    %v4123 = vunpack.c.h.b16 %v2541
    %v4124 = vunpack.c.l.b16 %v2542
    %v4125 = vunpack.c.h.b16 %v2542
    %v4126 = vunpack.c.l.b16 %v2543
    %v4127 = vunpack.c.h.b16 %v2543
    %v4128 = vunpack.c.l.b16 %v2544
    %v4129 = vunpack.c.h.b16 %v2544
    %v4130 = vunpack.c.l.b16 %v2545
    %v4131 = vunpack.c.h.b16 %v2545
    %v4132 = vunpack.c.l.b16 %v2546
    %v4133 = vunpack.c.h.b16 %v2546
    %v4134 = vunpack.c.l.b16 %v2547
    %v4135 = vunpack.c.h.b16 %v2547
    %v4136 = vunpack.c.l.b16 %v2548
    %v4137 = vunpack.c.h.b16 %v2548
    %v4138 = vunpack.c.l.b16 %v2549
    %v4139 = vunpack.c.h.b16 %v2549
    %v4140 = vunpack.c.l.b16 %v2550
    %v4141 = vunpack.c.h.b16 %v2550
    %v4142 = vunpack.c.l.b16 %v2551
    %v4143 = vunpack.c.h.b16 %v2551
    %v4144 = vunpack.c.l.b16 %v2552
    %v4145 = vunpack.c.h.b16 %v2552
    %v4146 = vunpack.c.l.b16 %v2553
    %v4147 = vunpack.c.h.b16 %v2553
    %v4148 = vunpack.c.l.b16 %v2554
    %v4149 = vunpack.c.h.b16 %v2554
    %v4150 = vunpack.c.l.b16 %v2555
    %v4151 = vunpack.c.h.b16 %v2555
    %v4152 = vunpack.c.l.b16 %v2556
    %v4153 = vunpack.c.h.b16 %v2556
    %v4154 = vunpack.c.l.b16 %v2557
    %v4155 = vunpack.c.h.b16 %v2557
    %v4156 = vunpack.c.l.b16 %v2558
    %v4157 = vunpack.c.h.b16 %v2558
    %v4158 = vunpack.c.l.b16 %v2559
    %v4159 = vunpack.c.h.b16 %v2559
    %v4160 = vunpack.c.l.b16 %v2560
    %v4161 = vunpack.c.h.b16 %v2560
    %v4162 = vunpack.c.l.b16 %v2561
    %v4163 = vunpack.c.h.b16 %v2561
    %v4164 = vunpack.c.l.b16 %v2562
    %v4165 = vunpack.c.h.b16 %v2562
    %v4166 = vunpack.c.l.b16 %v2563
    %v4167 = vunpack.c.h.b16 %v2563
    %v4168 = vunpack.c.l.b16 %v2564
    %v4169 = vunpack.c.h.b16 %v2564
    %v4170 = vunpack.c.l.b16 %v2565
    %v4171 = vunpack.c.h.b16 %v2565
    %v4172 = vunpack.c.l.b16 %v2566
    %v4173 = vunpack.c.h.b16 %v2566
    %v4174 = vunpack.c.l.b16 %v2567
    %v4175 = vunpack.c.h.b16 %v2567
    %v4176 = vunpack.c.l.b16 %v2568
    %v4177 = vunpack.c.h.b16 %v2568
    %v4178 = vunpack.c.l.b16 %v2569
    %v4179 = vunpack.c.h.b16 %v2569
    %v4180 = vunpack.c.l.b16 %v2570
    %v4181 = vunpack.c.h.b16 %v2570
    %v4182 = vunpack.c.l.b16 %v2571
    %v4183 = vunpack.c.h.b16 %v2571
    %v4184 = vunpack.c.l.b16 %v2572
    %v4185 = vunpack.c.h.b16 %v2572
    %v4186 = vunpack.c.l.b16 %v2573
    %v4187 = vunpack.c.h.b16 %v2573
    %v4188 = vunpack.c.l.b16 %v2574
    %v4189 = vunpack.c.h.b16 %v2574
    %v4190 = vunpack.c.l.b16 %v2575
    %v4191 = vunpack.c.h.b16 %v2575
    %v4192 = vunpack.c.l.b16 %v2576
    %v4193 = vunpack.c.h.b16 %v2576
    %v4194 = vunpack.c.l.b16 %v2577
    %v4195 = vunpack.c.h.b16 %v2577
    %v4196 = vunpack.c.l.b16 %v2578
    %v4197 = vunpack.c.h.b16 %v2578
    %v4198 = vunpack.c.l.b16 %v2579
    %v4199 = vunpack.c.h.b16 %v2579
    %v4200 = vunpack.c.l.b16 %v2580
    %v4201 = vunpack.c.h.b16 %v2580
    %v4202 = vunpack.c.l.b16 %v2581
    %v4203 = vunpack.c.h.b16 %v2581
    %v4204 = vunpack.c.l.b16 %v2582
    %v4205 = vunpack.c.h.b16 %v2582
    %v4206 = vunpack.c.l.b16 %v2583
    %v4207 = vunpack.c.h.b16 %v2583
    %v4208 = vunpack.c.l.b16 %v2584
    %v4209 = vunpack.c.h.b16 %v2584
    %v4210 = vunpack.c.l.b16 %v2585
    %v4211 = vunpack.c.h.b16 %v2585
    %v4212 = vunpack.c.l.b16 %v2586
    %v4213 = vunpack.c.h.b16 %v2586
    %v4214 = vunpack.c.l.b16 %v2587
    %v4215 = vunpack.c.h.b16 %v2587
    %v4216 = vunpack.c.l.b16 %v2588
    %v4217 = vunpack.c.h.b16 %v2588
    %v4218 = vunpack.c.l.b16 %v2589
    %v4219 = vunpack.c.h.b16 %v2589
    %v4220 = vunpack.c.l.b16 %v2590
    %v4221 = vunpack.c.h.b16 %v2590
    %v4222 = vunpack.c.l.b16 %v2591
    %v4223 = vunpack.c.h.b16 %v2591
    %v4224 = vunpack.c.l.b16 %v2592
    %v4225 = vunpack.c.h.b16 %v2592
    %v4226 = vunpack.c.l.b16 %v2593
    %v4227 = vunpack.c.h.b16 %v2593
    %v4228 = vunpack.c.l.b16 %v2594
    %v4229 = vunpack.c.h.b16 %v2594
    %v4230 = vunpack.c.l.b16 %v2595
    %v4231 = vunpack.c.h.b16 %v2595
    %v4232 = vunpack.c.l.b16 %v2596
    %v4233 = vunpack.c.h.b16 %v2596
    %v4234 = vunpack.c.l.b16 %v2597
    %v4235 = vunpack.c.h.b16 %v2597
    %v4236 = vunpack.c.l.b16 %v2598
    %v4237 = vunpack.c.h.b16 %v2598
    %v4238 = vunpack.c.l.b16 %v2599
    %v4239 = vunpack.c.h.b16 %v2599
    %v4240 = vunpack.c.l.b16 %v2600
    %v4241 = vunpack.c.h.b16 %v2600
    %v4242 = vunpack.c.l.b16 %v2601
    %v4243 = vunpack.c.h.b16 %v2601
    %v4244 = vunpack.c.l.b16 %v2602
    %v4245 = vunpack.c.h.b16 %v2602
    %v4246 = vunpack.c.l.b16 %v2603
    %v4247 = vunpack.c.h.b16 %v2603
    %v4248 = vunpack.c.l.b16 %v2604
    %v4249 = vunpack.c.h.b16 %v2604
    %v4250 = vunpack.c.l.b16 %v2605
    %v4251 = vunpack.c.h.b16 %v2605
    %v4252 = vunpack.c.l.b16 %v2606
    %v4253 = vunpack.c.h.b16 %v2606
    %v4254 = vunpack.c.l.b16 %v2607
    %v4255 = vunpack.c.h.b16 %v2607
    %v4256 = vunpack.c.l.b16 %v2608
    %v4257 = vunpack.c.h.b16 %v2608
    %v4258 = vunpack.c.l.b16 %v2609
    %v4259 = vunpack.c.h.b16 %v2609
    %v4260 = vunpack.c.l.b16 %v2610
    %v4261 = vunpack.c.h.b16 %v2610
    %v4262 = vunpack.c.l.b16 %v2611
    %v4263 = vunpack.c.h.b16 %v2611
    %v4264 = vunpack.c.l.b16 %v2612
    %v4265 = vunpack.c.h.b16 %v2612
    %v4266 = vunpack.c.l.b16 %v2613
    %v4267 = vunpack.c.h.b16 %v2613
    %v4268 = vunpack.c.l.b16 %v2614
    %v4269 = vunpack.c.h.b16 %v2614
    %v4270 = vunpack.c.l.b16 %v2615
    %v4271 = vunpack.c.h.b16 %v2615
    %v4272 = vunpack.c.l.b16 %v2616
    %v4273 = vunpack.c.h.b16 %v2616
    %v4274 = vunpack.c.l.b16 %v2617
    %v4275 = vunpack.c.h.b16 %v2617
    %v4276 = vunpack.c.l.b16 %v2618
    %v4277 = vunpack.c.h.b16 %v2618
    %v4278 = vunpack.c.l.b16 %v2619
    %v4279 = vunpack.c.h.b16 %v2619
    %v4280 = vunpack.c.l.b16 %v2620
    %v4281 = vunpack.c.h.b16 %v2620
    %v4282 = vunpack.c.l.b16 %v2621
    %v4283 = vunpack.c.h.b16 %v2621
    %v4284 = vunpack.c.l.b16 %v2622
    %v4285 = vunpack.c.h.b16 %v2622
    %v4286 = vunpack.c.l.b16 %v2623
    %v4287 = vunpack.c.h.b16 %v2623
    %v4288 = vunpack.c.l.b16 %v2624
    %v4289 = vunpack.c.h.b16 %v2624
    %v4290 = vunpack.c.l.b16 %v2625
    %v4291 = vunpack.c.h.b16 %v2625
    %v4292 = vunpack.c.l.b16 %v2626
    %v4293 = vunpack.c.h.b16 %v2626
    %v4294 = vunpack.c.l.b16 %v2627
    %v4295 = vunpack.c.h.b16 %v2627
    %v4296 = vunpack.c.l.b16 %v2628
    %v4297 = vunpack.c.h.b16 %v2628
    %v4298 = vunpack.c.l.b16 %v2629
    %v4299 = vunpack.c.h.b16 %v2629
    %v4300 = vunpack.c.l.b16 %v2630
    %v4301 = vunpack.c.h.b16 %v2630
    %v4302 = vunpack.c.l.b16 %v2631
    %v4303 = vunpack.c.h.b16 %v2631
    %v4304 = vunpack.c.l.b16 %v2632
    %v4305 = vunpack.c.h.b16 %v2632
    %v4306 = vunpack.c.l.b16 %v2633
    %v4307 = vunpack.c.h.b16 %v2633
    %v4308 = vunpack.c.l.b16 %v2634
    %v4309 = vunpack.c.h.b16 %v2634
    %v4310 = vunpack.c.l.b16 %v2635
    %v4311 = vunpack.c.h.b16 %v2635
    %v4312 = vunpack.c.l.b16 %v2636
    %v4313 = vunpack.c.h.b16 %v2636
    %v4314 = vunpack.c.l.b16 %v2637
    %v4315 = vunpack.c.h.b16 %v2637
    %v4316 = vunpack.c.l.b16 %v2638
    %v4317 = vunpack.c.h.b16 %v2638
    %v4318 = vunpack.c.l.b16 %v2639
    %v4319 = vunpack.c.h.b16 %v2639
    %v4320 = vunpack.c.l.b16 %v2640
    %v4321 = vunpack.c.h.b16 %v2640
    %v4322 = vunpack.c.l.b16 %v2641
    %v4323 = vunpack.c.h.b16 %v2641
    %v4324 = vunpack.c.l.b16 %v2642
    %v4325 = vunpack.c.h.b16 %v2642
    %v4326 = vunpack.c.l.b16 %v2643
    %v4327 = vunpack.c.h.b16 %v2643
    %v4328 = vunpack.c.l.b16 %v2644
    %v4329 = vunpack.c.h.b16 %v2644
    %v4330 = vunpack.c.l.b16 %v2645
    %v4331 = vunpack.c.h.b16 %v2645
    %v4332 = vunpack.c.l.b16 %v2646
    %v4333 = vunpack.c.h.b16 %v2646
    %v4334 = vunpack.c.l.b16 %v2647
    %v4335 = vunpack.c.h.b16 %v2647
    %v4336 = vunpack.c.l.b16 %v2648
    %v4337 = vunpack.c.h.b16 %v2648
    %v4338 = vunpack.c.l.b16 %v2649
    %v4339 = vunpack.c.h.b16 %v2649
    %v4340 = vunpack.c.l.b16 %v2650
    %v4341 = vunpack.c.h.b16 %v2650
    %v4342 = vunpack.c.l.b16 %v2651
    %v4343 = vunpack.c.h.b16 %v2651
    %v4344 = vunpack.c.l.b16 %v2652
    %v4345 = vunpack.c.h.b16 %v2652
    %v4346 = vunpack.c.l.b16 %v2653
    %v4347 = vunpack.c.h.b16 %v2653
    %v4348 = vunpack.c.l.b16 %v2654
    %v4349 = vunpack.c.h.b16 %v2654
    %v4350 = vunpack.c.l.b16 %v2655
    %v4351 = vunpack.c.h.b16 %v2655
    %v4352 = vunpack.c.l.b16 %v2656
    %v4353 = vunpack.c.h.b16 %v2656
    %v4354 = vunpack.c.l.b16 %v2657
    %v4355 = vunpack.c.h.b16 %v2657
    %v4356 = vunpack.c.l.b16 %v2658
    %v4357 = vunpack.c.h.b16 %v2658
    %v4358 = vunpack.c.l.b16 %v2659
    %v4359 = vunpack.c.h.b16 %v2659
    %v4360 = vunpack.c.l.b16 %v2660
    %v4361 = vunpack.c.h.b16 %v2660
    %v4362 = vunpack.c.l.b16 %v2661
    %v4363 = vunpack.c.h.b16 %v2661
    %v4364 = vunpack.c.l.b16 %v2662
    %v4365 = vunpack.c.h.b16 %v2662
    %v4366 = vunpack.c.l.b16 %v2663
    %v4367 = vunpack.c.h.b16 %v2663
    %v4368 = vunpack.c.l.b16 %v2664
    %v4369 = vunpack.c.h.b16 %v2664
    %v4370 = vunpack.c.l.b16 %v2665
    %v4371 = vunpack.c.h.b16 %v2665
    %v4372 = vunpack.c.l.b16 %v2666
    %v4373 = vunpack.c.h.b16 %v2666
    %v4374 = vunpack.c.l.b16 %v2667
    %v4375 = vunpack.c.h.b16 %v2667
    %v4376 = vunpack.c.l.b16 %v2668
    %v4377 = vunpack.c.h.b16 %v2668
    %v4378 = vunpack.c.l.b16 %v2669
    %v4379 = vunpack.c.h.b16 %v2669
    %v4380 = vunpack.c.l.b16 %v2670
    %v4381 = vunpack.c.h.b16 %v2670
    %v4382 = vunpack.c.l.b16 %v2671
    %v4383 = vunpack.c.h.b16 %v2671
    %v4384 = vunpack.c.l.b16 %v2672
    %v4385 = vunpack.c.h.b16 %v2672
    %v4386 = vunpack.c.l.b16 %v2673
    %v4387 = vunpack.c.h.b16 %v2673
    %v4388 = vunpack.c.l.b16 %v2674
    %v4389 = vunpack.c.h.b16 %v2674
    %v4390 = vunpack.c.l.b16 %v2675
    %v4391 = vunpack.c.h.b16 %v2675
    %v4392 = vunpack.c.l.b16 %v2676
    %v4393 = vunpack.c.h.b16 %v2676
    %v4394 = vunpack.c.l.b16 %v2677
    %v4395 = vunpack.c.h.b16 %v2677
    %v4396 = vunpack.c.l.b16 %v2678
    %v4397 = vunpack.c.h.b16 %v2678
    %v4398 = vunpack.c.l.b16 %v2679
    %v4399 = vunpack.c.h.b16 %v2679
    %v4400 = vunpack.c.l.b16 %v2680
    %v4401 = vunpack.c.h.b16 %v2680
    %v4402 = vunpack.c.l.b16 %v2681
    %v4403 = vunpack.c.h.b16 %v2681
    %v4404 = vunpack.c.l.b16 %v2682
    %v4405 = vunpack.c.h.b16 %v2682
    %v4406 = vunpack.c.l.b16 %v2683
    %v4407 = vunpack.c.h.b16 %v2683
    %v4408 = vunpack.c.l.b16 %v2684
    %v4409 = vunpack.c.h.b16 %v2684
    %v4410 = vunpack.c.l.b16 %v2685
    %v4411 = vunpack.c.h.b16 %v2685
    %v4412 = vunpack.c.l.b16 %v2686
    %v4413 = vunpack.c.h.b16 %v2686
    %v4414 = vunpack.c.l.b16 %v2687
    %v4415 = vunpack.c.h.b16 %v2687
    %v4416 = vunpack.c.l.b16 %v2688
    %v4417 = vunpack.c.h.b16 %v2688
    %v4418 = vunpack.c.l.b16 %v2689
    %v4419 = vunpack.c.h.b16 %v2689
    %v4420 = vunpack.c.l.b16 %v2690
    %v4421 = vunpack.c.h.b16 %v2690
    %v4422 = vunpack.c.l.b16 %v2691
    %v4423 = vunpack.c.h.b16 %v2691
    %v4424 = vunpack.c.l.b16 %v2692
    %v4425 = vunpack.c.h.b16 %v2692
    %v4426 = vunpack.c.l.b16 %v2693
    %v4427 = vunpack.c.h.b16 %v2693
    %v4428 = vunpack.c.l.b16 %v2694
    %v4429 = vunpack.c.h.b16 %v2694
    %v4430 = vunpack.c.l.b16 %v2695
    %v4431 = vunpack.c.h.b16 %v2695
    %v4432 = vunpack.c.l.b16 %v2696
    %v4433 = vunpack.c.h.b16 %v2696
    %v4434 = vunpack.c.l.b16 %v2697
    %v4435 = vunpack.c.h.b16 %v2697
    %v4436 = vunpack.c.l.b16 %v2698
    %v4437 = vunpack.c.h.b16 %v2698
    %v4438 = vunpack.c.l.b16 %v2699
    %v4439 = vunpack.c.h.b16 %v2699
    %v4440 = vunpack.c.l.b16 %v2700
    %v4441 = vunpack.c.h.b16 %v2700
    %v4442 = vunpack.c.l.b16 %v2701
    %v4443 = vunpack.c.h.b16 %v2701
    %v4444 = vunpack.c.l.b16 %v2702
    %v4445 = vunpack.c.h.b16 %v2702
    %v4446 = vunpack.c.l.b16 %v2703
    %v4447 = vunpack.c.h.b16 %v2703
    %v4448 = vunpack.c.l.b16 %v2704
    %v4449 = vunpack.c.h.b16 %v2704
    %v4450 = vunpack.c.l.b16 %v2705
    %v4451 = vunpack.c.h.b16 %v2705
    %v4452 = vunpack.c.l.b16 %v2706
    %v4453 = vunpack.c.h.b16 %v2706
    %v4454 = vunpack.c.l.b16 %v2707
    %v4455 = vunpack.c.h.b16 %v2707
    %v4456 = vunpack.c.l.b16 %v2708
    %v4457 = vunpack.c.h.b16 %v2708
    %v4458 = vunpack.c.l.b16 %v2709
    %v4459 = vunpack.c.h.b16 %v2709
    %v4460 = vunpack.c.l.b16 %v2710
    %v4461 = vunpack.c.h.b16 %v2710
    %v4462 = vunpack.c.l.b16 %v2711
    %v4463 = vunpack.c.h.b16 %v2711
    %v4464 = vunpack.c.l.b16 %v2712
    %v4465 = vunpack.c.h.b16 %v2712
    %v4466 = vunpack.c.l.b16 %v2713
    %v4467 = vunpack.c.h.b16 %v2713
    %v4468 = vunpack.c.l.b16 %v2714
    %v4469 = vunpack.c.h.b16 %v2714
    %v4470 = vunpack.c.l.b16 %v2715
    %v4471 = vunpack.c.h.b16 %v2715
    %v4472 = vunpack.c.l.b16 %v2716
    %v4473 = vunpack.c.h.b16 %v2716
    %v4474 = vunpack.c.l.b16 %v2717
    %v4475 = vunpack.c.h.b16 %v2717
    %v4476 = vunpack.c.l.b16 %v2718
    %v4477 = vunpack.c.h.b16 %v2718
    %v4478 = vunpack.c.l.b16 %v2719
    %v4479 = vunpack.c.h.b16 %v2719
    %v4480 = vunpack.c.l.b16 %v2720
    %v4481 = vunpack.c.h.b16 %v2720
    %v4482 = vunpack.c.l.b16 %v2721
    %v4483 = vunpack.c.h.b16 %v2721
    %v4484 = vunpack.c.l.b16 %v2722
    %v4485 = vunpack.c.h.b16 %v2722
    %v4486 = vunpack.c.l.b16 %v2723
    %v4487 = vunpack.c.h.b16 %v2723
    %v4488 = vunpack.c.l.b16 %v2724
    %v4489 = vunpack.c.h.b16 %v2724
    %v4490 = vunpack.c.l.b16 %v2725
    %v4491 = vunpack.c.h.b16 %v2725
    %v4492 = vunpack.c.l.b16 %v2726
    %v4493 = vunpack.c.h.b16 %v2726
    %v4494 = vunpack.c.l.b16 %v2727
    %v4495 = vunpack.c.h.b16 %v2727
    %v4496 = vunpack.c.l.b16 %v2728
    %v4497 = vunpack.c.h.b16 %v2728
    %v4498 = vunpack.c.l.b16 %v2729
    %v4499 = vunpack.c.h.b16 %v2729
    %v4500 = vunpack.c.l.b16 %v2730
    %v4501 = vunpack.c.h.b16 %v2730
    %v4502 = vunpack.c.l.b16 %v2731
    %v4503 = vunpack.c.h.b16 %v2731
    %v4504 = vunpack.c.l.b16 %v2732
    %v4505 = vunpack.c.h.b16 %v2732
    %v4506 = vunpack.c.l.b16 %v2733
    %v4507 = vunpack.c.h.b16 %v2733
    %v4508 = vunpack.c.l.b16 %v2734
    %v4509 = vunpack.c.h.b16 %v2734
    %v4510 = vunpack.c.l.b16 %v2735
    %v4511 = vunpack.c.h.b16 %v2735
    %v4512 = vunpack.c.l.b16 %v2736
    %v4513 = vunpack.c.h.b16 %v2736
    %v4514 = vunpack.c.l.b16 %v2737
    %v4515 = vunpack.c.h.b16 %v2737
    %v4516 = vunpack.c.l.b16 %v2738
    %v4517 = vunpack.c.h.b16 %v2738
    %v4518 = vunpack.c.l.b16 %v2739
    %v4519 = vunpack.c.h.b16 %v2739
    %v4520 = vunpack.c.l.b16 %v2740
    %v4521 = vunpack.c.h.b16 %v2740
    %v4522 = vunpack.c.l.b16 %v2741
    %v4523 = vunpack.c.h.b16 %v2741
    %v4524 = vunpack.c.l.b16 %v2742
    %v4525 = vunpack.c.h.b16 %v2742
    %v4526 = vunpack.c.l.b16 %v2743
    %v4527 = vunpack.c.h.b16 %v2743
    %v4528 = vunpack.c.l.b16 %v2744
    %v4529 = vunpack.c.h.b16 %v2744
    %v4530 = vunpack.c.l.b16 %v2745
    %v4531 = vunpack.c.h.b16 %v2745
    %v4532 = vunpack.c.l.b16 %v2746
    %v4533 = vunpack.c.h.b16 %v2746
    %v4534 = vunpack.c.l.b16 %v2747
    %v4535 = vunpack.c.h.b16 %v2747
    %v4536 = vunpack.c.l.b16 %v2748
    %v4537 = vunpack.c.h.b16 %v2748
    %v4538 = vunpack.c.l.b16 %v2749
    %v4539 = vunpack.c.h.b16 %v2749
    %v4540 = vunpack.c.l.b16 %v2750
    %v4541 = vunpack.c.h.b16 %v2750
    %v4542 = vunpack.c.l.b16 %v2751
    %v4543 = vunpack.c.h.b16 %v2751
    %v4544 = vunpack.c.l.b16 %v2752
    %v4545 = vunpack.c.h.b16 %v2752
    %v4546 = vunpack.c.l.b16 %v2753
    %v4547 = vunpack.c.h.b16 %v2753
    %v4548 = vunpack.c.l.b16 %v2754
    %v4549 = vunpack.c.h.b16 %v2754
    %v4550 = vunpack.c.l.b16 %v2755
    %v4551 = vunpack.c.h.b16 %v2755
    %v4552 = vunpack.c.l.b16 %v2756
    %v4553 = vunpack.c.h.b16 %v2756
    %v4554 = vunpack.c.l.b16 %v2757
    %v4555 = vunpack.c.h.b16 %v2757
    %v4556 = vunpack.c.l.b16 %v2758
    %v4557 = vunpack.c.h.b16 %v2758
    %v4558 = vunpack.c.l.b16 %v2759
    %v4559 = vunpack.c.h.b16 %v2759
    %v4560 = vunpack.c.l.b16 %v2760
    %v4561 = vunpack.c.h.b16 %v2760
    %v4562 = vunpack.c.l.b16 %v2761
    %v4563 = vunpack.c.h.b16 %v2761
    %v4564 = vunpack.c.l.b16 %v2762
    %v4565 = vunpack.c.h.b16 %v2762
    %v4566 = vunpack.c.l.b16 %v2763
    %v4567 = vunpack.c.h.b16 %v2763
    %v4568 = vunpack.c.l.b16 %v2764
    %v4569 = vunpack.c.h.b16 %v2764
    %v4570 = vunpack.c.l.b16 %v2765
    %v4571 = vunpack.c.h.b16 %v2765
    %v4572 = vunpack.c.l.b16 %v2766
    %v4573 = vunpack.c.h.b16 %v2766
    %v4574 = vunpack.c.l.b16 %v2767
    %v4575 = vunpack.c.h.b16 %v2767
    %v4576 = vunpack.c.l.b16 %v2768
    %v4577 = vunpack.c.h.b16 %v2768
    %v4578 = vunpack.c.l.b16 %v2769
    %v4579 = vunpack.c.h.b16 %v2769
    %v4580 = vunpack.c.l.b16 %v2770
    %v4581 = vunpack.c.h.b16 %v2770
    %v4582 = vunpack.c.l.b16 %v2771
    %v4583 = vunpack.c.h.b16 %v2771
    %v4584 = vunpack.c.l.b16 %v2772
    %v4585 = vunpack.c.h.b16 %v2772
    %v4586 = vunpack.c.l.b16 %v2773
    %v4587 = vunpack.c.h.b16 %v2773
    %v4588 = vunpack.c.l.b16 %v2774
    %v4589 = vunpack.c.h.b16 %v2774
    %v4590 = vunpack.c.l.b16 %v2775
    %v4591 = vunpack.c.h.b16 %v2775
    %v4592 = vunpack.c.l.b16 %v2776
    %v4593 = vunpack.c.h.b16 %v2776
    %v4594 = vunpack.c.l.b16 %v2777
    %v4595 = vunpack.c.h.b16 %v2777
    %v4596 = vunpack.c.l.b16 %v2778
    %v4597 = vunpack.c.h.b16 %v2778
    %v4598 = vunpack.c.l.b16 %v2779
    %v4599 = vunpack.c.h.b16 %v2779
    %v4600 = vunpack.c.l.b16 %v2780
    %v4601 = vunpack.c.h.b16 %v2780
    %v4602 = vunpack.c.l.b16 %v2781
    %v4603 = vunpack.c.h.b16 %v2781
    %v4604 = vunpack.c.l.b16 %v2782
    %v4605 = vunpack.c.h.b16 %v2782
    %v4606 = vunpack.c.l.b16 %v2783
    %v4607 = vunpack.c.h.b16 %v2783
    %v4608 = vunpack.c.l.b16 %v2784
    %v4609 = vunpack.c.h.b16 %v2784
    %v4610 = vunpack.c.l.b16 %v2785
    %v4611 = vunpack.c.h.b16 %v2785
    %v4612 = vunpack.c.l.b16 %v2786
    %v4613 = vunpack.c.h.b16 %v2786
    %v4614 = vunpack.c.l.b16 %v2787
    %v4615 = vunpack.c.h.b16 %v2787
    %v4616 = vunpack.c.l.b16 %v2788
    %v4617 = vunpack.c.h.b16 %v2788
    %v4618 = vunpack.c.l.b16 %v2789
    %v4619 = vunpack.c.h.b16 %v2789
    %v4620 = vunpack.c.l.b16 %v2790
    %v4621 = vunpack.c.h.b16 %v2790
    %v4622 = vunpack.c.l.b16 %v2791
    %v4623 = vunpack.c.h.b16 %v2791
    %v4624 = vunpack.c.l.b16 %v2792
    %v4625 = vunpack.c.h.b16 %v2792
    %v4626 = vunpack.c.l.b16 %v2793
    %v4627 = vunpack.c.h.b16 %v2793
    %v4628 = vunpack.c.l.b16 %v2794
    %v4629 = vunpack.c.h.b16 %v2794
    %v4630 = vunpack.c.l.b16 %v2795
    %v4631 = vunpack.c.h.b16 %v2795
    %v4632 = vunpack.c.l.b16 %v2796
    %v4633 = vunpack.c.h.b16 %v2796
    %v4634 = vunpack.c.l.b16 %v2797
    %v4635 = vunpack.c.h.b16 %v2797
    %v4636 = vunpack.c.l.b16 %v2798
    %v4637 = vunpack.c.h.b16 %v2798
    %v4638 = vunpack.c.l.b16 %v2799
    %v4639 = vunpack.c.h.b16 %v2799
    %v4640 = vunpack.c.l.b16 %v2800
    %v4641 = vunpack.c.h.b16 %v2800
    %v4642 = vunpack.c.l.b16 %v2801
    %v4643 = vunpack.c.h.b16 %v2801
    %v4644 = vunpack.c.l.b16 %v2802
    %v4645 = vunpack.c.h.b16 %v2802
    %v4646 = vunpack.c.l.b16 %v2803
    %v4647 = vunpack.c.h.b16 %v2803
    %v4648 = vunpack.c.l.b16 %v2804
    %v4649 = vunpack.c.h.b16 %v2804
    %v4650 = vunpack.c.l.b16 %v2805
    %v4651 = vunpack.c.h.b16 %v2805
    %v4652 = vunpack.c.l.b16 %v2806
    %v4653 = vunpack.c.h.b16 %v2806
    %v4654 = vunpack.c.l.b16 %v2807
    %v4655 = vunpack.c.h.b16 %v2807
    %v4656 = vunpack.c.l.b16 %v2808
    %v4657 = vunpack.c.h.b16 %v2808
    %v4658 = vunpack.c.l.b16 %v2809
    %v4659 = vunpack.c.h.b16 %v2809
    %v4660 = vunpack.c.l.b16 %v2810
    %v4661 = vunpack.c.h.b16 %v2810
    %v4662 = vunpack.c.l.b16 %v2811
    %v4663 = vunpack.c.h.b16 %v2811
    %v4664 = vunpack.c.l.b16 %v2812
    %v4665 = vunpack.c.h.b16 %v2812
    %v4666 = vunpack.c.l.b16 %v2813
    %v4667 = vunpack.c.h.b16 %v2813
    %v4668 = vunpack.c.l.b16 %v2814
    %v4669 = vunpack.c.h.b16 %v2814
    %v4670 = vunpack.c.l.b16 %v2815
    %v4671 = vunpack.c.h.b16 %v2815
    %v4672 = vunpack.c.l.b16 %v2816
    %v4673 = vunpack.c.h.b16 %v2816
    %v4674 = vunpack.c.l.b16 %v2817
    %v4675 = vunpack.c.h.b16 %v2817
    %v4676 = vunpack.c.l.b16 %v2818
    %v4677 = vunpack.c.h.b16 %v2818
    %v4678 = vunpack.c.l.b16 %v2819
    %v4679 = vunpack.c.h.b16 %v2819
    %v4680 = vunpack.c.l.b16 %v2820
    %v4681 = vunpack.c.h.b16 %v2820
    %v4682 = vunpack.c.l.b16 %v2821
    %v4683 = vunpack.c.h.b16 %v2821
    %v4684 = vunpack.c.l.b16 %v2822
    %v4685 = vunpack.c.h.b16 %v2822
    %v4686 = vunpack.c.l.b16 %v2823
    %v4687 = vunpack.c.h.b16 %v2823
    %v4688 = vunpack.c.l.b16 %v2824
    %v4689 = vunpack.c.h.b16 %v2824
    %v4690 = vunpack.c.l.b16 %v2825
    %v4691 = vunpack.c.h.b16 %v2825
    %v4692 = vunpack.c.l.b16 %v2826
    %v4693 = vunpack.c.h.b16 %v2826
    %v4694 = vunpack.c.l.b16 %v2827
    %v4695 = vunpack.c.h.b16 %v2827
    %v4696 = vunpack.c.l.b16 %v2828
    %v4697 = vunpack.c.h.b16 %v2828
    %v4698 = vunpack.c.l.b16 %v2829
    %v4699 = vunpack.c.h.b16 %v2829
    %v4700 = vunpack.c.l.b16 %v2830
    %v4701 = vunpack.c.h.b16 %v2830
    %v4702 = vunpack.c.l.b16 %v2831
    %v4703 = vunpack.c.h.b16 %v2831
    %v4704 = vunpack.c.l.b16 %v2832
    %v4705 = vunpack.c.h.b16 %v2832
    %v4706 = vunpack.c.l.b16 %v2833
    %v4707 = vunpack.c.h.b16 %v2833
    %v4708 = vunpack.c.l.b16 %v2834
    %v4709 = vunpack.c.h.b16 %v2834
    %v4710 = vunpack.c.l.b16 %v2835
    %v4711 = vunpack.c.h.b16 %v2835
    %v4712 = vunpack.c.l.b16 %v2836
    %v4713 = vunpack.c.h.b16 %v2836
    %v4714 = vunpack.c.l.b16 %v2837
    %v4715 = vunpack.c.h.b16 %v2837
    %v4716 = vunpack.c.l.b16 %v2838
    %v4717 = vunpack.c.h.b16 %v2838
    %v4718 = vunpack.c.l.b16 %v2839
    %v4719 = vunpack.c.h.b16 %v2839
    %v4720 = vunpack.c.l.b16 %v2840
    %v4721 = vunpack.c.h.b16 %v2840
    %v4722 = vunpack.c.l.b16 %v2841
    %v4723 = vunpack.c.h.b16 %v2841
    %v4724 = vunpack.c.l.b16 %v2842
    %v4725 = vunpack.c.h.b16 %v2842
    %v4726 = vunpack.c.l.b16 %v2843
    %v4727 = vunpack.c.h.b16 %v2843
    %v4728 = vunpack.c.l.b16 %v2844
    %v4729 = vunpack.c.h.b16 %v2844
    %v4730 = vunpack.c.l.b16 %v2845
    %v4731 = vunpack.c.h.b16 %v2845
    %v4732 = vunpack.c.l.b16 %v2846
    %v4733 = vunpack.c.h.b16 %v2846
    %v4734 = vunpack.c.l.b16 %v2847
    %v4735 = vunpack.c.h.b16 %v2847
    %v4736 = vunpack.c.l.b16 %v2848
    %v4737 = vunpack.c.h.b16 %v2848
    %v4738 = vunpack.c.l.b16 %v2849
    %v4739 = vunpack.c.h.b16 %v2849
    %v4740 = vunpack.c.l.b16 %v2850
    %v4741 = vunpack.c.h.b16 %v2850
    %v4742 = vunpack.c.l.b16 %v2851
    %v4743 = vunpack.c.h.b16 %v2851
    %v4744 = vunpack.c.l.b16 %v2852
    %v4745 = vunpack.c.h.b16 %v2852
    %v4746 = vunpack.c.l.b16 %v2853
    %v4747 = vunpack.c.h.b16 %v2853
    %v4748 = vunpack.c.l.b16 %v2854
    %v4749 = vunpack.c.h.b16 %v2854
    %v4750 = vunpack.c.l.b16 %v2855
    %v4751 = vunpack.c.h.b16 %v2855
    %v4752 = vunpack.c.l.b16 %v2856
    %v4753 = vunpack.c.h.b16 %v2856
    %v4754 = vunpack.c.l.b16 %v2857
    %v4755 = vunpack.c.h.b16 %v2857
    %v4756 = vunpack.c.l.b16 %v2858
    %v4757 = vunpack.c.h.b16 %v2858
    %v4758 = vunpack.c.l.b16 %v2859
    %v4759 = vunpack.c.h.b16 %v2859
    %v4760 = vunpack.c.l.b16 %v2860
    %v4761 = vunpack.c.h.b16 %v2860
    %v4762 = vunpack.c.l.b16 %v2861
    %v4763 = vunpack.c.h.b16 %v2861
    %v4764 = vunpack.c.l.b16 %v2862
    %v4765 = vunpack.c.h.b16 %v2862
    %v4766 = vunpack.c.l.b16 %v2863
    %v4767 = vunpack.c.h.b16 %v2863
    %v4768 = vunpack.c.l.b16 %v2864
    %v4769 = vunpack.c.h.b16 %v2864
    %v4770 = vunpack.c.l.b16 %v2865
    %v4771 = vunpack.c.h.b16 %v2865
    %v4772 = vunpack.c.l.b16 %v2866
    %v4773 = vunpack.c.h.b16 %v2866
    %v4774 = vunpack.c.l.b16 %v2867
    %v4775 = vunpack.c.h.b16 %v2867
    %v4776 = vunpack.c.l.b16 %v2868
    %v4777 = vunpack.c.h.b16 %v2868
    %v4778 = vunpack.c.l.b16 %v2869
    %v4779 = vunpack.c.h.b16 %v2869
    %v4780 = vunpack.c.l.b16 %v2870
    %v4781 = vunpack.c.h.b16 %v2870
    %v4782 = vunpack.c.l.b16 %v2871
    %v4783 = vunpack.c.h.b16 %v2871
    %v4784 = vunpack.c.l.b16 %v2872
    %v4785 = vunpack.c.h.b16 %v2872
    %v4786 = vunpack.c.l.b16 %v2873
    %v4787 = vunpack.c.h.b16 %v2873
    %v4788 = vunpack.c.l.b16 %v2874
    %v4789 = vunpack.c.h.b16 %v2874
    %v4790 = vunpack.c.l.b16 %v2875
    %v4791 = vunpack.c.h.b16 %v2875
    %v4792 = vunpack.c.l.b16 %v2876
    %v4793 = vunpack.c.h.b16 %v2876
    %v4794 = vunpack.c.l.b16 %v2877
    %v4795 = vunpack.c.h.b16 %v2877
    %v4796 = vunpack.c.l.b16 %v2878
    %v4797 = vunpack.c.h.b16 %v2878
    %v4798 = vunpack.c.l.b16 %v2879
    %v4799 = vunpack.c.h.b16 %v2879
    %v4800 = vunpack.c.l.b16 %v2880
    %v4801 = vunpack.c.h.b16 %v2880
    %v4802 = vunpack.c.l.b16 %v2881
    %v4803 = vunpack.c.h.b16 %v2881
    %v4804 = vunpack.c.l.b16 %v2882
    %v4805 = vunpack.c.h.b16 %v2882
    %v4806 = vunpack.c.l.b16 %v2883
    %v4807 = vunpack.c.h.b16 %v2883
    %v4808 = vunpack.c.l.b16 %v2884
    %v4809 = vunpack.c.h.b16 %v2884
    %v4810 = vunpack.c.l.b16 %v2885
    %v4811 = vunpack.c.h.b16 %v2885
    %v4812 = vunpack.c.l.b16 %v2886
    %v4813 = vunpack.c.h.b16 %v2886
    %v4814 = vunpack.c.l.b16 %v2887
    %v4815 = vunpack.c.h.b16 %v2887
    %v4816 = vunpack.c.l.b16 %v2888
    %v4817 = vunpack.c.h.b16 %v2888
    %v4818 = vunpack.c.l.b16 %v2889
    %v4819 = vunpack.c.h.b16 %v2889
    %v4820 = vunpack.c.l.b16 %v2890
    %v4821 = vunpack.c.h.b16 %v2890
    %v4822 = vunpack.c.l.b16 %v2891
    %v4823 = vunpack.c.h.b16 %v2891
    %v4824 = vunpack.c.l.b16 %v2892
    %v4825 = vunpack.c.h.b16 %v2892
    %v4826 = vunpack.c.l.b16 %v2893
    %v4827 = vunpack.c.h.b16 %v2893
    %v4828 = vunpack.c.l.b16 %v2894
    %v4829 = vunpack.c.h.b16 %v2894
    %v4830 = vunpack.c.l.b16 %v2895
    %v4831 = vunpack.c.h.b16 %v2895
    %v4832 = vunpack.c.l.b16 %v2896
    %v4833 = vunpack.c.h.b16 %v2896
    %v4834 = vunpack.c.l.b16 %v2897
    %v4835 = vunpack.c.h.b16 %v2897
    %v4836 = vunpack.c.l.b16 %v2898
    %v4837 = vunpack.c.h.b16 %v2898
    %v4838 = vunpack.c.l.b16 %v2899
    %v4839 = vunpack.c.h.b16 %v2899
    %v4840 = vunpack.c.l.b16 %v2900
    %v4841 = vunpack.c.h.b16 %v2900
    %v4842 = vunpack.c.l.b16 %v2901
    %v4843 = vunpack.c.h.b16 %v2901
    %v4844 = vunpack.c.l.b16 %v2902
    %v4845 = vunpack.c.h.b16 %v2902
    %v4846 = vunpack.c.l.b16 %v2903
    %v4847 = vunpack.c.h.b16 %v2903
    %v4848 = vunpack.c.l.b16 %v2904
    %v4849 = vunpack.c.h.b16 %v2904
    %v4850 = vunpack.c.l.b16 %v2905
    %v4851 = vunpack.c.h.b16 %v2905
    %v4852 = vunpack.c.l.b16 %v2906
    %v4853 = vunpack.c.h.b16 %v2906
    %v4854 = vunpack.c.l.b16 %v2907
    %v4855 = vunpack.c.h.b16 %v2907
    %v4856 = vunpack.c.l.b16 %v2908
    %v4857 = vunpack.c.h.b16 %v2908
    %v4858 = vunpack.c.l.b16 %v2909
    %v4859 = vunpack.c.h.b16 %v2909
    %v4860 = vunpack.c.l.b16 %v2910
    %v4861 = vunpack.c.h.b16 %v2910
    %v4862 = vunpack.c.l.b16 %v2911
    %v4863 = vunpack.c.h.b16 %v2911
    %v4864 = vunpack.c.l.b16 %v2912
    %v4865 = vunpack.c.h.b16 %v2912
    %v4866 = vunpack.c.l.b16 %v2913
    %v4867 = vunpack.c.h.b16 %v2913
    %v4868 = vunpack.c.l.b16 %v2914
    %v4869 = vunpack.c.h.b16 %v2914
    %v4870 = vunpack.c.l.b16 %v2915
    %v4871 = vunpack.c.h.b16 %v2915
    %v4872 = vunpack.c.l.b16 %v2916
    %v4873 = vunpack.c.h.b16 %v2916
    %v4874 = vunpack.c.l.b16 %v2917
    %v4875 = vunpack.c.h.b16 %v2917
    %v4876 = vunpack.c.l.b16 %v2918
    %v4877 = vunpack.c.h.b16 %v2918
    %v4878 = vunpack.c.l.b16 %v2919
    %v4879 = vunpack.c.h.b16 %v2919
    %v4880 = vunpack.c.l.b16 %v2920
    %v4881 = vunpack.c.h.b16 %v2920
    %v4882 = vunpack.c.l.b16 %v2921
    %v4883 = vunpack.c.h.b16 %v2921
    %v4884 = vunpack.c.l.b16 %v2922
    %v4885 = vunpack.c.h.b16 %v2922
    %v4886 = vunpack.c.l.b16 %v2923
    %v4887 = vunpack.c.h.b16 %v2923
    %v4888 = vunpack.c.l.b16 %v2924
    %v4889 = vunpack.c.h.b16 %v2924
    %v4890 = vunpack.c.l.b16 %v2925
    %v4891 = vunpack.c.h.b16 %v2925
    %v4892 = vunpack.c.l.b16 %v2926
    %v4893 = vunpack.c.h.b16 %v2926
    %v4894 = vunpack.c.l.b16 %v2927
    %v4895 = vunpack.c.h.b16 %v2927
    %v4896 = vunpack.c.l.b16 %v2928
    %v4897 = vunpack.c.h.b16 %v2928
    %v4898 = vunpack.c.l.b16 %v2929
    %v4899 = vunpack.c.h.b16 %v2929
    %v4900 = vunpack.c.l.b16 %v2930
    %v4901 = vunpack.c.h.b16 %v2930
    %v4902 = vunpack.c.l.b16 %v2931
    %v4903 = vunpack.c.h.b16 %v2931
    %v4904 = vunpack.c.l.b16 %v2932
    %v4905 = vunpack.c.h.b16 %v2932
    %v4906 = vunpack.c.l.b16 %v2933
    %v4907 = vunpack.c.h.b16 %v2933
    %v4908 = vunpack.c.l.b16 %v2934
    %v4909 = vunpack.c.h.b16 %v2934
    %v4910 = vunpack.c.l.b16 %v2935
    %v4911 = vunpack.c.h.b16 %v2935
    %v4912 = vunpack.c.l.b16 %v2936
    %v4913 = vunpack.c.h.b16 %v2936
    %v4914 = vunpack.c.l.b16 %v2937
    %v4915 = vunpack.c.h.b16 %v2937
    %v4916 = vunpack.c.l.b16 %v2938
    %v4917 = vunpack.c.h.b16 %v2938
    %v4918 = vunpack.c.l.b16 %v2939
    %v4919 = vunpack.c.h.b16 %v2939
    %v4920 = vunpack.c.l.b16 %v2940
    %v4921 = vunpack.c.h.b16 %v2940
    %v4922 = vunpack.c.l.b16 %v2941
    %v4923 = vunpack.c.h.b16 %v2941
    %v4924 = vunpack.c.l.b16 %v2942
    %v4925 = vunpack.c.h.b16 %v2942
    %v4926 = vunpack.c.l.b16 %v2943
    %v4927 = vunpack.c.h.b16 %v2943
    %v4928 = vunpack.c.l.b16 %v2944
    %v4929 = vunpack.c.h.b16 %v2944
    %v4930 = vunpack.c.l.b16 %v2945
    %v4931 = vunpack.c.h.b16 %v2945
    %v4932 = vunpack.c.l.b16 %v2946
    %v4933 = vunpack.c.h.b16 %v2946
    %v4934 = vunpack.c.l.b16 %v2947
    %v4935 = vunpack.c.h.b16 %v2947
    %v4936 = vunpack.c.l.b16 %v2948
    %v4937 = vunpack.c.h.b16 %v2948
    %v4938 = vunpack.c.l.b16 %v2949
    %v4939 = vunpack.c.h.b16 %v2949
    %v4940 = vunpack.c.l.b16 %v2950
    %v4941 = vunpack.c.h.b16 %v2950
    %v4942 = vunpack.c.l.b16 %v2951
    %v4943 = vunpack.c.h.b16 %v2951
    %v4944 = vunpack.c.l.b16 %v2952
    %v4945 = vunpack.c.h.b16 %v2952
    %v4946 = vunpack.c.l.b16 %v2953
    %v4947 = vunpack.c.h.b16 %v2953
    %v4948 = vunpack.c.l.b16 %v2954
    %v4949 = vunpack.c.h.b16 %v2954
    %v4950 = vunpack.c.l.b16 %v2955
    %v4951 = vunpack.c.h.b16 %v2955
    %v4952 = vunpack.c.l.b16 %v2956
    %v4953 = vunpack.c.h.b16 %v2956
    %v4954 = vunpack.c.l.b16 %v2957
    %v4955 = vunpack.c.h.b16 %v2957
    %v4956 = vunpack.c.l.b16 %v2958
    %v4957 = vunpack.c.h.b16 %v2958
    %v4958 = vunpack.c.l.b16 %v2959
    %v4959 = vunpack.c.h.b16 %v2959
    %v4960 = vunpack.c.l.b16 %v2960
    %v4961 = vunpack.c.h.b16 %v2960
    %v4962 = vunpack.c.l.b16 %v2961
    %v4963 = vunpack.c.h.b16 %v2961
    %v4964 = vunpack.c.l.b16 %v2962
    %v4965 = vunpack.c.h.b16 %v2962
    %v4966 = vunpack.c.l.b16 %v2963
    %v4967 = vunpack.c.h.b16 %v2963
    %v4968 = vunpack.c.l.b16 %v2964
    %v4969 = vunpack.c.h.b16 %v2964
    %v4970 = vunpack.c.l.b16 %v2965
    %v4971 = vunpack.c.h.b16 %v2965
    %v4972 = vunpack.c.l.b16 %v2966
    %v4973 = vunpack.c.h.b16 %v2966
    %v4974 = vunpack.c.l.b16 %v2967
    %v4975 = vunpack.c.h.b16 %v2967
    %v4976 = vunpack.c.l.b16 %v2968
    %v4977 = vunpack.c.h.b16 %v2968
    %v4978 = vunpack.c.l.b16 %v2969
    %v4979 = vunpack.c.h.b16 %v2969
    %v4980 = vunpack.c.l.b16 %v2970
    %v4981 = vunpack.c.h.b16 %v2970
    %v4982 = vunpack.c.l.b16 %v2971
    %v4983 = vunpack.c.h.b16 %v2971
    %v4984 = vunpack.c.l.b16 %v2972
    %v4985 = vunpack.c.h.b16 %v2972
    %v4986 = vunpack.c.l.b16 %v2973
    %v4987 = vunpack.c.h.b16 %v2973
    %v4988 = vunpack.c.l.b16 %v2974
    %v4989 = vunpack.c.h.b16 %v2974
    %v4990 = vunpack.c.l.b16 %v2975
    %v4991 = vunpack.c.h.b16 %v2975
    %v4992 = vunpack.c.l.b16 %v2976
    %v4993 = vunpack.c.h.b16 %v2976
    %v4994 = vunpack.c.l.b16 %v2977
    %v4995 = vunpack.c.h.b16 %v2977
    %v4996 = vunpack.c.l.b16 %v2978
    %v4997 = vunpack.c.h.b16 %v2978
    %v4998 = vunpack.c.l.b16 %v2979
    %v4999 = vunpack.c.h.b16 %v2979
    %v5000 = vunpack.c.l.b16 %v2980
    %v5001 = vunpack.c.h.b16 %v2980
    %v5002 = vunpack.c.l.b16 %v2981
    %v5003 = vunpack.c.h.b16 %v2981
    %v5004 = vunpack.c.l.b16 %v2982
    %v5005 = vunpack.c.h.b16 %v2982
    %v5006 = vunpack.c.l.b16 %v2983
    %v5007 = vunpack.c.h.b16 %v2983
    %v5008 = vunpack.c.l.b16 %v2984
    %v5009 = vunpack.c.h.b16 %v2984
    %v5010 = vunpack.c.l.b16 %v2985
    %v5011 = vunpack.c.h.b16 %v2985
    %v5012 = vunpack.c.l.b16 %v2986
    %v5013 = vunpack.c.h.b16 %v2986
    %v5014 = vunpack.c.l.b16 %v2987
    %v5015 = vunpack.c.h.b16 %v2987
    %v5016 = vunpack.c.l.b16 %v2988
    %v5017 = vunpack.c.h.b16 %v2988
    %v5018 = vunpack.c.l.b16 %v2989
    %v5019 = vunpack.c.h.b16 %v2989
    %v5020 = vunpack.c.l.b16 %v2990
    %v5021 = vunpack.c.h.b16 %v2990
    %v5022 = vunpack.c.l.b16 %v2991
    %v5023 = vunpack.c.h.b16 %v2991
    %v5024 = vunpack.c.l.b16 %v2992
    %v5025 = vunpack.c.h.b16 %v2992
    %v5026 = vpack.c.b16 %v3754, %v3746
    %v5027 = vpack.c.b16 %v3755, %v3747
    %v5028 = vpack.c.b16 %v3756, %v3748
    %v5029 = vpack.c.b16 %v3757, %v3749
    %v5030 = vpack.c.b16 %v3758, %v3750
    %v5031 = vpack.c.b16 %v3759, %v3751
    %v5032 = vpack.c.b16 %v3760, %v3752
    %v5033 = vpack.c.b16 %v3761, %v3753
    %v5034 = vpack.c.b16 %v3770, %v3762
    %v5035 = vpack.c.b16 %v3771, %v3763
    %v5036 = vpack.c.b16 %v3772, %v3764
    %v5037 = vpack.c.b16 %v3773, %v3765
    %v5038 = vpack.c.b16 %v3774, %v3766
    %v5039 = vpack.c.b16 %v3775, %v3767
    %v5040 = vpack.c.b16 %v3776, %v3768
    %v5041 = vpack.c.b16 %v3777, %v3769
    %v5042 = vpack.c.b16 %v3786, %v3778
    %v5043 = vpack.c.b16 %v3787, %v3779
    %v5044 = vpack.c.b16 %v3788, %v3780
    %v5045 = vpack.c.b16 %v3789, %v3781
    %v5046 = vpack.c.b16 %v3790, %v3782
    %v5047 = vpack.c.b16 %v3791, %v3783
    %v5048 = vpack.c.b16 %v3792, %v3784
    %v5049 = vpack.c.b16 %v3793, %v3785
    %v5050 = vpack.c.b16 %v3802, %v3794
    %v5051 = vpack.c.b16 %v3803, %v3795
    %v5052 = vpack.c.b16 %v3804, %v3796
    %v5053 = vpack.c.b16 %v3805, %v3797
    %v5054 = vpack.c.b16 %v3806, %v3798
    %v5055 = vpack.c.b16 %v3807, %v3799
    %v5056 = vpack.c.b16 %v3808, %v3800
    %v5057 = vpack.c.b16 %v3809, %v3801
    %v5058 = vpack.c.b16 %v3818, %v3810
    %v5059 = vpack.c.b16 %v3819, %v3811
    %v5060 = vpack.c.b16 %v3820, %v3812
    %v5061 = vpack.c.b16 %v3821, %v3813
    %v5062 = vpack.c.b16 %v3822, %v3814
    %v5063 = vpack.c.b16 %v3823, %v3815
    %v5064 = vpack.c.b16 %v3824, %v3816
    %v5065 = vpack.c.b16 %v3825, %v3817
    %v5066 = vpack.c.b16 %v3834, %v3826
    %v5067 = vpack.c.b16 %v3835, %v3827
    %v5068 = vpack.c.b16 %v3836, %v3828
    %v5069 = vpack.c.b16 %v3837, %v3829
    %v5070 = vpack.c.b16 %v3838, %v3830
    %v5071 = vpack.c.b16 %v3839, %v3831
    %v5072 = vpack.c.b16 %v3840, %v3832
    %v5073 = vpack.c.b16 %v3841, %v3833
    %v5074 = vpack.c.b16 %v3850, %v3842
    %v5075 = vpack.c.b16 %v3851, %v3843
    %v5076 = vpack.c.b16 %v3852, %v3844
    %v5077 = vpack.c.b16 %v3853, %v3845
    %v5078 = vpack.c.b16 %v3854, %v3846
    %v5079 = vpack.c.b16 %v3855, %v3847
    %v5080 = vpack.c.b16 %v3856, %v3848
    %v5081 = vpack.c.b16 %v3857, %v3849
    %v5082 = vpack.c.b16 %v3866, %v3858
    %v5083 = vpack.c.b16 %v3867, %v3859
    %v5084 = vpack.c.b16 %v3868, %v3860
    %v5085 = vpack.c.b16 %v3869, %v3861
    %v5086 = vpack.c.b16 %v3870, %v3862
    %v5087 = vpack.c.b16 %v3871, %v3863
    %v5088 = vpack.c.b16 %v3872, %v3864
    %v5089 = vpack.c.b16 %v3873, %v3865
    %v5090 = vpack.c.b16 %v3882, %v3874
    %v5091 = vpack.c.b16 %v3883, %v3875
    %v5092 = vpack.c.b16 %v3884, %v3876
    %v5093 = vpack.c.b16 %v3885, %v3877
    %v5094 = vpack.c.b16 %v3886, %v3878
    %v5095 = vpack.c.b16 %v3887, %v3879
    %v5096 = vpack.c.b16 %v3888, %v3880
    %v5097 = vpack.c.b16 %v3889, %v3881
    %v5098 = vpack.c.b16 %v3898, %v3890
    %v5099 = vpack.c.b16 %v3899, %v3891
    %v5100 = vpack.c.b16 %v3900, %v3892
    %v5101 = vpack.c.b16 %v3901, %v3893
    %v5102 = vpack.c.b16 %v3902, %v3894
    %v5103 = vpack.c.b16 %v3903, %v3895
    %v5104 = vpack.c.b16 %v3904, %v3896
    %v5105 = vpack.c.b16 %v3905, %v3897
    %v5106 = vpack.c.b16 %v3914, %v3906
    %v5107 = vpack.c.b16 %v3915, %v3907
    %v5108 = vpack.c.b16 %v3916, %v3908
    %v5109 = vpack.c.b16 %v3917, %v3909
    %v5110 = vpack.c.b16 %v3918, %v3910
    %v5111 = vpack.c.b16 %v3919, %v3911
    %v5112 = vpack.c.b16 %v3920, %v3912
    %v5113 = vpack.c.b16 %v3921, %v3913
    %v5114 = vpack.c.b16 %v3930, %v3922
    %v5115 = vpack.c.b16 %v3931, %v3923
    %v5116 = vpack.c.b16 %v3932, %v3924
    %v5117 = vpack.c.b16 %v3933, %v3925
    %v5118 = vpack.c.b16 %v3934, %v3926
    %v5119 = vpack.c.b16 %v3935, %v3927
    %v5120 = vpack.c.b16 %v3936, %v3928
    %v5121 = vpack.c.b16 %v3937, %v3929
    %v5122 = vpack.c.b16 %v3946, %v3938
    %v5123 = vpack.c.b16 %v3947, %v3939
    %v5124 = vpack.c.b16 %v3948, %v3940
    %v5125 = vpack.c.b16 %v3949, %v3941
    %v5126 = vpack.c.b16 %v3950, %v3942
    %v5127 = vpack.c.b16 %v3951, %v3943
    %v5128 = vpack.c.b16 %v3952, %v3944
    %v5129 = vpack.c.b16 %v3953, %v3945
    %v5130 = vpack.c.b16 %v3962, %v3954
    %v5131 = vpack.c.b16 %v3963, %v3955
    %v5132 = vpack.c.b16 %v3964, %v3956
    %v5133 = vpack.c.b16 %v3965, %v3957
    %v5134 = vpack.c.b16 %v3966, %v3958
    %v5135 = vpack.c.b16 %v3967, %v3959
    %v5136 = vpack.c.b16 %v3968, %v3960
    %v5137 = vpack.c.b16 %v3969, %v3961
    %v5138 = vpack.c.b16 %v3978, %v3970
    %v5139 = vpack.c.b16 %v3979, %v3971
    %v5140 = vpack.c.b16 %v3980, %v3972
    %v5141 = vpack.c.b16 %v3981, %v3973
    %v5142 = vpack.c.b16 %v3982, %v3974
    %v5143 = vpack.c.b16 %v3983, %v3975
    %v5144 = vpack.c.b16 %v3984, %v3976
    %v5145 = vpack.c.b16 %v3985, %v3977
    %v5146 = vpack.c.b16 %v3994, %v3986
    %v5147 = vpack.c.b16 %v3995, %v3987
    %v5148 = vpack.c.b16 %v3996, %v3988
    %v5149 = vpack.c.b16 %v3997, %v3989
    %v5150 = vpack.c.b16 %v3998, %v3990
    %v5151 = vpack.c.b16 %v3999, %v3991
    %v5152 = vpack.c.b16 %v4000, %v3992
    %v5153 = vpack.c.b16 %v4001, %v3993
    %v5154 = vpack.c.b16 %v4010, %v4002
    %v5155 = vpack.c.b16 %v4011, %v4003
    %v5156 = vpack.c.b16 %v4012, %v4004
    %v5157 = vpack.c.b16 %v4013, %v4005
    %v5158 = vpack.c.b16 %v4014, %v4006
    %v5159 = vpack.c.b16 %v4015, %v4007
    %v5160 = vpack.c.b16 %v4016, %v4008
    %v5161 = vpack.c.b16 %v4017, %v4009
    %v5162 = vpack.c.b16 %v4026, %v4018
    %v5163 = vpack.c.b16 %v4027, %v4019
    %v5164 = vpack.c.b16 %v4028, %v4020
    %v5165 = vpack.c.b16 %v4029, %v4021
    %v5166 = vpack.c.b16 %v4030, %v4022
    %v5167 = vpack.c.b16 %v4031, %v4023
    %v5168 = vpack.c.b16 %v4032, %v4024
    %v5169 = vpack.c.b16 %v4033, %v4025
    %v5170 = vpack.c.b16 %v4042, %v4034
    %v5171 = vpack.c.b16 %v4043, %v4035
    %v5172 = vpack.c.b16 %v4044, %v4036
    %v5173 = vpack.c.b16 %v4045, %v4037
    %v5174 = vpack.c.b16 %v4046, %v4038
    %v5175 = vpack.c.b16 %v4047, %v4039
    %v5176 = vpack.c.b16 %v4048, %v4040
    %v5177 = vpack.c.b16 %v4049, %v4041
    %v5178 = vpack.c.b16 %v4058, %v4050
    %v5179 = vpack.c.b16 %v4059, %v4051
    %v5180 = vpack.c.b16 %v4060, %v4052
    %v5181 = vpack.c.b16 %v4061, %v4053
    %v5182 = vpack.c.b16 %v4062, %v4054
    %v5183 = vpack.c.b16 %v4063, %v4055
    %v5184 = vpack.c.b16 %v4064, %v4056
    %v5185 = vpack.c.b16 %v4065, %v4057
    %v5186 = vpack.c.b16 %v4074, %v4066
    %v5187 = vpack.c.b16 %v4075, %v4067
    %v5188 = vpack.c.b16 %v4076, %v4068
    %v5189 = vpack.c.b16 %v4077, %v4069
    %v5190 = vpack.c.b16 %v4078, %v4070
    %v5191 = vpack.c.b16 %v4079, %v4071
    %v5192 = vpack.c.b16 %v4080, %v4072
    %v5193 = vpack.c.b16 %v4081, %v4073
    %v5194 = vpack.c.b16 %v4090, %v4082
    %v5195 = vpack.c.b16 %v4091, %v4083
    %v5196 = vpack.c.b16 %v4092, %v4084
    %v5197 = vpack.c.b16 %v4093, %v4085
    %v5198 = vpack.c.b16 %v4094, %v4086
    %v5199 = vpack.c.b16 %v4095, %v4087
    %v5200 = vpack.c.b16 %v4096, %v4088
    %v5201 = vpack.c.b16 %v4097, %v4089
    %v5202 = vpack.c.b16 %v4106, %v4098
    %v5203 = vpack.c.b16 %v4107, %v4099
    %v5204 = vpack.c.b16 %v4108, %v4100
    %v5205 = vpack.c.b16 %v4109, %v4101
    %v5206 = vpack.c.b16 %v4110, %v4102
    %v5207 = vpack.c.b16 %v4111, %v4103
    %v5208 = vpack.c.b16 %v4112, %v4104
    %v5209 = vpack.c.b16 %v4113, %v4105
    %v5210 = vpack.c.b16 %v4122, %v4114
    %v5211 = vpack.c.b16 %v4123, %v4115
    %v5212 = vpack.c.b16 %v4124, %v4116
    %v5213 = vpack.c.b16 %v4125, %v4117
    %v5214 = vpack.c.b16 %v4126, %v4118
    %v5215 = vpack.c.b16 %v4127, %v4119
    %v5216 = vpack.c.b16 %v4128, %v4120
    %v5217 = vpack.c.b16 %v4129, %v4121
    %v5218 = vpack.c.b16 %v4138, %v4130
    %v5219 = vpack.c.b16 %v4139, %v4131
    %v5220 = vpack.c.b16 %v4140, %v4132
    %v5221 = vpack.c.b16 %v4141, %v4133
    %v5222 = vpack.c.b16 %v4142, %v4134
    %v5223 = vpack.c.b16 %v4143, %v4135
    %v5224 = vpack.c.b16 %v4144, %v4136
    %v5225 = vpack.c.b16 %v4145, %v4137
    %v5226 = vpack.c.b16 %v4154, %v4146
    %v5227 = vpack.c.b16 %v4155, %v4147
    %v5228 = vpack.c.b16 %v4156, %v4148
    %v5229 = vpack.c.b16 %v4157, %v4149
    %v5230 = vpack.c.b16 %v4158, %v4150
    %v5231 = vpack.c.b16 %v4159, %v4151
    %v5232 = vpack.c.b16 %v4160, %v4152
    %v5233 = vpack.c.b16 %v4161, %v4153
    %v5234 = vpack.c.b16 %v4170, %v4162
    %v5235 = vpack.c.b16 %v4171, %v4163
    %v5236 = vpack.c.b16 %v4172, %v4164
    %v5237 = vpack.c.b16 %v4173, %v4165
    %v5238 = vpack.c.b16 %v4174, %v4166
    %v5239 = vpack.c.b16 %v4175, %v4167
    %v5240 = vpack.c.b16 %v4176, %v4168
    %v5241 = vpack.c.b16 %v4177, %v4169
    %v5242 = vpack.c.b16 %v4186, %v4178
    %v5243 = vpack.c.b16 %v4187, %v4179
    %v5244 = vpack.c.b16 %v4188, %v4180
    %v5245 = vpack.c.b16 %v4189, %v4181
    %v5246 = vpack.c.b16 %v4190, %v4182
    %v5247 = vpack.c.b16 %v4191, %v4183
    %v5248 = vpack.c.b16 %v4192, %v4184
    %v5249 = vpack.c.b16 %v4193, %v4185
    %v5250 = vpack.c.b16 %v4202, %v4194
    %v5251 = vpack.c.b16 %v4203, %v4195
    %v5252 = vpack.c.b16 %v4204, %v4196
    %v5253 = vpack.c.b16 %v4205, %v4197
    %v5254 = vpack.c.b16 %v4206, %v4198
    %v5255 = vpack.c.b16 %v4207, %v4199
    %v5256 = vpack.c.b16 %v4208, %v4200
    %v5257 = vpack.c.b16 %v4209, %v4201
    %v5258 = vpack.c.b16 %v4218, %v4210
    %v5259 = vpack.c.b16 %v4219, %v4211
    %v5260 = vpack.c.b16 %v4220, %v4212
    %v5261 = vpack.c.b16 %v4221, %v4213
    %v5262 = vpack.c.b16 %v4222, %v4214
    %v5263 = vpack.c.b16 %v4223, %v4215
    %v5264 = vpack.c.b16 %v4224, %v4216
    %v5265 = vpack.c.b16 %v4225, %v4217
    %v5266 = vpack.c.b16 %v4234, %v4226
    %v5267 = vpack.c.b16 %v4235, %v4227
    %v5268 = vpack.c.b16 %v4236, %v4228
    %v5269 = vpack.c.b16 %v4237, %v4229
    %v5270 = vpack.c.b16 %v4238, %v4230
    %v5271 = vpack.c.b16 %v4239, %v4231
    %v5272 = vpack.c.b16 %v4240, %v4232
    %v5273 = vpack.c.b16 %v4241, %v4233
    %v5274 = vpack.c.b16 %v4250, %v4242
    %v5275 = vpack.c.b16 %v4251, %v4243
    %v5276 = vpack.c.b16 %v4252, %v4244
    %v5277 = vpack.c.b16 %v4253, %v4245
    %v5278 = vpack.c.b16 %v4254, %v4246
    %v5279 = vpack.c.b16 %v4255, %v4247
    %v5280 = vpack.c.b16 %v4256, %v4248
    %v5281 = vpack.c.b16 %v4257, %v4249
    %v5282 = vpack.c.b16 %v4266, %v4258
    %v5283 = vpack.c.b16 %v4267, %v4259
    %v5284 = vpack.c.b16 %v4268, %v4260
    %v5285 = vpack.c.b16 %v4269, %v4261
    %v5286 = vpack.c.b16 %v4270, %v4262
    %v5287 = vpack.c.b16 %v4271, %v4263
    %v5288 = vpack.c.b16 %v4272, %v4264
    %v5289 = vpack.c.b16 %v4273, %v4265
    %v5290 = vpack.c.b16 %v4282, %v4274
    %v5291 = vpack.c.b16 %v4283, %v4275
    %v5292 = vpack.c.b16 %v4284, %v4276
    %v5293 = vpack.c.b16 %v4285, %v4277
    %v5294 = vpack.c.b16 %v4286, %v4278
    %v5295 = vpack.c.b16 %v4287, %v4279
    %v5296 = vpack.c.b16 %v4288, %v4280
    %v5297 = vpack.c.b16 %v4289, %v4281
    %v5298 = vpack.c.b16 %v4298, %v4290
    %v5299 = vpack.c.b16 %v4299, %v4291
    %v5300 = vpack.c.b16 %v4300, %v4292
    %v5301 = vpack.c.b16 %v4301, %v4293
    %v5302 = vpack.c.b16 %v4302, %v4294
    %v5303 = vpack.c.b16 %v4303, %v4295
    %v5304 = vpack.c.b16 %v4304, %v4296
    %v5305 = vpack.c.b16 %v4305, %v4297
    %v5306 = vpack.c.b16 %v4314, %v4306
    %v5307 = vpack.c.b16 %v4315, %v4307
    %v5308 = vpack.c.b16 %v4316, %v4308
    %v5309 = vpack.c.b16 %v4317, %v4309
    %v5310 = vpack.c.b16 %v4318, %v4310
    %v5311 = vpack.c.b16 %v4319, %v4311
    %v5312 = vpack.c.b16 %v4320, %v4312
    %v5313 = vpack.c.b16 %v4321, %v4313
    %v5314 = vpack.c.b16 %v4330, %v4322
    %v5315 = vpack.c.b16 %v4331, %v4323
    %v5316 = vpack.c.b16 %v4332, %v4324
    %v5317 = vpack.c.b16 %v4333, %v4325
    %v5318 = vpack.c.b16 %v4334, %v4326
    %v5319 = vpack.c.b16 %v4335, %v4327
    %v5320 = vpack.c.b16 %v4336, %v4328
    %v5321 = vpack.c.b16 %v4337, %v4329
    %v5322 = vpack.c.b16 %v4346, %v4338
    %v5323 = vpack.c.b16 %v4347, %v4339
    %v5324 = vpack.c.b16 %v4348, %v4340
    %v5325 = vpack.c.b16 %v4349, %v4341
    %v5326 = vpack.c.b16 %v4350, %v4342
    %v5327 = vpack.c.b16 %v4351, %v4343
    %v5328 = vpack.c.b16 %v4352, %v4344
    %v5329 = vpack.c.b16 %v4353, %v4345
    %v5330 = vpack.c.b16 %v4362, %v4354
    %v5331 = vpack.c.b16 %v4363, %v4355
    %v5332 = vpack.c.b16 %v4364, %v4356
    %v5333 = vpack.c.b16 %v4365, %v4357
    %v5334 = vpack.c.b16 %v4366, %v4358
    %v5335 = vpack.c.b16 %v4367, %v4359
    %v5336 = vpack.c.b16 %v4368, %v4360
    %v5337 = vpack.c.b16 %v4369, %v4361
    %v5338 = vpack.c.b16 %v4378, %v4370
    %v5339 = vpack.c.b16 %v4379, %v4371
    %v5340 = vpack.c.b16 %v4380, %v4372
    %v5341 = vpack.c.b16 %v4381, %v4373
    %v5342 = vpack.c.b16 %v4382, %v4374
    %v5343 = vpack.c.b16 %v4383, %v4375
    %v5344 = vpack.c.b16 %v4384, %v4376
    %v5345 = vpack.c.b16 %v4385, %v4377
    %v5346 = vpack.c.b16 %v4394, %v4386
    %v5347 = vpack.c.b16 %v4395, %v4387
    %v5348 = vpack.c.b16 %v4396, %v4388
    %v5349 = vpack.c.b16 %v4397, %v4389
    %v5350 = vpack.c.b16 %v4398, %v4390
    %v5351 = vpack.c.b16 %v4399, %v4391
    %v5352 = vpack.c.b16 %v4400, %v4392
    %v5353 = vpack.c.b16 %v4401, %v4393
    %v5354 = vpack.c.b16 %v4410, %v4402
    %v5355 = vpack.c.b16 %v4411, %v4403
    %v5356 = vpack.c.b16 %v4412, %v4404
    %v5357 = vpack.c.b16 %v4413, %v4405
    %v5358 = vpack.c.b16 %v4414, %v4406
    %v5359 = vpack.c.b16 %v4415, %v4407
    %v5360 = vpack.c.b16 %v4416, %v4408
    %v5361 = vpack.c.b16 %v4417, %v4409
    %v5362 = vpack.c.b16 %v4426, %v4418
    %v5363 = vpack.c.b16 %v4427, %v4419
    %v5364 = vpack.c.b16 %v4428, %v4420
    %v5365 = vpack.c.b16 %v4429, %v4421
    %v5366 = vpack.c.b16 %v4430, %v4422
    %v5367 = vpack.c.b16 %v4431, %v4423
    %v5368 = vpack.c.b16 %v4432, %v4424
    %v5369 = vpack.c.b16 %v4433, %v4425
    %v5370 = vpack.c.b16 %v4442, %v4434
    %v5371 = vpack.c.b16 %v4443, %v4435
    %v5372 = vpack.c.b16 %v4444, %v4436
    %v5373 = vpack.c.b16 %v4445, %v4437
    %v5374 = vpack.c.b16 %v4446, %v4438
    %v5375 = vpack.c.b16 %v4447, %v4439
    %v5376 = vpack.c.b16 %v4448, %v4440
    %v5377 = vpack.c.b16 %v4449, %v4441
    %v5378 = vpack.c.b16 %v4458, %v4450
    %v5379 = vpack.c.b16 %v4459, %v4451
    %v5380 = vpack.c.b16 %v4460, %v4452
    %v5381 = vpack.c.b16 %v4461, %v4453
    %v5382 = vpack.c.b16 %v4462, %v4454
    %v5383 = vpack.c.b16 %v4463, %v4455
    %v5384 = vpack.c.b16 %v4464, %v4456
    %v5385 = vpack.c.b16 %v4465, %v4457
    %v5386 = vpack.c.b16 %v4474, %v4466
    %v5387 = vpack.c.b16 %v4475, %v4467
    %v5388 = vpack.c.b16 %v4476, %v4468
    %v5389 = vpack.c.b16 %v4477, %v4469
    %v5390 = vpack.c.b16 %v4478, %v4470
    %v5391 = vpack.c.b16 %v4479, %v4471
    %v5392 = vpack.c.b16 %v4480, %v4472
    %v5393 = vpack.c.b16 %v4481, %v4473
    %v5394 = vpack.c.b16 %v4490, %v4482
    %v5395 = vpack.c.b16 %v4491, %v4483
    %v5396 = vpack.c.b16 %v4492, %v4484
    %v5397 = vpack.c.b16 %v4493, %v4485
    %v5398 = vpack.c.b16 %v4494, %v4486
    %v5399 = vpack.c.b16 %v4495, %v4487
    %v5400 = vpack.c.b16 %v4496, %v4488
    %v5401 = vpack.c.b16 %v4497, %v4489
    %v5402 = vpack.c.b16 %v4506, %v4498
    %v5403 = vpack.c.b16 %v4507, %v4499
    %v5404 = vpack.c.b16 %v4508, %v4500
    %v5405 = vpack.c.b16 %v4509, %v4501
    %v5406 = vpack.c.b16 %v4510, %v4502
    %v5407 = vpack.c.b16 %v4511, %v4503
    %v5408 = vpack.c.b16 %v4512, %v4504
    %v5409 = vpack.c.b16 %v4513, %v4505
    %v5410 = vpack.c.b16 %v4522, %v4514
    %v5411 = vpack.c.b16 %v4523, %v4515
    %v5412 = vpack.c.b16 %v4524, %v4516
    %v5413 = vpack.c.b16 %v4525, %v4517
    %v5414 = vpack.c.b16 %v4526, %v4518
    %v5415 = vpack.c.b16 %v4527, %v4519
    %v5416 = vpack.c.b16 %v4528, %v4520
    %v5417 = vpack.c.b16 %v4529, %v4521
    %v5418 = vpack.c.b16 %v4538, %v4530
    %v5419 = vpack.c.b16 %v4539, %v4531
    %v5420 = vpack.c.b16 %v4540, %v4532
    %v5421 = vpack.c.b16 %v4541, %v4533
    %v5422 = vpack.c.b16 %v4542, %v4534
    %v5423 = vpack.c.b16 %v4543, %v4535
    %v5424 = vpack.c.b16 %v4544, %v4536
    %v5425 = vpack.c.b16 %v4545, %v4537
    %v5426 = vpack.c.b16 %v4554, %v4546
    %v5427 = vpack.c.b16 %v4555, %v4547
    %v5428 = vpack.c.b16 %v4556, %v4548
    %v5429 = vpack.c.b16 %v4557, %v4549
    %v5430 = vpack.c.b16 %v4558, %v4550
    %v5431 = vpack.c.b16 %v4559, %v4551
    %v5432 = vpack.c.b16 %v4560, %v4552
    %v5433 = vpack.c.b16 %v4561, %v4553
    %v5434 = vpack.c.b16 %v4570, %v4562
    %v5435 = vpack.c.b16 %v4571, %v4563
    %v5436 = vpack.c.b16 %v4572, %v4564
    %v5437 = vpack.c.b16 %v4573, %v4565
    %v5438 = vpack.c.b16 %v4574, %v4566
    %v5439 = vpack.c.b16 %v4575, %v4567
    %v5440 = vpack.c.b16 %v4576, %v4568
    %v5441 = vpack.c.b16 %v4577, %v4569
    %v5442 = vpack.c.b16 %v4586, %v4578
    %v5443 = vpack.c.b16 %v4587, %v4579
    %v5444 = vpack.c.b16 %v4588, %v4580
    %v5445 = vpack.c.b16 %v4589, %v4581
    %v5446 = vpack.c.b16 %v4590, %v4582
    %v5447 = vpack.c.b16 %v4591, %v4583
    %v5448 = vpack.c.b16 %v4592, %v4584
    %v5449 = vpack.c.b16 %v4593, %v4585
    %v5450 = vpack.c.b16 %v4602, %v4594
    %v5451 = vpack.c.b16 %v4603, %v4595
    %v5452 = vpack.c.b16 %v4604, %v4596
    %v5453 = vpack.c.b16 %v4605, %v4597
    %v5454 = vpack.c.b16 %v4606, %v4598
    %v5455 = vpack.c.b16 %v4607, %v4599
    %v5456 = vpack.c.b16 %v4608, %v4600
    %v5457 = vpack.c.b16 %v4609, %v4601
    %v5458 = vpack.c.b16 %v4618, %v4610
    %v5459 = vpack.c.b16 %v4619, %v4611
    %v5460 = vpack.c.b16 %v4620, %v4612
    %v5461 = vpack.c.b16 %v4621, %v4613
    %v5462 = vpack.c.b16 %v4622, %v4614
    %v5463 = vpack.c.b16 %v4623, %v4615
    %v5464 = vpack.c.b16 %v4624, %v4616
    %v5465 = vpack.c.b16 %v4625, %v4617
    %v5466 = vpack.c.b16 %v4634, %v4626
    %v5467 = vpack.c.b16 %v4635, %v4627
    %v5468 = vpack.c.b16 %v4636, %v4628
    %v5469 = vpack.c.b16 %v4637, %v4629
    %v5470 = vpack.c.b16 %v4638, %v4630
    %v5471 = vpack.c.b16 %v4639, %v4631
    %v5472 = vpack.c.b16 %v4640, %v4632
    %v5473 = vpack.c.b16 %v4641, %v4633
    %v5474 = vpack.c.b16 %v4650, %v4642
    %v5475 = vpack.c.b16 %v4651, %v4643
    %v5476 = vpack.c.b16 %v4652, %v4644
    %v5477 = vpack.c.b16 %v4653, %v4645
    %v5478 = vpack.c.b16 %v4654, %v4646
    %v5479 = vpack.c.b16 %v4655, %v4647
    %v5480 = vpack.c.b16 %v4656, %v4648
    %v5481 = vpack.c.b16 %v4657, %v4649
    %v5482 = vpack.c.b16 %v4666, %v4658
    %v5483 = vpack.c.b16 %v4667, %v4659
    %v5484 = vpack.c.b16 %v4668, %v4660
    %v5485 = vpack.c.b16 %v4669, %v4661
    %v5486 = vpack.c.b16 %v4670, %v4662
    %v5487 = vpack.c.b16 %v4671, %v4663
    %v5488 = vpack.c.b16 %v4672, %v4664
    %v5489 = vpack.c.b16 %v4673, %v4665
    %v5490 = vpack.c.b16 %v4682, %v4674
    %v5491 = vpack.c.b16 %v4683, %v4675
    %v5492 = vpack.c.b16 %v4684, %v4676
    %v5493 = vpack.c.b16 %v4685, %v4677
    %v5494 = vpack.c.b16 %v4686, %v4678
    %v5495 = vpack.c.b16 %v4687, %v4679
    %v5496 = vpack.c.b16 %v4688, %v4680
    %v5497 = vpack.c.b16 %v4689, %v4681
    %v5498 = vpack.c.b16 %v4698, %v4690
    %v5499 = vpack.c.b16 %v4699, %v4691
    %v5500 = vpack.c.b16 %v4700, %v4692
    %v5501 = vpack.c.b16 %v4701, %v4693
    %v5502 = vpack.c.b16 %v4702, %v4694
    %v5503 = vpack.c.b16 %v4703, %v4695
    %v5504 = vpack.c.b16 %v4704, %v4696
    %v5505 = vpack.c.b16 %v4705, %v4697
    %v5506 = vpack.c.b16 %v4714, %v4706
    %v5507 = vpack.c.b16 %v4715, %v4707
    %v5508 = vpack.c.b16 %v4716, %v4708
    %v5509 = vpack.c.b16 %v4717, %v4709
    %v5510 = vpack.c.b16 %v4718, %v4710
    %v5511 = vpack.c.b16 %v4719, %v4711
    %v5512 = vpack.c.b16 %v4720, %v4712
    %v5513 = vpack.c.b16 %v4721, %v4713
    %v5514 = vpack.c.b16 %v4730, %v4722
    %v5515 = vpack.c.b16 %v4731, %v4723
    %v5516 = vpack.c.b16 %v4732, %v4724
    %v5517 = vpack.c.b16 %v4733, %v4725
    %v5518 = vpack.c.b16 %v4734, %v4726
    %v5519 = vpack.c.b16 %v4735, %v4727
    %v5520 = vpack.c.b16 %v4736, %v4728
    %v5521 = vpack.c.b16 %v4737, %v4729
    %v5522 = vpack.c.b16 %v4746, %v4738
    %v5523 = vpack.c.b16 %v4747, %v4739
    %v5524 = vpack.c.b16 %v4748, %v4740
    %v5525 = vpack.c.b16 %v4749, %v4741
    %v5526 = vpack.c.b16 %v4750, %v4742
    %v5527 = vpack.c.b16 %v4751, %v4743
    %v5528 = vpack.c.b16 %v4752, %v4744
    %v5529 = vpack.c.b16 %v4753, %v4745
    %v5530 = vpack.c.b16 %v4762, %v4754
    %v5531 = vpack.c.b16 %v4763, %v4755
    %v5532 = vpack.c.b16 %v4764, %v4756
    %v5533 = vpack.c.b16 %v4765, %v4757
    %v5534 = vpack.c.b16 %v4766, %v4758
    %v5535 = vpack.c.b16 %v4767, %v4759
    %v5536 = vpack.c.b16 %v4768, %v4760
    %v5537 = vpack.c.b16 %v4769, %v4761
    %v5538 = vpack.c.b16 %v4778, %v4770
    %v5539 = vpack.c.b16 %v4779, %v4771
    %v5540 = vpack.c.b16 %v4780, %v4772
    %v5541 = vpack.c.b16 %v4781, %v4773
    %v5542 = vpack.c.b16 %v4782, %v4774
    %v5543 = vpack.c.b16 %v4783, %v4775
    %v5544 = vpack.c.b16 %v4784, %v4776
    %v5545 = vpack.c.b16 %v4785, %v4777
    %v5546 = vpack.c.b16 %v4794, %v4786
    %v5547 = vpack.c.b16 %v4795, %v4787
    %v5548 = vpack.c.b16 %v4796, %v4788
    %v5549 = vpack.c.b16 %v4797, %v4789
    %v5550 = vpack.c.b16 %v4798, %v4790
    %v5551 = vpack.c.b16 %v4799, %v4791
    %v5552 = vpack.c.b16 %v4800, %v4792
    %v5553 = vpack.c.b16 %v4801, %v4793
    %v5554 = vpack.c.b16 %v4810, %v4802
    %v5555 = vpack.c.b16 %v4811, %v4803
    %v5556 = vpack.c.b16 %v4812, %v4804
    %v5557 = vpack.c.b16 %v4813, %v4805
    %v5558 = vpack.c.b16 %v4814, %v4806
    %v5559 = vpack.c.b16 %v4815, %v4807
    %v5560 = vpack.c.b16 %v4816, %v4808
    %v5561 = vpack.c.b16 %v4817, %v4809
    %v5562 = vpack.c.b16 %v4826, %v4818
    %v5563 = vpack.c.b16 %v4827, %v4819
    %v5564 = vpack.c.b16 %v4828, %v4820
    %v5565 = vpack.c.b16 %v4829, %v4821
    %v5566 = vpack.c.b16 %v4830, %v4822
    %v5567 = vpack.c.b16 %v4831, %v4823
    %v5568 = vpack.c.b16 %v4832, %v4824
    %v5569 = vpack.c.b16 %v4833, %v4825
    %v5570 = vpack.c.b16 %v4842, %v4834
    %v5571 = vpack.c.b16 %v4843, %v4835
    %v5572 = vpack.c.b16 %v4844, %v4836
    %v5573 = vpack.c.b16 %v4845, %v4837
    %v5574 = vpack.c.b16 %v4846, %v4838
    %v5575 = vpack.c.b16 %v4847, %v4839
    %v5576 = vpack.c.b16 %v4848, %v4840
    %v5577 = vpack.c.b16 %v4849, %v4841
    %v5578 = vpack.c.b16 %v4858, %v4850
    %v5579 = vpack.c.b16 %v4859, %v4851
    %v5580 = vpack.c.b16 %v4860, %v4852
    %v5581 = vpack.c.b16 %v4861, %v4853
    %v5582 = vpack.c.b16 %v4862, %v4854
    %v5583 = vpack.c.b16 %v4863, %v4855
    %v5584 = vpack.c.b16 %v4864, %v4856
    %v5585 = vpack.c.b16 %v4865, %v4857
    %v5586 = vpack.c.b16 %v4874, %v4866
    %v5587 = vpack.c.b16 %v4875, %v4867
    %v5588 = vpack.c.b16 %v4876, %v4868
    %v5589 = vpack.c.b16 %v4877, %v4869
    %v5590 = vpack.c.b16 %v4878, %v4870
    %v5591 = vpack.c.b16 %v4879, %v4871
    %v5592 = vpack.c.b16 %v4880, %v4872
    %v5593 = vpack.c.b16 %v4881, %v4873
    %v5594 = vpack.c.b16 %v4890, %v4882
    %v5595 = vpack.c.b16 %v4891, %v4883
    %v5596 = vpack.c.b16 %v4892, %v4884
    %v5597 = vpack.c.b16 %v4893, %v4885
    %v5598 = vpack.c.b16 %v4894, %v4886
    %v5599 = vpack.c.b16 %v4895, %v4887
    %v5600 = vpack.c.b16 %v4896, %v4888
    %v5601 = vpack.c.b16 %v4897, %v4889
    %v5602 = vpack.c.b16 %v4906, %v4898
    %v5603 = vpack.c.b16 %v4907, %v4899
    %v5604 = vpack.c.b16 %v4908, %v4900
    %v5605 = vpack.c.b16 %v4909, %v4901
    %v5606 = vpack.c.b16 %v4910, %v4902
    %v5607 = vpack.c.b16 %v4911, %v4903
    %v5608 = vpack.c.b16 %v4912, %v4904
    %v5609 = vpack.c.b16 %v4913, %v4905
    %v5610 = vpack.c.b16 %v4922, %v4914
    %v5611 = vpack.c.b16 %v4923, %v4915
    %v5612 = vpack.c.b16 %v4924, %v4916
    %v5613 = vpack.c.b16 %v4925, %v4917
    %v5614 = vpack.c.b16 %v4926, %v4918
    %v5615 = vpack.c.b16 %v4927, %v4919
    %v5616 = vpack.c.b16 %v4928, %v4920
    %v5617 = vpack.c.b16 %v4929, %v4921
    %v5618 = vpack.c.b16 %v4938, %v4930
    %v5619 = vpack.c.b16 %v4939, %v4931
    %v5620 = vpack.c.b16 %v4940, %v4932
    %v5621 = vpack.c.b16 %v4941, %v4933
    %v5622 = vpack.c.b16 %v4942, %v4934
    %v5623 = vpack.c.b16 %v4943, %v4935
    %v5624 = vpack.c.b16 %v4944, %v4936
    %v5625 = vpack.c.b16 %v4945, %v4937
    %v5626 = vpack.c.b16 %v4954, %v4946
    %v5627 = vpack.c.b16 %v4955, %v4947
    %v5628 = vpack.c.b16 %v4956, %v4948
    %v5629 = vpack.c.b16 %v4957, %v4949
    %v5630 = vpack.c.b16 %v4958, %v4950
    %v5631 = vpack.c.b16 %v4959, %v4951
    %v5632 = vpack.c.b16 %v4960, %v4952
    %v5633 = vpack.c.b16 %v4961, %v4953
    %v5634 = vpack.c.b16 %v4970, %v4962
    %v5635 = vpack.c.b16 %v4971, %v4963
    %v5636 = vpack.c.b16 %v4972, %v4964
    %v5637 = vpack.c.b16 %v4973, %v4965
    %v5638 = vpack.c.b16 %v4974, %v4966
    %v5639 = vpack.c.b16 %v4975, %v4967
    %v5640 = vpack.c.b16 %v4976, %v4968
    %v5641 = vpack.c.b16 %v4977, %v4969
    %v5642 = vpack.c.b16 %v4986, %v4978
    %v5643 = vpack.c.b16 %v4987, %v4979
    %v5644 = vpack.c.b16 %v4988, %v4980
    %v5645 = vpack.c.b16 %v4989, %v4981
    %v5646 = vpack.c.b16 %v4990, %v4982
    %v5647 = vpack.c.b16 %v4991, %v4983
    %v5648 = vpack.c.b16 %v4992, %v4984
    %v5649 = vpack.c.b16 %v4993, %v4985
    %v5650 = vpack.c.b16 %v5002, %v4994
    %v5651 = vpack.c.b16 %v5003, %v4995
    %v5652 = vpack.c.b16 %v5004, %v4996
    %v5653 = vpack.c.b16 %v5005, %v4997
    %v5654 = vpack.c.b16 %v5006, %v4998
    %v5655 = vpack.c.b16 %v5007, %v4999
    %v5656 = vpack.c.b16 %v5008, %v5000
    %v5657 = vpack.c.b16 %v5009, %v5001
    %v5658 = vpack.c.b16 %v5018, %v5010
    %v5659 = vpack.c.b16 %v5019, %v5011
    %v5660 = vpack.c.b16 %v5020, %v5012
    %v5661 = vpack.c.b16 %v5021, %v5013
    %v5662 = vpack.c.b16 %v5022, %v5014
    %v5663 = vpack.c.b16 %v5023, %v5015
    %v5664 = vpack.c.b16 %v5024, %v5016
    %v5665 = vpack.c.b16 %v5025, %v5017
    %6306 = vmatprep.subr.bf16.mxu0 %v5083
    %6307 = vmatpush1.bf16.msra.mxu0 %v5082
    %6308 = vmatprep.subr.bf16.mxu0 %v5075
    %6309 = vmatpush1.bf16.msra.mxu0 %v5074
    %6310 = vmatprep.subr.bf16.mxu0 %v5067
    %6311 = vmatpush1.bf16.msra.mxu0 %v5066
    %6312 = vmatprep.subr.bf16.mxu0 %v5059
    %6313 = vmatpush1.bf16.msra.mxu0 %v5058
    %6314 = vmatprep.subr.bf16.mxu0 %v5051
    %6315 = vmatpush1.bf16.msra.mxu0 %v5050
    %6316 = vmatprep.subr.bf16.mxu0 %v5043
    %6317 = vmatpush1.bf16.msra.mxu0 %v5042
    %6318 = vmatprep.subr.bf16.mxu0 %v5035
    %6319 = vmatpush1.bf16.msra.mxu0 %v5034
    %6320 = vmatprep.subr.bf16.mxu0 %v5027
    %6321 = vmatpush1.bf16.msra.mxu0 %v5026
    %6322 = vmatprep.subr.bf16.mxu0 %v5147
    %6323 = vmatpush2.bf16.msra.mxu0 %v5146
    %6324 = vmatprep.subr.bf16.mxu0 %v5139
    %6325 = vmatpush2.bf16.msra.mxu0 %v5138
    %6326 = vmatprep.subr.bf16.mxu0 %v5131
    %6327 = vmatpush2.bf16.msra.mxu0 %v5130
    %6328 = vmatprep.subr.bf16.mxu0 %v5123
    %6329 = vmatpush2.bf16.msra.mxu0 %v5122
    %6330 = vmatprep.subr.bf16.mxu0 %v5115
    %6331 = vmatpush2.bf16.msra.mxu0 %v5114
    %6332 = vmatprep.subr.bf16.mxu0 %v5107
    %6333 = vmatpush2.bf16.msra.mxu0 %v5106
    %6334 = vmatprep.subr.bf16.mxu0 %v5099
    %6335 = vmatpush2.bf16.msra.mxu0 %v5098
    %6336 = vmatprep.subr.bf16.mxu0 %v5091
    %6337 = vmatpush2.bf16.msra.mxu0 %v5090
    %6338 = vmatprep.mubr.bf16.mxu0 %v3087
    %6339 = vmatmul.mubr.bf16.gmra.mxu0 %v3086
    %v6340 = vpop.f32.mrf.mxu0
    %v6341 = vadd.f32 %v2998, %v6340
    %v6342 = vpop.f32.mrf.mxu0
    %v6343 = vadd.f32 %v3002, %v6342
    %v6344 = vpop.f32.mrf.mxu0
    %v6345 = vpop.f32.mrf.mxu0
    %6346 = vdwg.mxu0
    %6347 = vmatprep.subr.bf16.mxu0 %v5211
    %6348 = vmatpush1.bf16.msra.mxu0 %v5210
    %6349 = vmatprep.subr.bf16.mxu0 %v5203
    %6350 = vmatpush1.bf16.msra.mxu0 %v5202
    %6351 = vmatprep.subr.bf16.mxu0 %v5195
    %6352 = vmatpush1.bf16.msra.mxu0 %v5194
    %6353 = vmatprep.subr.bf16.mxu0 %v5187
    %6354 = vmatpush1.bf16.msra.mxu0 %v5186
    %6355 = vmatprep.subr.bf16.mxu0 %v5179
    %6356 = vmatpush1.bf16.msra.mxu0 %v5178
    %6357 = vmatprep.subr.bf16.mxu0 %v5171
    %6358 = vmatpush1.bf16.msra.mxu0 %v5170
    %6359 = vmatprep.subr.bf16.mxu0 %v5163
    %6360 = vmatpush1.bf16.msra.mxu0 %v5162
    %6361 = vmatprep.subr.bf16.mxu0 %v5155
    %6362 = vmatpush1.bf16.msra.mxu0 %v5154
    %6363 = vmatprep.subr.bf16.mxu0 %v5275
    %6364 = vmatpush2.bf16.msra.mxu0 %v5274
    %6365 = vmatprep.subr.bf16.mxu0 %v5267
    %6366 = vmatpush2.bf16.msra.mxu0 %v5266
    %6367 = vmatprep.subr.bf16.mxu0 %v5259
    %6368 = vmatpush2.bf16.msra.mxu0 %v5258
    %6369 = vmatprep.subr.bf16.mxu0 %v5251
    %6370 = vmatpush2.bf16.msra.mxu0 %v5250
    %6371 = vmatprep.subr.bf16.mxu0 %v5243
    %6372 = vmatpush2.bf16.msra.mxu0 %v5242
    %6373 = vmatprep.subr.bf16.mxu0 %v5235
    %6374 = vmatpush2.bf16.msra.mxu0 %v5234
    %6375 = vmatprep.subr.bf16.mxu0 %v5227
    %6376 = vmatpush2.bf16.msra.mxu0 %v5226
    %6377 = vmatprep.subr.bf16.mxu0 %v5219
    %6378 = vmatpush2.bf16.msra.mxu0 %v5218
    %6379 = vmatprep.mubr.bf16.mxu0 %v3089
    %6380 = vmatmul.mubr.bf16.gmra.mxu0 %v3088
    %v6381 = vpop.f32.mrf.mxu0
    %v6382 = vadd.f32 %v6341, %v6381
    %v6383 = vpop.f32.mrf.mxu0
    %v6384 = vadd.f32 %v6343, %v6383
    %v6385 = vpop.f32.mrf.mxu0
    %v6386 = vpop.f32.mrf.mxu0
    %6387 = vdwg.mxu0
    %6388 = vmatprep.subr.bf16.mxu0 %v5339
    %6389 = vmatpush1.bf16.msra.mxu0 %v5338
    %6390 = vmatprep.subr.bf16.mxu0 %v5331
    %6391 = vmatpush1.bf16.msra.mxu0 %v5330
    %6392 = vmatprep.subr.bf16.mxu0 %v5323
    %6393 = vmatpush1.bf16.msra.mxu0 %v5322
    %6394 = vmatprep.subr.bf16.mxu0 %v5315
    %6395 = vmatpush1.bf16.msra.mxu0 %v5314
    %6396 = vmatprep.subr.bf16.mxu0 %v5307
    %6397 = vmatpush1.bf16.msra.mxu0 %v5306
    %6398 = vmatprep.subr.bf16.mxu0 %v5299
    %6399 = vmatpush1.bf16.msra.mxu0 %v5298
    %6400 = vmatprep.subr.bf16.mxu0 %v5291
    %6401 = vmatpush1.bf16.msra.mxu0 %v5290
    %6402 = vmatprep.subr.bf16.mxu0 %v5283
    %6403 = vmatpush1.bf16.msra.mxu0 %v5282
    %6404 = vmatprep.subr.bf16.mxu0 %v5403
    %6405 = vmatpush2.bf16.msra.mxu0 %v5402
    %6406 = vmatprep.subr.bf16.mxu0 %v5395
    %6407 = vmatpush2.bf16.msra.mxu0 %v5394
    %6408 = vmatprep.subr.bf16.mxu0 %v5387
    %6409 = vmatpush2.bf16.msra.mxu0 %v5386
    %6410 = vmatprep.subr.bf16.mxu0 %v5379
    %6411 = vmatpush2.bf16.msra.mxu0 %v5378
    %6412 = vmatprep.subr.bf16.mxu0 %v5371
    %6413 = vmatpush2.bf16.msra.mxu0 %v5370
    %6414 = vmatprep.subr.bf16.mxu0 %v5363
    %6415 = vmatpush2.bf16.msra.mxu0 %v5362
    %6416 = vmatprep.subr.bf16.mxu0 %v5355
    %6417 = vmatpush2.bf16.msra.mxu0 %v5354
    %6418 = vmatprep.subr.bf16.mxu0 %v5347
    %6419 = vmatpush2.bf16.msra.mxu0 %v5346
    %6420 = vmatprep.mubr.bf16.mxu0 %v3091
    %6421 = vmatmul.mubr.bf16.gmra.mxu0 %v3090
    %v6422 = vpop.f32.mrf.mxu0
    %v6423 = vadd.f32 %v6382, %v6422
    %v6424 = vpop.f32.mrf.mxu0
    %v6425 = vadd.f32 %v6384, %v6424
    %v6426 = vpop.f32.mrf.mxu0
    %v6427 = vpop.f32.mrf.mxu0
    %6428 = vdwg.mxu0
    %6429 = vmatprep.subr.bf16.mxu0 %v5467
    %6430 = vmatpush1.bf16.msra.mxu0 %v5466
    %6431 = vmatprep.subr.bf16.mxu0 %v5459
    %6432 = vmatpush1.bf16.msra.mxu0 %v5458
    %6433 = vmatprep.subr.bf16.mxu0 %v5451
    %6434 = vmatpush1.bf16.msra.mxu0 %v5450
    %6435 = vmatprep.subr.bf16.mxu0 %v5443
    %6436 = vmatpush1.bf16.msra.mxu0 %v5442
    %6437 = vmatprep.subr.bf16.mxu0 %v5435
    %6438 = vmatpush1.bf16.msra.mxu0 %v5434
    %6439 = vmatprep.subr.bf16.mxu0 %v5427
    %6440 = vmatpush1.bf16.msra.mxu0 %v5426
    %6441 = vmatprep.subr.bf16.mxu0 %v5419
    %6442 = vmatpush1.bf16.msra.mxu0 %v5418
    %6443 = vmatprep.subr.bf16.mxu0 %v5411
    %6444 = vmatpush1.bf16.msra.mxu0 %v5410
    %6445 = vmatprep.subr.bf16.mxu0 %v5531
    %6446 = vmatpush2.bf16.msra.mxu0 %v5530
    %6447 = vmatprep.subr.bf16.mxu0 %v5523
    %6448 = vmatpush2.bf16.msra.mxu0 %v5522
    %6449 = vmatprep.subr.bf16.mxu0 %v5515
    %6450 = vmatpush2.bf16.msra.mxu0 %v5514
    %6451 = vmatprep.subr.bf16.mxu0 %v5507
    %6452 = vmatpush2.bf16.msra.mxu0 %v5506
    %6453 = vmatprep.subr.bf16.mxu0 %v5499
    %6454 = vmatpush2.bf16.msra.mxu0 %v5498
    %6455 = vmatprep.subr.bf16.mxu0 %v5491
    %6456 = vmatpush2.bf16.msra.mxu0 %v5490
    %6457 = vmatprep.subr.bf16.mxu0 %v5483
    %6458 = vmatpush2.bf16.msra.mxu0 %v5482
    %6459 = vmatprep.subr.bf16.mxu0 %v5475
    %6460 = vmatpush2.bf16.msra.mxu0 %v5474
    %6461 = vmatprep.mubr.bf16.mxu0 %v3093
    %6462 = vmatmul.mubr.bf16.gmra.mxu0 %v3092
    %v6463 = vpop.f32.mrf.mxu0
    %v6464 = vadd.f32 %v6423, %v6463
    %v6465 = vpop.f32.mrf.mxu0
    %v6466 = vadd.f32 %v6425, %v6465
    %v6467 = vpop.f32.mrf.mxu0
    %v6468 = vpop.f32.mrf.mxu0
    %6469 = vdwg.mxu0
    %6470 = vmatprep.subr.bf16.mxu0 %v5595
    %6471 = vmatpush1.bf16.msra.mxu0 %v5594
    %6472 = vmatprep.subr.bf16.mxu0 %v5587
    %6473 = vmatpush1.bf16.msra.mxu0 %v5586
    %6474 = vmatprep.subr.bf16.mxu0 %v5579
    %6475 = vmatpush1.bf16.msra.mxu0 %v5578
    %6476 = vmatprep.subr.bf16.mxu0 %v5571
    %6477 = vmatpush1.bf16.msra.mxu0 %v5570
    %6478 = vmatprep.subr.bf16.mxu0 %v5563
    %6479 = vmatpush1.bf16.msra.mxu0 %v5562
    %6480 = vmatprep.subr.bf16.mxu0 %v5555
    %6481 = vmatpush1.bf16.msra.mxu0 %v5554
    %6482 = vmatprep.subr.bf16.mxu0 %v5547
    %6483 = vmatpush1.bf16.msra.mxu0 %v5546
    %6484 = vmatprep.subr.bf16.mxu0 %v5539
    %6485 = vmatpush1.bf16.msra.mxu0 %v5538
    %6486 = vmatprep.subr.bf16.mxu0 %v5659
    %6487 = vmatpush2.bf16.msra.mxu0 %v5658
    %6488 = vmatprep.subr.bf16.mxu0 %v5651
    %6489 = vmatpush2.bf16.msra.mxu0 %v5650
    %6490 = vmatprep.subr.bf16.mxu0 %v5643
    %6491 = vmatpush2.bf16.msra.mxu0 %v5642
    %6492 = vmatprep.subr.bf16.mxu0 %v5635
    %6493 = vmatpush2.bf16.msra.mxu0 %v5634
    %6494 = vmatprep.subr.bf16.mxu0 %v5627
    %6495 = vmatpush2.bf16.msra.mxu0 %v5626
    %6496 = vmatprep.subr.bf16.mxu0 %v5619
    %6497 = vmatpush2.bf16.msra.mxu0 %v5618
    %6498 = vmatprep.subr.bf16.mxu0 %v5611
    %6499 = vmatpush2.bf16.msra.mxu0 %v5610
    %6500 = vmatprep.subr.bf16.mxu0 %v5603
    %6501 = vmatpush2.bf16.msra.mxu0 %v5602
    %6502 = vmatprep.mubr.bf16.mxu0 %v3095
    %6503 = vmatmul.mubr.bf16.gmra.mxu0 %v3094
    %v6504 = vpop.f32.mrf.mxu0
    %v6505 = vadd.f32 %v6464, %v6504
    %v6506 = vpop.f32.mrf.mxu0
    %v6507 = vadd.f32 %v6466, %v6506
    %v6508 = vpop.f32.mrf.mxu0
    %v6509 = vpop.f32.mrf.mxu0
    %6510 = vdwg.mxu0
    %6511 = vmatprep.subr.bf16.mxu0 %v5085
    %6512 = vmatpush1.bf16.msra.mxu0 %v5084
    %6513 = vmatprep.subr.bf16.mxu0 %v5077
    %6514 = vmatpush1.bf16.msra.mxu0 %v5076
    %6515 = vmatprep.subr.bf16.mxu0 %v5069
    %6516 = vmatpush1.bf16.msra.mxu0 %v5068
    %6517 = vmatprep.subr.bf16.mxu0 %v5061
    %6518 = vmatpush1.bf16.msra.mxu0 %v5060
    %6519 = vmatprep.subr.bf16.mxu0 %v5053
    %6520 = vmatpush1.bf16.msra.mxu0 %v5052
    %6521 = vmatprep.subr.bf16.mxu0 %v5045
    %6522 = vmatpush1.bf16.msra.mxu0 %v5044
    %6523 = vmatprep.subr.bf16.mxu0 %v5037
    %6524 = vmatpush1.bf16.msra.mxu0 %v5036
    %6525 = vmatprep.subr.bf16.mxu0 %v5029
    %6526 = vmatpush1.bf16.msra.mxu0 %v5028
    %6527 = vmatprep.subr.bf16.mxu0 %v5149
    %6528 = vmatpush2.bf16.msra.mxu0 %v5148
    %6529 = vmatprep.subr.bf16.mxu0 %v5141
    %6530 = vmatpush2.bf16.msra.mxu0 %v5140
    %6531 = vmatprep.subr.bf16.mxu0 %v5133
    %6532 = vmatpush2.bf16.msra.mxu0 %v5132
    %6533 = vmatprep.subr.bf16.mxu0 %v5125
    %6534 = vmatpush2.bf16.msra.mxu0 %v5124
    %6535 = vmatprep.subr.bf16.mxu0 %v5117
    %6536 = vmatpush2.bf16.msra.mxu0 %v5116
    %6537 = vmatprep.subr.bf16.mxu0 %v5109
    %6538 = vmatpush2.bf16.msra.mxu0 %v5108
    %6539 = vmatprep.subr.bf16.mxu0 %v5101
    %6540 = vmatpush2.bf16.msra.mxu0 %v5100
    %6541 = vmatprep.subr.bf16.mxu0 %v5093
    %6542 = vmatpush2.bf16.msra.mxu0 %v5092
    %6543 = vmatprep.mubr.bf16.mxu0 %v3087
    %6544 = vmatmul.mubr.bf16.gmra.mxu0 %v3086
    %v6545 = vpop.f32.mrf.mxu0
    %v6546 = vadd.f32 %v3006, %v6545
    %v6547 = vpop.f32.mrf.mxu0
    %v6548 = vadd.f32 %v3010, %v6547
    %v6549 = vpop.f32.mrf.mxu0
    %v6550 = vpop.f32.mrf.mxu0
    %6551 = vdwg.mxu0
    %6552 = vmatprep.subr.bf16.mxu0 %v5213
    %6553 = vmatpush1.bf16.msra.mxu0 %v5212
    %6554 = vmatprep.subr.bf16.mxu0 %v5205
    %6555 = vmatpush1.bf16.msra.mxu0 %v5204
    %6556 = vmatprep.subr.bf16.mxu0 %v5197
    %6557 = vmatpush1.bf16.msra.mxu0 %v5196
    %6558 = vmatprep.subr.bf16.mxu0 %v5189
    %6559 = vmatpush1.bf16.msra.mxu0 %v5188
    %6560 = vmatprep.subr.bf16.mxu0 %v5181
    %6561 = vmatpush1.bf16.msra.mxu0 %v5180
    %6562 = vmatprep.subr.bf16.mxu0 %v5173
    %6563 = vmatpush1.bf16.msra.mxu0 %v5172
    %6564 = vmatprep.subr.bf16.mxu0 %v5165
    %6565 = vmatpush1.bf16.msra.mxu0 %v5164
    %6566 = vmatprep.subr.bf16.mxu0 %v5157
    %6567 = vmatpush1.bf16.msra.mxu0 %v5156
    %6568 = vmatprep.subr.bf16.mxu0 %v5277
    %6569 = vmatpush2.bf16.msra.mxu0 %v5276
    %6570 = vmatprep.subr.bf16.mxu0 %v5269
    %6571 = vmatpush2.bf16.msra.mxu0 %v5268
    %6572 = vmatprep.subr.bf16.mxu0 %v5261
    %6573 = vmatpush2.bf16.msra.mxu0 %v5260
    %6574 = vmatprep.subr.bf16.mxu0 %v5253
    %6575 = vmatpush2.bf16.msra.mxu0 %v5252
    %6576 = vmatprep.subr.bf16.mxu0 %v5245
    %6577 = vmatpush2.bf16.msra.mxu0 %v5244
    %6578 = vmatprep.subr.bf16.mxu0 %v5237
    %6579 = vmatpush2.bf16.msra.mxu0 %v5236
    %6580 = vmatprep.subr.bf16.mxu0 %v5229
    %6581 = vmatpush2.bf16.msra.mxu0 %v5228
    %6582 = vmatprep.subr.bf16.mxu0 %v5221
    %6583 = vmatpush2.bf16.msra.mxu0 %v5220
    %6584 = vmatprep.mubr.bf16.mxu0 %v3089
    %6585 = vmatmul.mubr.bf16.gmra.mxu0 %v3088
    %v6586 = vpop.f32.mrf.mxu0
    %v6587 = vadd.f32 %v6546, %v6586
    %v6588 = vpop.f32.mrf.mxu0
    %v6589 = vadd.f32 %v6548, %v6588
    %v6590 = vpop.f32.mrf.mxu0
    %v6591 = vpop.f32.mrf.mxu0
    %6592 = vdwg.mxu0
    %6593 = vmatprep.subr.bf16.mxu0 %v5341
    %6594 = vmatpush1.bf16.msra.mxu0 %v5340
    %6595 = vmatprep.subr.bf16.mxu0 %v5333
    %6596 = vmatpush1.bf16.msra.mxu0 %v5332
    %6597 = vmatprep.subr.bf16.mxu0 %v5325
    %6598 = vmatpush1.bf16.msra.mxu0 %v5324
    %6599 = vmatprep.subr.bf16.mxu0 %v5317
    %6600 = vmatpush1.bf16.msra.mxu0 %v5316
    %6601 = vmatprep.subr.bf16.mxu0 %v5309
    %6602 = vmatpush1.bf16.msra.mxu0 %v5308
    %6603 = vmatprep.subr.bf16.mxu0 %v5301
    %6604 = vmatpush1.bf16.msra.mxu0 %v5300
    %6605 = vmatprep.subr.bf16.mxu0 %v5293
    %6606 = vmatpush1.bf16.msra.mxu0 %v5292
    %6607 = vmatprep.subr.bf16.mxu0 %v5285
    %6608 = vmatpush1.bf16.msra.mxu0 %v5284
    %6609 = vmatprep.subr.bf16.mxu0 %v5405
    %6610 = vmatpush2.bf16.msra.mxu0 %v5404
    %6611 = vmatprep.subr.bf16.mxu0 %v5397
    %6612 = vmatpush2.bf16.msra.mxu0 %v5396
    %6613 = vmatprep.subr.bf16.mxu0 %v5389
    %6614 = vmatpush2.bf16.msra.mxu0 %v5388
    %6615 = vmatprep.subr.bf16.mxu0 %v5381
    %6616 = vmatpush2.bf16.msra.mxu0 %v5380
    %6617 = vmatprep.subr.bf16.mxu0 %v5373
    %6618 = vmatpush2.bf16.msra.mxu0 %v5372
    %6619 = vmatprep.subr.bf16.mxu0 %v5365
    %6620 = vmatpush2.bf16.msra.mxu0 %v5364
    %6621 = vmatprep.subr.bf16.mxu0 %v5357
    %6622 = vmatpush2.bf16.msra.mxu0 %v5356
    %6623 = vmatprep.subr.bf16.mxu0 %v5349
    %6624 = vmatpush2.bf16.msra.mxu0 %v5348
    %6625 = vmatprep.mubr.bf16.mxu0 %v3091
    %6626 = vmatmul.mubr.bf16.gmra.mxu0 %v3090
    %v6627 = vpop.f32.mrf.mxu0
    %v6628 = vadd.f32 %v6587, %v6627
    %v6629 = vpop.f32.mrf.mxu0
    %v6630 = vadd.f32 %v6589, %v6629
    %v6631 = vpop.f32.mrf.mxu0
    %v6632 = vpop.f32.mrf.mxu0
    %6633 = vdwg.mxu0
    %6634 = vmatprep.subr.bf16.mxu0 %v5469
    %6635 = vmatpush1.bf16.msra.mxu0 %v5468
    %6636 = vmatprep.subr.bf16.mxu0 %v5461
    %6637 = vmatpush1.bf16.msra.mxu0 %v5460
    %6638 = vmatprep.subr.bf16.mxu0 %v5453
    %6639 = vmatpush1.bf16.msra.mxu0 %v5452
    %6640 = vmatprep.subr.bf16.mxu0 %v5445
    %6641 = vmatpush1.bf16.msra.mxu0 %v5444
    %6642 = vmatprep.subr.bf16.mxu0 %v5437
    %6643 = vmatpush1.bf16.msra.mxu0 %v5436
    %6644 = vmatprep.subr.bf16.mxu0 %v5429
    %6645 = vmatpush1.bf16.msra.mxu0 %v5428
    %6646 = vmatprep.subr.bf16.mxu0 %v5421
    %6647 = vmatpush1.bf16.msra.mxu0 %v5420
    %6648 = vmatprep.subr.bf16.mxu0 %v5413
    %6649 = vmatpush1.bf16.msra.mxu0 %v5412
    %6650 = vmatprep.subr.bf16.mxu0 %v5533
    %6651 = vmatpush2.bf16.msra.mxu0 %v5532
    %6652 = vmatprep.subr.bf16.mxu0 %v5525
    %6653 = vmatpush2.bf16.msra.mxu0 %v5524
    %6654 = vmatprep.subr.bf16.mxu0 %v5517
    %6655 = vmatpush2.bf16.msra.mxu0 %v5516
    %6656 = vmatprep.subr.bf16.mxu0 %v5509
    %6657 = vmatpush2.bf16.msra.mxu0 %v5508
    %6658 = vmatprep.subr.bf16.mxu0 %v5501
    %6659 = vmatpush2.bf16.msra.mxu0 %v5500
    %6660 = vmatprep.subr.bf16.mxu0 %v5493
    %6661 = vmatpush2.bf16.msra.mxu0 %v5492
    %6662 = vmatprep.subr.bf16.mxu0 %v5485
    %6663 = vmatpush2.bf16.msra.mxu0 %v5484
    %6664 = vmatprep.subr.bf16.mxu0 %v5477
    %6665 = vmatpush2.bf16.msra.mxu0 %v5476
    %6666 = vmatprep.mubr.bf16.mxu0 %v3093
    %6667 = vmatmul.mubr.bf16.gmra.mxu0 %v3092
    %v6668 = vpop.f32.mrf.mxu0
    %v6669 = vadd.f32 %v6628, %v6668
    %v6670 = vpop.f32.mrf.mxu0
    %v6671 = vadd.f32 %v6630, %v6670
    %v6672 = vpop.f32.mrf.mxu0
    %v6673 = vpop.f32.mrf.mxu0
    %6674 = vdwg.mxu0
    %6675 = vmatprep.subr.bf16.mxu0 %v5597
    %6676 = vmatpush1.bf16.msra.mxu0 %v5596
    %6677 = vmatprep.subr.bf16.mxu0 %v5589
    %6678 = vmatpush1.bf16.msra.mxu0 %v5588
    %6679 = vmatprep.subr.bf16.mxu0 %v5581
    %6680 = vmatpush1.bf16.msra.mxu0 %v5580
    %6681 = vmatprep.subr.bf16.mxu0 %v5573
    %6682 = vmatpush1.bf16.msra.mxu0 %v5572
    %6683 = vmatprep.subr.bf16.mxu0 %v5565
    %6684 = vmatpush1.bf16.msra.mxu0 %v5564
    %6685 = vmatprep.subr.bf16.mxu0 %v5557
    %6686 = vmatpush1.bf16.msra.mxu0 %v5556
    %6687 = vmatprep.subr.bf16.mxu0 %v5549
    %6688 = vmatpush1.bf16.msra.mxu0 %v5548
    %6689 = vmatprep.subr.bf16.mxu0 %v5541
    %6690 = vmatpush1.bf16.msra.mxu0 %v5540
    %6691 = vmatprep.subr.bf16.mxu0 %v5661
    %6692 = vmatpush2.bf16.msra.mxu0 %v5660
    %6693 = vmatprep.subr.bf16.mxu0 %v5653
    %6694 = vmatpush2.bf16.msra.mxu0 %v5652
    %6695 = vmatprep.subr.bf16.mxu0 %v5645
    %6696 = vmatpush2.bf16.msra.mxu0 %v5644
    %6697 = vmatprep.subr.bf16.mxu0 %v5637
    %6698 = vmatpush2.bf16.msra.mxu0 %v5636
    %6699 = vmatprep.subr.bf16.mxu0 %v5629
    %6700 = vmatpush2.bf16.msra.mxu0 %v5628
    %6701 = vmatprep.subr.bf16.mxu0 %v5621
    %6702 = vmatpush2.bf16.msra.mxu0 %v5620
    %6703 = vmatprep.subr.bf16.mxu0 %v5613
    %6704 = vmatpush2.bf16.msra.mxu0 %v5612
    %6705 = vmatprep.subr.bf16.mxu0 %v5605
    %6706 = vmatpush2.bf16.msra.mxu0 %v5604
    %6707 = vmatprep.mubr.bf16.mxu0 %v3095
    %6708 = vmatmul.mubr.bf16.gmra.mxu0 %v3094
    %v6709 = vpop.f32.mrf.mxu0
    %v6710 = vadd.f32 %v6669, %v6709
    %v6711 = vpop.f32.mrf.mxu0
    %v6712 = vadd.f32 %v6671, %v6711
    %v6713 = vpop.f32.mrf.mxu0
    %v6714 = vpop.f32.mrf.mxu0
    %6715 = vdwg.mxu0
    %6716 = vmatprep.subr.bf16.mxu0 %v5087
    %6717 = vmatpush1.bf16.msra.mxu0 %v5086
    %6718 = vmatprep.subr.bf16.mxu0 %v5079
    %6719 = vmatpush1.bf16.msra.mxu0 %v5078
    %6720 = vmatprep.subr.bf16.mxu0 %v5071
    %6721 = vmatpush1.bf16.msra.mxu0 %v5070
    %6722 = vmatprep.subr.bf16.mxu0 %v5063
    %6723 = vmatpush1.bf16.msra.mxu0 %v5062
    %6724 = vmatprep.subr.bf16.mxu0 %v5055
    %6725 = vmatpush1.bf16.msra.mxu0 %v5054
    %6726 = vmatprep.subr.bf16.mxu0 %v5047
    %6727 = vmatpush1.bf16.msra.mxu0 %v5046
    %6728 = vmatprep.subr.bf16.mxu0 %v5039
    %6729 = vmatpush1.bf16.msra.mxu0 %v5038
    %6730 = vmatprep.subr.bf16.mxu0 %v5031
    %6731 = vmatpush1.bf16.msra.mxu0 %v5030
    %6732 = vmatprep.subr.bf16.mxu0 %v5151
    %6733 = vmatpush2.bf16.msra.mxu0 %v5150
    %6734 = vmatprep.subr.bf16.mxu0 %v5143
    %6735 = vmatpush2.bf16.msra.mxu0 %v5142
    %6736 = vmatprep.subr.bf16.mxu0 %v5135
    %6737 = vmatpush2.bf16.msra.mxu0 %v5134
    %6738 = vmatprep.subr.bf16.mxu0 %v5127
    %6739 = vmatpush2.bf16.msra.mxu0 %v5126
    %6740 = vmatprep.subr.bf16.mxu0 %v5119
    %6741 = vmatpush2.bf16.msra.mxu0 %v5118
    %6742 = vmatprep.subr.bf16.mxu0 %v5111
    %6743 = vmatpush2.bf16.msra.mxu0 %v5110
    %6744 = vmatprep.subr.bf16.mxu0 %v5103
    %6745 = vmatpush2.bf16.msra.mxu0 %v5102
    %6746 = vmatprep.subr.bf16.mxu0 %v5095
    %6747 = vmatpush2.bf16.msra.mxu0 %v5094
    %6748 = vmatprep.mubr.bf16.mxu0 %v3087
    %6749 = vmatmul.mubr.bf16.gmra.mxu0 %v3086
    %v6750 = vpop.f32.mrf.mxu0
    %v6751 = vadd.f32 %v3014, %v6750
    %v6752 = vpop.f32.mrf.mxu0
    %v6753 = vadd.f32 %v3018, %v6752
    %v6754 = vpop.f32.mrf.mxu0
    %v6755 = vpop.f32.mrf.mxu0
    %6756 = vdwg.mxu0
    %6757 = vmatprep.subr.bf16.mxu0 %v5215
    %6758 = vmatpush1.bf16.msra.mxu0 %v5214
    %6759 = vmatprep.subr.bf16.mxu0 %v5207
    %6760 = vmatpush1.bf16.msra.mxu0 %v5206
    %6761 = vmatprep.subr.bf16.mxu0 %v5199
    %6762 = vmatpush1.bf16.msra.mxu0 %v5198
    %6763 = vmatprep.subr.bf16.mxu0 %v5191
    %6764 = vmatpush1.bf16.msra.mxu0 %v5190
    %6765 = vmatprep.subr.bf16.mxu0 %v5183
    %6766 = vmatpush1.bf16.msra.mxu0 %v5182
    %6767 = vmatprep.subr.bf16.mxu0 %v5175
    %6768 = vmatpush1.bf16.msra.mxu0 %v5174
    %6769 = vmatprep.subr.bf16.mxu0 %v5167
    %6770 = vmatpush1.bf16.msra.mxu0 %v5166
    %6771 = vmatprep.subr.bf16.mxu0 %v5159
    %6772 = vmatpush1.bf16.msra.mxu0 %v5158
    %6773 = vmatprep.subr.bf16.mxu0 %v5279
    %6774 = vmatpush2.bf16.msra.mxu0 %v5278
    %6775 = vmatprep.subr.bf16.mxu0 %v5271
    %6776 = vmatpush2.bf16.msra.mxu0 %v5270
    %6777 = vmatprep.subr.bf16.mxu0 %v5263
    %6778 = vmatpush2.bf16.msra.mxu0 %v5262
    %6779 = vmatprep.subr.bf16.mxu0 %v5255
    %6780 = vmatpush2.bf16.msra.mxu0 %v5254
    %6781 = vmatprep.subr.bf16.mxu0 %v5247
    %6782 = vmatpush2.bf16.msra.mxu0 %v5246
    %6783 = vmatprep.subr.bf16.mxu0 %v5239
    %6784 = vmatpush2.bf16.msra.mxu0 %v5238
    %6785 = vmatprep.subr.bf16.mxu0 %v5231
    %6786 = vmatpush2.bf16.msra.mxu0 %v5230
    %6787 = vmatprep.subr.bf16.mxu0 %v5223
    %6788 = vmatpush2.bf16.msra.mxu0 %v5222
    %6789 = vmatprep.mubr.bf16.mxu0 %v3089
    %6790 = vmatmul.mubr.bf16.gmra.mxu0 %v3088
    %v6791 = vpop.f32.mrf.mxu0
    %v6792 = vadd.f32 %v6751, %v6791
    %v6793 = vpop.f32.mrf.mxu0
    %v6794 = vadd.f32 %v6753, %v6793
    %v6795 = vpop.f32.mrf.mxu0
    %v6796 = vpop.f32.mrf.mxu0
    %6797 = vdwg.mxu0
    %6798 = vmatprep.subr.bf16.mxu0 %v5343
    %6799 = vmatpush1.bf16.msra.mxu0 %v5342
    %6800 = vmatprep.subr.bf16.mxu0 %v5335
    %6801 = vmatpush1.bf16.msra.mxu0 %v5334
    %6802 = vmatprep.subr.bf16.mxu0 %v5327
    %6803 = vmatpush1.bf16.msra.mxu0 %v5326
    %6804 = vmatprep.subr.bf16.mxu0 %v5319
    %6805 = vmatpush1.bf16.msra.mxu0 %v5318
    %6806 = vmatprep.subr.bf16.mxu0 %v5311
    %6807 = vmatpush1.bf16.msra.mxu0 %v5310
    %6808 = vmatprep.subr.bf16.mxu0 %v5303
    %6809 = vmatpush1.bf16.msra.mxu0 %v5302
    %6810 = vmatprep.subr.bf16.mxu0 %v5295
    %6811 = vmatpush1.bf16.msra.mxu0 %v5294
    %6812 = vmatprep.subr.bf16.mxu0 %v5287
    %6813 = vmatpush1.bf16.msra.mxu0 %v5286
    %6814 = vmatprep.subr.bf16.mxu0 %v5407
    %6815 = vmatpush2.bf16.msra.mxu0 %v5406
    %6816 = vmatprep.subr.bf16.mxu0 %v5399
    %6817 = vmatpush2.bf16.msra.mxu0 %v5398
    %6818 = vmatprep.subr.bf16.mxu0 %v5391
    %6819 = vmatpush2.bf16.msra.mxu0 %v5390
    %6820 = vmatprep.subr.bf16.mxu0 %v5383
    %6821 = vmatpush2.bf16.msra.mxu0 %v5382
    %6822 = vmatprep.subr.bf16.mxu0 %v5375
    %6823 = vmatpush2.bf16.msra.mxu0 %v5374
    %6824 = vmatprep.subr.bf16.mxu0 %v5367
    %6825 = vmatpush2.bf16.msra.mxu0 %v5366
    %6826 = vmatprep.subr.bf16.mxu0 %v5359
    %6827 = vmatpush2.bf16.msra.mxu0 %v5358
    %6828 = vmatprep.subr.bf16.mxu0 %v5351
    %6829 = vmatpush2.bf16.msra.mxu0 %v5350
    %6830 = vmatprep.mubr.bf16.mxu0 %v3091
    %6831 = vmatmul.mubr.bf16.gmra.mxu0 %v3090
    %v6832 = vpop.f32.mrf.mxu0
    %v6833 = vadd.f32 %v6792, %v6832
    %v6834 = vpop.f32.mrf.mxu0
    %v6835 = vadd.f32 %v6794, %v6834
    %v6836 = vpop.f32.mrf.mxu0
    %v6837 = vpop.f32.mrf.mxu0
    %6838 = vdwg.mxu0
    %6839 = vmatprep.subr.bf16.mxu0 %v5471
    %6840 = vmatpush1.bf16.msra.mxu0 %v5470
    %6841 = vmatprep.subr.bf16.mxu0 %v5463
    %6842 = vmatpush1.bf16.msra.mxu0 %v5462
    %6843 = vmatprep.subr.bf16.mxu0 %v5455
    %6844 = vmatpush1.bf16.msra.mxu0 %v5454
    %6845 = vmatprep.subr.bf16.mxu0 %v5447
    %6846 = vmatpush1.bf16.msra.mxu0 %v5446
    %6847 = vmatprep.subr.bf16.mxu0 %v5439
    %6848 = vmatpush1.bf16.msra.mxu0 %v5438
    %6849 = vmatprep.subr.bf16.mxu0 %v5431
    %6850 = vmatpush1.bf16.msra.mxu0 %v5430
    %6851 = vmatprep.subr.bf16.mxu0 %v5423
    %6852 = vmatpush1.bf16.msra.mxu0 %v5422
    %6853 = vmatprep.subr.bf16.mxu0 %v5415
    %6854 = vmatpush1.bf16.msra.mxu0 %v5414
    %6855 = vmatprep.subr.bf16.mxu0 %v5535
    %6856 = vmatpush2.bf16.msra.mxu0 %v5534
    %6857 = vmatprep.subr.bf16.mxu0 %v5527
    %6858 = vmatpush2.bf16.msra.mxu0 %v5526
    %6859 = vmatprep.subr.bf16.mxu0 %v5519
    %6860 = vmatpush2.bf16.msra.mxu0 %v5518
    %6861 = vmatprep.subr.bf16.mxu0 %v5511
    %6862 = vmatpush2.bf16.msra.mxu0 %v5510
    %6863 = vmatprep.subr.bf16.mxu0 %v5503
    %6864 = vmatpush2.bf16.msra.mxu0 %v5502
    %6865 = vmatprep.subr.bf16.mxu0 %v5495
    %6866 = vmatpush2.bf16.msra.mxu0 %v5494
    %6867 = vmatprep.subr.bf16.mxu0 %v5487
    %6868 = vmatpush2.bf16.msra.mxu0 %v5486
    %6869 = vmatprep.subr.bf16.mxu0 %v5479
    %6870 = vmatpush2.bf16.msra.mxu0 %v5478
    %6871 = vmatprep.mubr.bf16.mxu0 %v3093
    %6872 = vmatmul.mubr.bf16.gmra.mxu0 %v3092
    %v6873 = vpop.f32.mrf.mxu0
    %v6874 = vadd.f32 %v6833, %v6873
    %v6875 = vpop.f32.mrf.mxu0
    %v6876 = vadd.f32 %v6835, %v6875
    %v6877 = vpop.f32.mrf.mxu0
    %v6878 = vpop.f32.mrf.mxu0
    %6879 = vdwg.mxu0
    %6880 = vmatprep.subr.bf16.mxu0 %v5599
    %6881 = vmatpush1.bf16.msra.mxu0 %v5598
    %6882 = vmatprep.subr.bf16.mxu0 %v5591
    %6883 = vmatpush1.bf16.msra.mxu0 %v5590
    %6884 = vmatprep.subr.bf16.mxu0 %v5583
    %6885 = vmatpush1.bf16.msra.mxu0 %v5582
    %6886 = vmatprep.subr.bf16.mxu0 %v5575
    %6887 = vmatpush1.bf16.msra.mxu0 %v5574
    %6888 = vmatprep.subr.bf16.mxu0 %v5567
    %6889 = vmatpush1.bf16.msra.mxu0 %v5566
    %6890 = vmatprep.subr.bf16.mxu0 %v5559
    %6891 = vmatpush1.bf16.msra.mxu0 %v5558
    %6892 = vmatprep.subr.bf16.mxu0 %v5551
    %6893 = vmatpush1.bf16.msra.mxu0 %v5550
    %6894 = vmatprep.subr.bf16.mxu0 %v5543
    %6895 = vmatpush1.bf16.msra.mxu0 %v5542
    %6896 = vmatprep.subr.bf16.mxu0 %v5663
    %6897 = vmatpush2.bf16.msra.mxu0 %v5662
    %6898 = vmatprep.subr.bf16.mxu0 %v5655
    %6899 = vmatpush2.bf16.msra.mxu0 %v5654
    %6900 = vmatprep.subr.bf16.mxu0 %v5647
    %6901 = vmatpush2.bf16.msra.mxu0 %v5646
    %6902 = vmatprep.subr.bf16.mxu0 %v5639
    %6903 = vmatpush2.bf16.msra.mxu0 %v5638
    %6904 = vmatprep.subr.bf16.mxu0 %v5631
    %6905 = vmatpush2.bf16.msra.mxu0 %v5630
    %6906 = vmatprep.subr.bf16.mxu0 %v5623
    %6907 = vmatpush2.bf16.msra.mxu0 %v5622
    %6908 = vmatprep.subr.bf16.mxu0 %v5615
    %6909 = vmatpush2.bf16.msra.mxu0 %v5614
    %6910 = vmatprep.subr.bf16.mxu0 %v5607
    %6911 = vmatpush2.bf16.msra.mxu0 %v5606
    %6912 = vmatprep.mubr.bf16.mxu0 %v3095
    %6913 = vmatmul.mubr.bf16.gmra.mxu0 %v3094
    %v6914 = vpop.f32.mrf.mxu0
    %v6915 = vadd.f32 %v6874, %v6914
    %v6916 = vpop.f32.mrf.mxu0
    %v6917 = vadd.f32 %v6876, %v6916
    %v6918 = vpop.f32.mrf.mxu0
    %v6919 = vpop.f32.mrf.mxu0
    %6920 = vdwg.mxu0
    %6921 = vmatprep.subr.bf16.mxu0 %v5089
    %6922 = vmatpush1.bf16.msra.mxu0 %v5088
    %6923 = vmatprep.subr.bf16.mxu0 %v5081
    %6924 = vmatpush1.bf16.msra.mxu0 %v5080
    %6925 = vmatprep.subr.bf16.mxu0 %v5073
    %6926 = vmatpush1.bf16.msra.mxu0 %v5072
    %6927 = vmatprep.subr.bf16.mxu0 %v5065
    %6928 = vmatpush1.bf16.msra.mxu0 %v5064
    %6929 = vmatprep.subr.bf16.mxu0 %v5057
    %6930 = vmatpush1.bf16.msra.mxu0 %v5056
    %6931 = vmatprep.subr.bf16.mxu0 %v5049
    %6932 = vmatpush1.bf16.msra.mxu0 %v5048
    %6933 = vmatprep.subr.bf16.mxu0 %v5041
    %6934 = vmatpush1.bf16.msra.mxu0 %v5040
    %6935 = vmatprep.subr.bf16.mxu0 %v5033
    %6936 = vmatpush1.bf16.msra.mxu0 %v5032
    %6937 = vmatprep.subr.bf16.mxu0 %v5153
    %6938 = vmatpush2.bf16.msra.mxu0 %v5152
    %6939 = vmatprep.subr.bf16.mxu0 %v5145
    %6940 = vmatpush2.bf16.msra.mxu0 %v5144
    %6941 = vmatprep.subr.bf16.mxu0 %v5137
    %6942 = vmatpush2.bf16.msra.mxu0 %v5136
    %6943 = vmatprep.subr.bf16.mxu0 %v5129
    %6944 = vmatpush2.bf16.msra.mxu0 %v5128
    %6945 = vmatprep.subr.bf16.mxu0 %v5121
    %6946 = vmatpush2.bf16.msra.mxu0 %v5120
    %6947 = vmatprep.subr.bf16.mxu0 %v5113
    %6948 = vmatpush2.bf16.msra.mxu0 %v5112
    %6949 = vmatprep.subr.bf16.mxu0 %v5105
    %6950 = vmatpush2.bf16.msra.mxu0 %v5104
    %6951 = vmatprep.subr.bf16.mxu0 %v5097
    %6952 = vmatpush2.bf16.msra.mxu0 %v5096
    %6953 = vmatprep.mubr.bf16.mxu0 %v3087
    %6954 = vmatmul.mubr.bf16.gmra.mxu0 %v3086
    %v6955 = vpop.f32.mrf.mxu0
    %v6956 = vadd.f32 %v3022, %v6955
    %v6957 = vpop.f32.mrf.mxu0
    %v6958 = vadd.f32 %v3026, %v6957
    %v6959 = vpop.f32.mrf.mxu0
    %v6960 = vpop.f32.mrf.mxu0
    %6961 = vdwg.mxu0
    %6962 = vmatprep.subr.bf16.mxu0 %v5217
    %6963 = vmatpush1.bf16.msra.mxu0 %v5216
    %6964 = vmatprep.subr.bf16.mxu0 %v5209
    %6965 = vmatpush1.bf16.msra.mxu0 %v5208
    %6966 = vmatprep.subr.bf16.mxu0 %v5201
    %6967 = vmatpush1.bf16.msra.mxu0 %v5200
    %6968 = vmatprep.subr.bf16.mxu0 %v5193
    %6969 = vmatpush1.bf16.msra.mxu0 %v5192
    %6970 = vmatprep.subr.bf16.mxu0 %v5185
    %6971 = vmatpush1.bf16.msra.mxu0 %v5184
    %6972 = vmatprep.subr.bf16.mxu0 %v5177
    %6973 = vmatpush1.bf16.msra.mxu0 %v5176
    %6974 = vmatprep.subr.bf16.mxu0 %v5169
    %6975 = vmatpush1.bf16.msra.mxu0 %v5168
    %6976 = vmatprep.subr.bf16.mxu0 %v5161
    %6977 = vmatpush1.bf16.msra.mxu0 %v5160
    %6978 = vmatprep.subr.bf16.mxu0 %v5281
    %6979 = vmatpush2.bf16.msra.mxu0 %v5280
    %6980 = vmatprep.subr.bf16.mxu0 %v5273
    %6981 = vmatpush2.bf16.msra.mxu0 %v5272
    %6982 = vmatprep.subr.bf16.mxu0 %v5265
    %6983 = vmatpush2.bf16.msra.mxu0 %v5264
    %6984 = vmatprep.subr.bf16.mxu0 %v5257
    %6985 = vmatpush2.bf16.msra.mxu0 %v5256
    %6986 = vmatprep.subr.bf16.mxu0 %v5249
    %6987 = vmatpush2.bf16.msra.mxu0 %v5248
    %6988 = vmatprep.subr.bf16.mxu0 %v5241
    %6989 = vmatpush2.bf16.msra.mxu0 %v5240
    %6990 = vmatprep.subr.bf16.mxu0 %v5233
    %6991 = vmatpush2.bf16.msra.mxu0 %v5232
    %6992 = vmatprep.subr.bf16.mxu0 %v5225
    %6993 = vmatpush2.bf16.msra.mxu0 %v5224
    %6994 = vmatprep.mubr.bf16.mxu0 %v3089
    %6995 = vmatmul.mubr.bf16.gmra.mxu0 %v3088
    %v6996 = vpop.f32.mrf.mxu0
    %v6997 = vadd.f32 %v6956, %v6996
    %v6998 = vpop.f32.mrf.mxu0
    %v6999 = vadd.f32 %v6958, %v6998
    %v7000 = vpop.f32.mrf.mxu0
    %v7001 = vpop.f32.mrf.mxu0
    %7002 = vdwg.mxu0
    %7003 = vmatprep.subr.bf16.mxu0 %v5345
    %7004 = vmatpush1.bf16.msra.mxu0 %v5344
    %7005 = vmatprep.subr.bf16.mxu0 %v5337
    %7006 = vmatpush1.bf16.msra.mxu0 %v5336
    %7007 = vmatprep.subr.bf16.mxu0 %v5329
    %7008 = vmatpush1.bf16.msra.mxu0 %v5328
    %7009 = vmatprep.subr.bf16.mxu0 %v5321
    %7010 = vmatpush1.bf16.msra.mxu0 %v5320
    %7011 = vmatprep.subr.bf16.mxu0 %v5313
    %7012 = vmatpush1.bf16.msra.mxu0 %v5312
    %7013 = vmatprep.subr.bf16.mxu0 %v5305
    %7014 = vmatpush1.bf16.msra.mxu0 %v5304
    %7015 = vmatprep.subr.bf16.mxu0 %v5297
    %7016 = vmatpush1.bf16.msra.mxu0 %v5296
    %7017 = vmatprep.subr.bf16.mxu0 %v5289
    %7018 = vmatpush1.bf16.msra.mxu0 %v5288
    %7019 = vmatprep.subr.bf16.mxu0 %v5409
    %7020 = vmatpush2.bf16.msra.mxu0 %v5408
    %7021 = vmatprep.subr.bf16.mxu0 %v5401
    %7022 = vmatpush2.bf16.msra.mxu0 %v5400
    %7023 = vmatprep.subr.bf16.mxu0 %v5393
    %7024 = vmatpush2.bf16.msra.mxu0 %v5392
    %7025 = vmatprep.subr.bf16.mxu0 %v5385
    %7026 = vmatpush2.bf16.msra.mxu0 %v5384
    %7027 = vmatprep.subr.bf16.mxu0 %v5377
    %7028 = vmatpush2.bf16.msra.mxu0 %v5376
    %7029 = vmatprep.subr.bf16.mxu0 %v5369
    %7030 = vmatpush2.bf16.msra.mxu0 %v5368
    %7031 = vmatprep.subr.bf16.mxu0 %v5361
    %7032 = vmatpush2.bf16.msra.mxu0 %v5360
    %7033 = vmatprep.subr.bf16.mxu0 %v5353
    %7034 = vmatpush2.bf16.msra.mxu0 %v5352
    %7035 = vmatprep.mubr.bf16.mxu0 %v3091
    %7036 = vmatmul.mubr.bf16.gmra.mxu0 %v3090
    %v7037 = vpop.f32.mrf.mxu0
    %v7038 = vadd.f32 %v6997, %v7037
    %v7039 = vpop.f32.mrf.mxu0
    %v7040 = vadd.f32 %v6999, %v7039
    %v7041 = vpop.f32.mrf.mxu0
    %v7042 = vpop.f32.mrf.mxu0
    %7043 = vdwg.mxu0
    %7044 = vmatprep.subr.bf16.mxu0 %v5473
    %7045 = vmatpush1.bf16.msra.mxu0 %v5472
    %7046 = vmatprep.subr.bf16.mxu0 %v5465
    %7047 = vmatpush1.bf16.msra.mxu0 %v5464
    %7048 = vmatprep.subr.bf16.mxu0 %v5457
    %7049 = vmatpush1.bf16.msra.mxu0 %v5456
    %7050 = vmatprep.subr.bf16.mxu0 %v5449
    %7051 = vmatpush1.bf16.msra.mxu0 %v5448
    %7052 = vmatprep.subr.bf16.mxu0 %v5441
    %7053 = vmatpush1.bf16.msra.mxu0 %v5440
    %7054 = vmatprep.subr.bf16.mxu0 %v5433
    %7055 = vmatpush1.bf16.msra.mxu0 %v5432
    %7056 = vmatprep.subr.bf16.mxu0 %v5425
    %7057 = vmatpush1.bf16.msra.mxu0 %v5424
    %7058 = vmatprep.subr.bf16.mxu0 %v5417
    %7059 = vmatpush1.bf16.msra.mxu0 %v5416
    %7060 = vmatprep.subr.bf16.mxu0 %v5537
    %7061 = vmatpush2.bf16.msra.mxu0 %v5536
    %7062 = vmatprep.subr.bf16.mxu0 %v5529
    %7063 = vmatpush2.bf16.msra.mxu0 %v5528
    %7064 = vmatprep.subr.bf16.mxu0 %v5521
    %7065 = vmatpush2.bf16.msra.mxu0 %v5520
    %7066 = vmatprep.subr.bf16.mxu0 %v5513
    %7067 = vmatpush2.bf16.msra.mxu0 %v5512
    %7068 = vmatprep.subr.bf16.mxu0 %v5505
    %7069 = vmatpush2.bf16.msra.mxu0 %v5504
    %7070 = vmatprep.subr.bf16.mxu0 %v5497
    %7071 = vmatpush2.bf16.msra.mxu0 %v5496
    %7072 = vmatprep.subr.bf16.mxu0 %v5489
    %7073 = vmatpush2.bf16.msra.mxu0 %v5488
    %7074 = vmatprep.subr.bf16.mxu0 %v5481
    %7075 = vmatpush2.bf16.msra.mxu0 %v5480
    %7076 = vmatprep.mubr.bf16.mxu0 %v3093
    %7077 = vmatmul.mubr.bf16.gmra.mxu0 %v3092
    %v7078 = vpop.f32.mrf.mxu0
    %v7079 = vadd.f32 %v7038, %v7078
    %v7080 = vpop.f32.mrf.mxu0
    %v7081 = vadd.f32 %v7040, %v7080
    %v7082 = vpop.f32.mrf.mxu0
    %v7083 = vpop.f32.mrf.mxu0
    %7084 = vdwg.mxu0
    %7085 = vmatprep.subr.bf16.mxu0 %v5601
    %7086 = vmatpush1.bf16.msra.mxu0 %v5600
    %7087 = vmatprep.subr.bf16.mxu0 %v5593
    %7088 = vmatpush1.bf16.msra.mxu0 %v5592
    %7089 = vmatprep.subr.bf16.mxu0 %v5585
    %7090 = vmatpush1.bf16.msra.mxu0 %v5584
    %7091 = vmatprep.subr.bf16.mxu0 %v5577
    %7092 = vmatpush1.bf16.msra.mxu0 %v5576
    %7093 = vmatprep.subr.bf16.mxu0 %v5569
    %7094 = vmatpush1.bf16.msra.mxu0 %v5568
    %7095 = vmatprep.subr.bf16.mxu0 %v5561
    %7096 = vmatpush1.bf16.msra.mxu0 %v5560
    %7097 = vmatprep.subr.bf16.mxu0 %v5553
    %7098 = vmatpush1.bf16.msra.mxu0 %v5552
    %7099 = vmatprep.subr.bf16.mxu0 %v5545
    %7100 = vmatpush1.bf16.msra.mxu0 %v5544
    %7101 = vmatprep.subr.bf16.mxu0 %v5665
    %7102 = vmatpush2.bf16.msra.mxu0 %v5664
    %7103 = vmatprep.subr.bf16.mxu0 %v5657
    %7104 = vmatpush2.bf16.msra.mxu0 %v5656
    %7105 = vmatprep.subr.bf16.mxu0 %v5649
    %7106 = vmatpush2.bf16.msra.mxu0 %v5648
    %7107 = vmatprep.subr.bf16.mxu0 %v5641
    %7108 = vmatpush2.bf16.msra.mxu0 %v5640
    %7109 = vmatprep.subr.bf16.mxu0 %v5633
    %7110 = vmatpush2.bf16.msra.mxu0 %v5632
    %7111 = vmatprep.subr.bf16.mxu0 %v5625
    %7112 = vmatpush2.bf16.msra.mxu0 %v5624
    %7113 = vmatprep.subr.bf16.mxu0 %v5617
    %7114 = vmatpush2.bf16.msra.mxu0 %v5616
    %7115 = vmatprep.subr.bf16.mxu0 %v5609
    %7116 = vmatpush2.bf16.msra.mxu0 %v5608
    %7117 = vmatprep.mubr.bf16.mxu0 %v3095
    %7118 = vmatmul.mubr.bf16.gmra.mxu0 %v3094
    %v7119 = vpop.f32.mrf.mxu0
    %v7120 = vadd.f32 %v7079, %v7119
    %v7121 = vpop.f32.mrf.mxu0
    %v7122 = vadd.f32 %v7081, %v7121
    %v7123 = vpop.f32.mrf.mxu0
    %v7124 = vpop.f32.mrf.mxu0
    %7125 = vdwg.mxu0
    %v7134 = vcombine.low %v6505, %v6507
    %v7135 = vcombine.low %v6710, %v6712
    %v7137 = vunpack.c.l.s4 1983009808
    %v7138 = vunpack.c.0.s8 %v7137
    %v7139 = vlaneseq
    %v7140 = vshrl.u32 %v7139, 7
    %v7141 = vsub.s32 %v7138, %v7140
    %v7142 = vrot.slane %v7134, %v7141
    %v7144 = vunpack.c.l.s4 1983009808
    %v7145 = vunpack.c.0.s8 %v7144
    %v7146 = vlaneseq
    %v7147 = vshrl.u32 %v7146, 7
    %v7148 = vsub.s32 %v7145, %v7147
    %v7149 = vrot.slane %v7135, %v7148
    %v7150 = vcombine.low %v7142, %v7149
    %v7151 = vcombine.low %v6915, %v6917
    %v7152 = vcombine.low %v7120, %v7122
    %v7154 = vunpack.c.l.s4 1983009808
    %v7155 = vunpack.c.0.s8 %v7154
    %v7156 = vlaneseq
    %v7157 = vshrl.u32 %v7156, 7
    %v7158 = vsub.s32 %v7155, %v7157
    %v7159 = vrot.slane %v7151, %v7158
    %v7161 = vunpack.c.l.s4 1983009808
    %v7162 = vunpack.c.0.s8 %v7161
    %v7163 = vlaneseq
    %v7164 = vshrl.u32 %v7163, 7
    %v7165 = vsub.s32 %v7162, %v7164
    %v7166 = vrot.slane %v7152, %v7165
    %v7167 = vcombine.low %v7159, %v7166
    %7170 = vst [vmem:[#allocation11] sm:$0xff] %v7150
    %7171 = vst [vmem:[#allocation11 + $0x8] sm:$0xff] %v7167
    // Predicated region
    $region46: #{tpu_custom_call.1} parent=1 // pred_check
      _
    $region47: #{tpu_custom_call.1} parent=1 // pred_check_branch
      %7173 = sbr.rel (0) target = $region49
    $region48: #{tpu_custom_call.1} parent=1 // pred_region
      %s7175 = ssub.s32 256, 256
      %7176 = vsyncadd [#allocation4], %s7175
      %s7178 = sshll.u32 [#allocation11], 4
      %s7179 = int_to_ptr.vmem [resolvable:$true] %s7178
      %7181 = dma.vmem_to_hbm [thread:$0]  %s7179, 256, %s6, [#allocation4]
    $region49: #{tpu_custom_call.1} parent=1 // pred_fallthru
      _
    // Predicated region
    $region50: #{tpu_custom_call.1} parent=1 // pred_check
      _
    $region51: #{tpu_custom_call.1} parent=1 // pred_check_branch
      %7183 = sbr.rel (0) target = $region53
    $region52: #{tpu_custom_call.1} parent=1 // pred_region
      %7184 = dma.done [#allocation4], 256
    $region53: #{tpu_custom_call.1} parent=1 // pred_fallthru
      _
    %7185 = vsyncpa [#allocation3], 1
    %7186 = vsyncpa [#allocation6], 1
    %7187 = vsyncpa [#allocation9], 1
    %7188 = vsyncpa [#allocation4], 1

</llo_original>
